<compile_context>
chip_gen: v7x
topology: tpu7x:2x2x1
jax: 0.10.0
libtpu: 0.0.40
codegen_flags: <defaults>
</compile_context>

<pallas_src>
import functools

import jax
import jax.numpy as jnp
from jax.experimental import pallas as pl
from jax.experimental.pallas import tpu as pltpu


# -----------------------------------------------------------------------------
# Kernel 1: NewsEncoder hot path.
#   emb (tile*W, E) bf16 -> conv(k=3, pad=1) as 3 shifted matmuls -> ReLU
#   -> additive word attention -> news vector (tile, D_pad) f32
# -----------------------------------------------------------------------------
def _news_encoder_kernel(x_ref, wl_ref, wc_ref, wr_ref, bc_ref,
                         w1_ref, b1_ref, w2_ref, out_ref, *, words):
    m, _ = x_ref.shape                      # m = tile * words
    d = wc_ref.shape[1]
    h = w1_ref.shape[1]
    tile = m // words

    x = x_ref[...]                          # (M, E) bf16

    # Conv1d(k=3, pad=1): y[t] = x[t-1]@Wl + x[t]@Wc + x[t+1]@Wr + b
    a = jnp.dot(x, wl_ref[...], preferred_element_type=jnp.float32)   # (M, D)
    b = jnp.dot(x, wc_ref[...], preferred_element_type=jnp.float32)   # (M, D)
    c = jnp.dot(x, wr_ref[...], preferred_element_type=jnp.float32)   # (M, D)

    row = jax.lax.broadcasted_iota(jnp.int32, (m, 1), 0)
    is_first = (row % words) == 0                 # word 0: no left neighbour
    is_last = (row % words) == (words - 1)        # last word: no right neighbour

    # XLU sublane rotations (non-negative shifts); wrap-around rows are masked.
    a_sh = pltpu.roll(a, shift=1, axis=0)         # a_sh[r] = x[r-1] @ Wl
    c_sh = pltpu.roll(c, shift=m - 1, axis=0)     # c_sh[r] = x[r+1] @ Wr

    y = (b + jnp.where(is_first, 0.0, a_sh) + jnp.where(is_last, 0.0, c_sh)
         + bc_ref[...])
    y = jnp.maximum(y, 0.0)                       # ReLU, (M, D) f32

    # Additive attention over words.
    e_att = jnp.tanh(jnp.dot(y.astype(jnp.bfloat16), w1_ref[...],
                             preferred_element_type=jnp.float32)
                     + b1_ref[...])               # (M, H)
    e3 = e_att.reshape(tile, words, h)
    s = jnp.sum(e3 * w2_ref[...][None], axis=-1)  # (tile, W)
    s = s - jnp.max(s, axis=-1, keepdims=True)
    p = jnp.exp(s)
    denom = jnp.sum(p, axis=-1, keepdims=True)
    alpha = p * pl.reciprocal(denom, approx=True)  # (tile, W)

    y3 = y.reshape(tile, words, d)
    out_ref[...] = jnp.sum(alpha[:, :, None] * y3, axis=1)   # (tile, D)


def _choose_news_tile(n, requested):
    # Keep at least 2 grid steps when possible so both v7x TensorCores stay busy.
    half = -(-n // 2)
    half = ((half + 7) // 8) * 8
    return max(8, min(requested, half))


def news_encoder_pallas(emb_flat, wl, wc, wr, bc, w1, b1, w2row, *, words, tile=32):
    nw, e = emb_flat.shape
    n = nw // words
    d = wc.shape[1]
    h = w1.shape[1]
    tile = _choose_news_tile(n, tile)
    n_pad = ((n + tile - 1) // tile) * tile
    if n_pad != n:
        emb_flat = jnp.pad(emb_flat, ((0, (n_pad - n) * words), (0, 0)))

    kern = functools.partial(_news_encoder_kernel, words=words)
    out = pl.pallas_call(
        kern,
        out_shape=jax.ShapeDtypeStruct((n_pad, d), jnp.float32),
        grid_spec=pltpu.PrefetchScalarGridSpec(
            num_scalar_prefetch=0,
            grid=(n_pad // tile,),
            in_specs=[
                pl.BlockSpec((tile * words, e), lambda i: (i, 0)),
                pl.BlockSpec((e, d), lambda i: (0, 0)),
                pl.BlockSpec((e, d), lambda i: (0, 0)),
                pl.BlockSpec((e, d), lambda i: (0, 0)),
                pl.BlockSpec((1, d), lambda i: (0, 0)),
                pl.BlockSpec((d, h), lambda i: (0, 0)),
                pl.BlockSpec((1, h), lambda i: (0, 0)),
                pl.BlockSpec((1, h), lambda i: (0, 0)),
            ],
            out_specs=pl.BlockSpec((tile, d), lambda i: (i, 0)),
        ),
        compiler_params=pltpu.CompilerParams(dimension_semantics=("parallel",)),
    )(emb_flat, wl, wc, wr, bc, w1, b1, w2row)
    return out[:n]


# -----------------------------------------------------------------------------
# Kernel 2: UserEncoder (masked additive attention over history) + scoring bmm,
# batch-tiled: Bt batch elements per grid step.
# -----------------------------------------------------------------------------
def _user_score_kernel(uvec_ref, mask_ref, cand_ref, w1_ref, b1_ref, w2_ref,
                       score_ref):
    bt, l, d = uvec_ref.shape
    h = w1_ref.shape[1]

    u = uvec_ref[...]                                           # (Bt, L, D)
    u2 = u.reshape(bt * l, d)
    e = jnp.tanh(jnp.dot(u2, w1_ref[...], preferred_element_type=jnp.float32)
                 + b1_ref[...])                                 # (Bt*L, H)
    s = jnp.sum(e.reshape(bt, l, h) * w2_ref[...][None], axis=-1)   # (Bt, L)
    s = jnp.where(mask_ref[...] > 0, s, -1e30)
    s = s - jnp.max(s, axis=-1, keepdims=True)
    p = jnp.exp(s)
    denom = jnp.sum(p, axis=-1, keepdims=True)
    alpha = p * pl.reciprocal(denom, approx=True)               # (Bt, L)

    user_vec = jnp.sum(alpha[:, :, None] * u, axis=1)           # (Bt, D)
    score_ref[...] = jnp.sum(cand_ref[...] * user_vec[:, None, :], axis=-1)  # (Bt, C)


def user_score_pallas(user_vecs, mask, cand, w1u, b1u, w2u, *, bt=8):
    b, l, d = user_vecs.shape
    c = cand.shape[1]
    h = w1u.shape[1]
    b_pad = ((b + bt - 1) // bt) * bt
    if b_pad != b:
        user_vecs = jnp.pad(user_vecs, ((0, b_pad - b), (0, 0), (0, 0)))
        mask = jnp.pad(mask, ((0, b_pad - b), (0, 0)))
        cand = jnp.pad(cand, ((0, b_pad - b), (0, 0), (0, 0)))

    out = pl.pallas_call(
        _user_score_kernel,
        out_shape=jax.ShapeDtypeStruct((b_pad, c), jnp.float32),
        grid_spec=pltpu.PrefetchScalarGridSpec(
            num_scalar_prefetch=0,
            grid=(b_pad // bt,),
            in_specs=[
                pl.BlockSpec((bt, l, d), lambda i: (i, 0, 0)),
                pl.BlockSpec((bt, l), lambda i: (i, 0)),
                pl.BlockSpec((bt, c, d), lambda i: (i, 0, 0)),
                pl.BlockSpec((d, h), lambda i: (0, 0)),
                pl.BlockSpec((1, h), lambda i: (0, 0)),
                pl.BlockSpec((1, h), lambda i: (0, 0)),
            ],
            out_specs=pl.BlockSpec((bt, c), lambda i: (i, 0)),
        ),
        compiler_params=pltpu.CompilerParams(dimension_semantics=("parallel",)),
    )(user_vecs, mask.astype(jnp.float32), cand, w1u, b1u, w2u)
    return out[:b]                                              # (B, C)


# -----------------------------------------------------------------------------
# Glue: embedding gather, NAML forward, CE loss.
# -----------------------------------------------------------------------------
def naml_forward(params, history, history_mask, candidate, label,
                 *, his_size, npratio, news_dim, news_dim_pad=512,
                 news_tile=32, batch_tile=8):
    b = history.shape[0]
    num_words = history.shape[-1]
    emb_dim = params["word_emb"].shape[1]

    # All news (history + candidate) through the shared NewsEncoder.
    hist_tok = history.reshape(-1, num_words)
    cand_tok = candidate.reshape(-1, num_words)
    all_tok = jnp.concatenate([hist_tok, cand_tok], axis=0)
    n_hist = hist_tok.shape[0]

    # Embedding gather (glue). Flattened to (N*W, E), bf16 MXU input.
    emb = jnp.take(params["word_emb"], all_tok.reshape(-1), axis=0)
    emb = emb.astype(jnp.bfloat16)

    # Pad news_dim 400 -> 512 (zero cols/rows: mathematically inert, lane-dense).
    dp = news_dim_pad
    pad_d = dp - news_dim
    conv_w = jnp.pad(params["conv_w"], ((0, 0), (0, pad_d)))
    wl = conv_w[:emb_dim].astype(jnp.bfloat16)
    wc = conv_w[emb_dim:2 * emb_dim].astype(jnp.bfloat16)
    wr = conv_w[2 * emb_dim:].astype(jnp.bfloat16)
    bc = jnp.pad(params["conv_b"], ((0, 0), (0, pad_d)))
    w1n = jnp.pad(params["news_att_w1"], ((0, pad_d), (0, 0))).astype(jnp.bfloat16)

    news_vecs = news_encoder_pallas(
        emb, wl, wc, wr, bc, w1n,
        params["news_att_b1"], params["news_att_w2"],
        words=num_words, tile=news_tile)                        # (N, dp), pad cols = 0

    user_news = news_vecs[:n_hist].reshape(b, his_size, dp)
    cand_news = news_vecs[n_hist:].reshape(b, 1 + npratio, dp)

    # UserEncoder + bmm scoring in one batch-tiled Pallas kernel.
    w1u = jnp.pad(params["user_att_w1"], ((0, pad_d), (0, 0)))
    score = user_score_pallas(
        user_news, history_mask, cand_news,
        w1u, params["user_att_b1"], params["user_att_w2"], bt=batch_tile)

    # CrossEntropyLoss with soft targets (label: (B, 1+K)) -- scalar glue.
    logp = jax.nn.log_softmax(score, axis=-1)
    loss = -jnp.mean(jnp.sum(label * logp, axis=-1))
    return loss, score


# -----------------------------------------------------------------------------
# Pure-JAX reference (same math, f32, with the same bf16 input rounding the
# kernels apply to their MXU operands) for a correctness check.
# -----------------------------------------------------------------------------
def build_conv_windows(emb):
    """emb: (N, W, E) -> (N, W, 3E) concatenated [x_{t-1}, x_t, x_{t+1}] (zero-pad)."""
    n, w, e = emb.shape
    z = jnp.zeros((n, 1, e), emb.dtype)
    left = jnp.concatenate([z, emb[:, :-1]], axis=1)
    right = jnp.concatenate([emb[:, 1:], z], axis=1)
    return jnp.concatenate([left, emb, right], axis=-1)


def naml_reference(params, history, history_mask, candidate, label,
                   *, his_size, npratio, news_dim):
    def q(x):  # emulate the bf16 rounding of MXU inputs used in the kernels
        return x.astype(jnp.bfloat16).astype(jnp.float32)

    b = history.shape[0]
    num_words = history.shape[-1]
    all_tok = jnp.concatenate(
        [history.reshape(-1, num_words), candidate.reshape(-1, num_words)], axis=0)
    emb = q(jnp.take(params["word_emb"], all_tok, axis=0))
    xwin = build_conv_windows(emb)
    y = jnp.maximum(jnp.einsum("nwk,kd->nwd", xwin, q(params["conv_w"]))
                    + params["conv_b"][None], 0.0)
    e = jnp.tanh(jnp.einsum("nwd,dh->nwh", q(y), q(params["news_att_w1"]))
                 + params["news_att_b1"][None])
    s = jnp.sum(e * params["news_att_w2"][None], axis=-1)
    alpha = jax.nn.softmax(s, axis=-1)
    news_vecs = jnp.sum(alpha[..., None] * y, axis=1)

    n_hist = b * his_size
    user_news = news_vecs[:n_hist].reshape(b, his_size, news_dim)
    cand_news = news_vecs[n_hist:].reshape(b, 1 + npratio, news_dim)

    eu = jnp.tanh(jnp.einsum("bld,dh->blh", user_news, params["user_att_w1"])
                  + params["user_att_b1"][None])
    su = jnp.sum(eu * params["user_att_w2"][None], axis=-1)
    su = jnp.where(history_mask > 0, su, -1e30)
    au = jax.nn.softmax(su, axis=-1)
    user_vec = jnp.sum(au[..., None] * user_news, axis=1)
    score = jnp.einsum("bcd,bd->bc", cand_news, user_vec)
    logp = jax.nn.log_softmax(score, axis=-1)
    loss = -jnp.mean(jnp.sum(label * logp, axis=-1))
    return loss, score


# -----------------------------------------------------------------------------
if __name__ == "__main__":
    # Small, NAML-consistent sizes.
    VOCAB, EMB = 200, 64
    NUM_WORDS = 8
    NEWS_DIM = 400            # self.news_dim in the module
    ATT_HID = 128             # cfg.attention_hidden_dim
    HIS = 8                   # cfg.his_size (user_log_length)
    NPRATIO = 4               # self.npratio  -> 1+K = 5 candidates
    B = 2

    key = jax.random.PRNGKey(0)
    ks = jax.random.split(key, 12)

    word_emb = 0.1 * jax.random.normal(ks[0], (VOCAB, EMB), jnp.float32)
    word_emb = word_emb.at[0].set(0.0)  # padding_idx=0

    params = {
        "word_emb": word_emb,
        "conv_w": 0.05 * jax.random.normal(ks[1], (3 * EMB, NEWS_DIM), jnp.float32),
        "conv_b": 0.01 * jax.random.normal(ks[2], (1, NEWS_DIM), jnp.float32),
        "news_att_w1": 0.05 * jax.random.normal(ks[3], (NEWS_DIM, ATT_HID), jnp.float32),
        "news_att_b1": 0.01 * jax.random.normal(ks[4], (1, ATT_HID), jnp.float32),
        "news_att_w2": 0.05 * jax.random.normal(ks[5], (1, ATT_HID), jnp.float32),
        "user_att_w1": 0.05 * jax.random.normal(ks[6], (NEWS_DIM, ATT_HID), jnp.float32),
        "user_att_b1": 0.01 * jax.random.normal(ks[7], (1, ATT_HID), jnp.float32),
        "user_att_w2": 0.05 * jax.random.normal(ks[8], (1, ATT_HID), jnp.float32),
    }

    history = jax.random.randint(ks[9], (B, HIS, NUM_WORDS), 1, VOCAB, jnp.int32)
    candidate = jax.random.randint(ks[10], (B, 1 + NPRATIO, NUM_WORDS), 1, VOCAB,
                                   jnp.int32)
    lengths = jnp.array([HIS, HIS - 3], jnp.int32)
    history_mask = (jnp.arange(HIS)[None, :] < lengths[:, None]).astype(jnp.float32)
    label = jax.nn.one_hot(jnp.zeros((B,), jnp.int32), 1 + NPRATIO, dtype=jnp.float32)

    # TODO(synk): entity / graph branches (cfg.use_entity, cfg.use_graph) omitted —
    # their submodule definitions are not part of the provided reference.

    fwd = functools.partial(naml_forward, his_size=HIS, npratio=NPRATIO,
                            news_dim=NEWS_DIM)
    loss, score = jax.jit(fwd)(params, history, history_mask, candidate, label)
    jax.block_until_ready((loss, score))

    ref_loss, ref_score = naml_reference(params, history, history_mask, candidate,
                                         label, his_size=HIS, npratio=NPRATIO,
                                         news_dim=NEWS_DIM)
    assert jnp.all(jnp.isfinite(score)) and jnp.isfinite(loss)
    # bf16 MXU inputs + approx-reciprocal softmax => slightly loose tolerance.
    assert jnp.allclose(score, ref_score, rtol=1e-2, atol=1e-2), "score mismatch"
    assert jnp.allclose(loss, ref_loss, rtol=1e-2, atol=1e-2), "loss mismatch"

    print("KERNEL_OK")
</pallas_src>

<mosaic_0001>
module attributes {stable_mosaic.version = 11 : i64} {
  func.func @_news_encoder_kernel(%arg0: i32, %arg1: memref<128x64xbf16, #tpu.memory_space<vmem>>, %arg2: memref<64x512xbf16, #tpu.memory_space<vmem>>, %arg3: memref<64x512xbf16, #tpu.memory_space<vmem>>, %arg4: memref<64x512xbf16, #tpu.memory_space<vmem>>, %arg5: memref<1x512xf32, #tpu.memory_space<vmem>>, %arg6: memref<512x128xbf16, #tpu.memory_space<vmem>>, %arg7: memref<1x128xf32, #tpu.memory_space<vmem>>, %arg8: memref<1x128xf32, #tpu.memory_space<vmem>>, %arg9: memref<16x512xf32, #tpu.memory_space<vmem>>) attributes {dimension_semantics = [#tpu.dimension_semantics<parallel>], iteration_bounds = array<i64: 2>, scalar_prefetch = 0 : i64, scratch_operands = 0 : i64, tpu.core_type = #tpu.core_type<tc>, window_params = [{transform_indices = @transform_0, window_bounds = array<i64: 128, 64>}, {pipeline_mode = #tpu.pipeline_mode<synchronous>, transform_indices = @transform_1, window_bounds = array<i64: 64, 512>}, {pipeline_mode = #tpu.pipeline_mode<synchronous>, transform_indices = @transform_2, window_bounds = array<i64: 64, 512>}, {pipeline_mode = #tpu.pipeline_mode<synchronous>, transform_indices = @transform_3, window_bounds = array<i64: 64, 512>}, {pipeline_mode = #tpu.pipeline_mode<synchronous>, transform_indices = @transform_4, window_bounds = array<i64: 1, 512>}, {pipeline_mode = #tpu.pipeline_mode<synchronous>, transform_indices = @transform_5, window_bounds = array<i64: 512, 128>}, {pipeline_mode = #tpu.pipeline_mode<synchronous>, transform_indices = @transform_6, window_bounds = array<i64: 1, 128>}, {pipeline_mode = #tpu.pipeline_mode<synchronous>, transform_indices = @transform_7, window_bounds = array<i64: 1, 128>}, {transform_indices = @transform_8, window_bounds = array<i64: 16, 512>}]} {
    %c0 = arith.constant 0 : index
    %c0_0 = arith.constant 0 : index
    %0 = vector.load %arg1[%c0, %c0_0] : memref<128x64xbf16, #tpu.memory_space<vmem>>, vector<128x64xbf16>
    %c0_1 = arith.constant 0 : index
    %c0_2 = arith.constant 0 : index
    %1 = vector.load %arg2[%c0_1, %c0_2] : memref<64x512xbf16, #tpu.memory_space<vmem>>, vector<64x512xbf16>
    %cst = arith.constant dense<0.000000e+00> : vector<128x512xf32>
    %2 = tpu.matmul %0, %1, %cst {dimension_numbers = #tpu.dot_dimension_numbers<[1], [0], [0], [1], [0, 0, 1, 1], [], []>} : vector<128x64xbf16>, vector<64x512xbf16>, vector<128x512xf32> -> vector<128x512xf32>
    %c0_3 = arith.constant 0 : index
    %c0_4 = arith.constant 0 : index
    %3 = vector.load %arg3[%c0_3, %c0_4] : memref<64x512xbf16, #tpu.memory_space<vmem>>, vector<64x512xbf16>
    %cst_5 = arith.constant dense<0.000000e+00> : vector<128x512xf32>
    %4 = tpu.matmul %0, %3, %cst_5 {dimension_numbers = #tpu.dot_dimension_numbers<[1], [0], [0], [1], [0, 0, 1, 1], [], []>} : vector<128x64xbf16>, vector<64x512xbf16>, vector<128x512xf32> -> vector<128x512xf32>
    %c0_6 = arith.constant 0 : index
    %c0_7 = arith.constant 0 : index
    %5 = vector.load %arg4[%c0_6, %c0_7] : memref<64x512xbf16, #tpu.memory_space<vmem>>, vector<64x512xbf16>
    %cst_8 = arith.constant dense<0.000000e+00> : vector<128x512xf32>
    %6 = tpu.matmul %0, %5, %cst_8 {dimension_numbers = #tpu.dot_dimension_numbers<[1], [0], [0], [1], [0, 0, 1, 1], [], []>} : vector<128x64xbf16>, vector<64x512xbf16>, vector<128x512xf32> -> vector<128x512xf32>
    %7 = tpu.iota {dimensions = array<i32: 0>} : vector<128x1xi32>
    %c8_i32 = arith.constant 8 : i32
    %c0_i32 = arith.constant 0 : i32
    %8 = arith.cmpi eq, %c8_i32, %c0_i32 : i32
    %c1_i32 = arith.constant 1 : i32
    %9 = arith.select %8, %c1_i32, %c8_i32 : i32
    %10 = vector.broadcast %9 : i32 to vector<128x1xi32>
    %11 = arith.remsi %7, %10 : vector<128x1xi32>
    %c0_i32_9 = arith.constant 0 : i32
    %12 = vector.broadcast %c0_i32_9 : i32 to vector<128x1xi32>
    %13 = arith.cmpi ne, %11, %12 : vector<128x1xi32>
    %c0_i32_10 = arith.constant 0 : i32
    %14 = vector.broadcast %c0_i32_10 : i32 to vector<128x1xi32>
    %15 = arith.cmpi slt, %11, %14 : vector<128x1xi32>
    %c0_i32_11 = arith.constant 0 : i32
    %16 = arith.cmpi slt, %9, %c0_i32_11 : i32
    %17 = vector.broadcast %16 : i1 to vector<128x1xi1>
    %18 = vector.broadcast %17 : vector<128x1xi1> to vector<128x1xi1>
    %19 = arith.xori %15, %18 : vector<128x1xi1>
    %20 = arith.andi %19, %13 : vector<128x1xi1>
    %21 = vector.broadcast %9 : i32 to vector<128x1xi32>
    %22 = arith.addi %11, %21 : vector<128x1xi32>
    %23 = arith.select %20, %22, %11 : vector<128x1xi1>, vector<128x1xi32>
    %c0_i32_12 = arith.constant 0 : i32
    %24 = vector.broadcast %c0_i32_12 : i32 to vector<128x1xi32>
    %25 = arith.cmpi eq, %23, %24 : vector<128x1xi32>
    %c8_i32_13 = arith.constant 8 : i32
    %c0_i32_14 = arith.constant 0 : i32
    %26 = arith.cmpi eq, %c8_i32_13, %c0_i32_14 : i32
    %c1_i32_15 = arith.constant 1 : i32
    %27 = arith.select %26, %c1_i32_15, %c8_i32_13 : i32
    %28 = vector.broadcast %27 : i32 to vector<128x1xi32>
    %29 = arith.remsi %7, %28 : vector<128x1xi32>
    %c0_i32_16 = arith.constant 0 : i32
    %30 = vector.broadcast %c0_i32_16 : i32 to vector<128x1xi32>
    %31 = arith.cmpi ne, %29, %30 : vector<128x1xi32>
    %c0_i32_17 = arith.constant 0 : i32
    %32 = vector.broadcast %c0_i32_17 : i32 to vector<128x1xi32>
    %33 = arith.cmpi slt, %29, %32 : vector<128x1xi32>
    %c0_i32_18 = arith.constant 0 : i32
    %34 = arith.cmpi slt, %27, %c0_i32_18 : i32
    %35 = vector.broadcast %34 : i1 to vector<128x1xi1>
    %36 = vector.broadcast %35 : vector<128x1xi1> to vector<128x1xi1>
    %37 = arith.xori %33, %36 : vector<128x1xi1>
    %38 = arith.andi %37, %31 : vector<128x1xi1>
    %39 = vector.broadcast %27 : i32 to vector<128x1xi32>
    %40 = arith.addi %29, %39 : vector<128x1xi32>
    %41 = arith.select %38, %40, %29 : vector<128x1xi1>, vector<128x1xi32>
    %c7_i32 = arith.constant 7 : i32
    %42 = vector.broadcast %c7_i32 : i32 to vector<128x1xi32>
    %43 = arith.cmpi eq, %41, %42 : vector<128x1xi32>
    %c1_i32_19 = arith.constant 1 : i32
    %44 = tpu.dynamic_rotate %2 by %c1_i32_19 dim 0 : vector<128x512xf32>, i32 -> vector<128x512xf32>
    %c127_i32 = arith.constant 127 : i32
    %45 = tpu.dynamic_rotate %6 by %c127_i32 dim 0 : vector<128x512xf32>, i32 -> vector<128x512xf32>
    %cst_20 = arith.constant 0.000000e+00 : f32
    %46 = vector.shape_cast %25 : vector<128x1xi1> to vector<128x1xi1>
    %47 = vector.broadcast %46 : vector<128x1xi1> to vector<128x512xi1>
    %48 = vector.broadcast %cst_20 : f32 to vector<128x512xf32>
    %49 = arith.select %47, %48, %44 : vector<128x512xi1>, vector<128x512xf32>
    %50 = arith.addf %4, %49 : vector<128x512xf32>
    %cst_21 = arith.constant 0.000000e+00 : f32
    %51 = vector.shape_cast %43 : vector<128x1xi1> to vector<128x1xi1>
    %52 = vector.broadcast %51 : vector<128x1xi1> to vector<128x512xi1>
    %53 = vector.broadcast %cst_21 : f32 to vector<128x512xf32>
    %54 = arith.select %52, %53, %45 : vector<128x512xi1>, vector<128x512xf32>
    %55 = arith.addf %50, %54 : vector<128x512xf32>
    %c0_22 = arith.constant 0 : index
    %c0_23 = arith.constant 0 : index
    %56 = vector.load %arg5[%c0_22, %c0_23] : memref<1x512xf32, #tpu.memory_space<vmem>>, vector<1x512xf32>
    %57 = vector.broadcast %56 : vector<1x512xf32> to vector<128x512xf32>
    %58 = arith.addf %55, %57 : vector<128x512xf32>
    %cst_24 = arith.constant 0.000000e+00 : f32
    %59 = vector.broadcast %cst_24 : f32 to vector<128x512xf32>
    %60 = arith.maximumf %58, %59 : vector<128x512xf32>
    %61 = arith.truncf %60 : vector<128x512xf32> to vector<128x512xbf16>
    %c0_25 = arith.constant 0 : index
    %c0_26 = arith.constant 0 : index
    %62 = vector.load %arg6[%c0_25, %c0_26] : memref<512x128xbf16, #tpu.memory_space<vmem>>, vector<512x128xbf16>
    %cst_27 = arith.constant dense<0.000000e+00> : vector<128x128xf32>
    %63 = tpu.matmul %61, %62, %cst_27 {dimension_numbers = #tpu.dot_dimension_numbers<[1], [0], [0], [1], [0, 0, 1, 1], [], []>} : vector<128x512xbf16>, vector<512x128xbf16>, vector<128x128xf32> -> vector<128x128xf32>
    %c0_28 = arith.constant 0 : index
    %c0_29 = arith.constant 0 : index
    %64 = vector.load %arg7[%c0_28, %c0_29] : memref<1x128xf32, #tpu.memory_space<vmem>>, vector<1x128xf32>
    %65 = vector.broadcast %64 : vector<1x128xf32> to vector<128x128xf32>
    %66 = arith.addf %63, %65 : vector<128x128xf32>
    %67 = math.tanh %66 : vector<128x128xf32>
    %68 = vector.shape_cast %67 : vector<128x128xf32> to vector<16x8x128xf32>
    %c0_30 = arith.constant 0 : index
    %c0_31 = arith.constant 0 : index
    %69 = vector.load %arg8[%c0_30, %c0_31] : memref<1x128xf32, #tpu.memory_space<vmem>>, vector<1x128xf32>
    %70 = vector.shape_cast %69 : vector<1x128xf32> to vector<1x1x128xf32>
    %71 = vector.broadcast %70 : vector<1x1x128xf32> to vector<16x8x128xf32>
    %72 = arith.mulf %68, %71 : vector<16x8x128xf32>
    %cst_32 = arith.constant dense<0.000000e+00> : vector<16x8xf32>
    %73 = vector.multi_reduction <add>, %72, %cst_32 [2] : vector<16x8x128xf32> to vector<16x8xf32>
    %cst_33 = arith.constant dense<0xFF800000> : vector<16xf32>
    %74 = vector.multi_reduction <maximumf>, %73, %cst_33 [1] : vector<16x8xf32> to vector<16xf32>
    %75 = vector.shape_cast %74 : vector<16xf32> to vector<16x1xf32>
    %76 = vector.broadcast %75 : vector<16x1xf32> to vector<16x8xf32>
    %77 = arith.subf %73, %76 : vector<16x8xf32>
    %78 = math.exp %77 : vector<16x8xf32>
    %cst_34 = arith.constant dense<0.000000e+00> : vector<16xf32>
    %79 = vector.multi_reduction <add>, %78, %cst_34 [1] : vector<16x8xf32> to vector<16xf32>
    %80 = vector.shape_cast %79 : vector<16xf32> to vector<16x1xf32>
    %81 = tpu.reciprocal %80 {approx = true} : vector<16x1xf32> -> vector<16x1xf32>
    %82 = vector.broadcast %81 : vector<16x1xf32> to vector<16x8xf32>
    %83 = arith.mulf %78, %82 : vector<16x8xf32>
    %84 = vector.shape_cast %60 : vector<128x512xf32> to vector<16x8x512xf32>
    %85 = vector.shape_cast %83 : vector<16x8xf32> to vector<16x8x1xf32>
    %86 = vector.broadcast %85 : vector<16x8x1xf32> to vector<16x8x512xf32>
    %87 = arith.mulf %86, %84 : vector<16x8x512xf32>
    %cst_35 = arith.constant dense<0.000000e+00> : vector<16x512xf32>
    %88 = vector.multi_reduction <add>, %87, %cst_35 [1] : vector<16x8x512xf32> to vector<16x512xf32>
    %c0_36 = arith.constant 0 : index
    %c0_37 = arith.constant 0 : index
    %89 = vector.load %arg9[%c0_36, %c0_37] : memref<16x512xf32, #tpu.memory_space<vmem>>, vector<16x512xf32>
    tpu.vector_store %arg9[%c0_36, %c0_37], %88 {strides = array<i32>} : memref<16x512xf32, #tpu.memory_space<vmem>>, vector<16x512xf32>,
    return
  }
  func.func @transform_0(%arg0: i32) -> (i32, i32) {
    %c0_i32 = arith.constant 0 : i32
    %c0_i32_0 = arith.constant 0 : i32
    return %arg0, %c0_i32 : i32, i32
  }
  func.func @transform_1(%arg0: i32) -> (i32, i32) {
    %c0_i32 = arith.constant 0 : i32
    %c0_i32_0 = arith.constant 0 : i32
    %c0_i32_1 = arith.constant 0 : i32
    return %c0_i32, %c0_i32_0 : i32, i32
  }
  func.func @transform_2(%arg0: i32) -> (i32, i32) {
    %c0_i32 = arith.constant 0 : i32
    %c0_i32_0 = arith.constant 0 : i32
    %c0_i32_1 = arith.constant 0 : i32
    return %c0_i32, %c0_i32_0 : i32, i32
  }
  func.func @transform_3(%arg0: i32) -> (i32, i32) {
    %c0_i32 = arith.constant 0 : i32
    %c0_i32_0 = arith.constant 0 : i32
    %c0_i32_1 = arith.constant 0 : i32
    return %c0_i32, %c0_i32_0 : i32, i32
  }
  func.func @transform_4(%arg0: i32) -> (i32, i32) {
    %c0_i32 = arith.constant 0 : i32
    %c0_i32_0 = arith.constant 0 : i32
    %c0_i32_1 = arith.constant 0 : i32
    return %c0_i32, %c0_i32_0 : i32, i32
  }
  func.func @transform_5(%arg0: i32) -> (i32, i32) {
    %c0_i32 = arith.constant 0 : i32
    %c0_i32_0 = arith.constant 0 : i32
    %c0_i32_1 = arith.constant 0 : i32
    return %c0_i32, %c0_i32_0 : i32, i32
  }
  func.func @transform_6(%arg0: i32) -> (i32, i32) {
    %c0_i32 = arith.constant 0 : i32
    %c0_i32_0 = arith.constant 0 : i32
    %c0_i32_1 = arith.constant 0 : i32
    return %c0_i32, %c0_i32_0 : i32, i32
  }
  func.func @transform_7(%arg0: i32) -> (i32, i32) {
    %c0_i32 = arith.constant 0 : i32
    %c0_i32_0 = arith.constant 0 : i32
    %c0_i32_1 = arith.constant 0 : i32
    return %c0_i32, %c0_i32_0 : i32, i32
  }
  func.func @transform_8(%arg0: i32) -> (i32, i32) {
    %c0_i32 = arith.constant 0 : i32
    %c0_i32_0 = arith.constant 0 : i32
    return %arg0, %c0_i32 : i32, i32
  }
}

module attributes {stable_mosaic.version = 11 : i64} {
  func.func @_user_score_kernel(%arg0: i32, %arg1: memref<8x8x512xf32, #tpu.memory_space<vmem>>, %arg2: memref<8x8xf32, #tpu.memory_space<vmem>>, %arg3: memref<8x5x512xf32, #tpu.memory_space<vmem>>, %arg4: memref<512x128xf32, #tpu.memory_space<vmem>>, %arg5: memref<1x128xf32, #tpu.memory_space<vmem>>, %arg6: memref<1x128xf32, #tpu.memory_space<vmem>>, %arg7: memref<8x5xf32, #tpu.memory_space<vmem>>) attributes {dimension_semantics = [#tpu.dimension_semantics<parallel>], iteration_bounds = array<i64: 1>, scalar_prefetch = 0 : i64, scratch_operands = 0 : i64, tpu.core_type = #tpu.core_type<tc>, window_params = [{transform_indices = @transform_0, window_bounds = array<i64: 8, 8, 512>}, {transform_indices = @transform_1, window_bounds = array<i64: 8, 8>}, {transform_indices = @transform_2, window_bounds = array<i64: 8, 5, 512>}, {pipeline_mode = #tpu.pipeline_mode<synchronous>, transform_indices = @transform_3, window_bounds = array<i64: 512, 128>}, {pipeline_mode = #tpu.pipeline_mode<synchronous>, transform_indices = @transform_4, window_bounds = array<i64: 1, 128>}, {pipeline_mode = #tpu.pipeline_mode<synchronous>, transform_indices = @transform_5, window_bounds = array<i64: 1, 128>}, {transform_indices = @transform_6, window_bounds = array<i64: 8, 5>}]} {
    %c0 = arith.constant 0 : index
    %c0_0 = arith.constant 0 : index
    %c0_1 = arith.constant 0 : index
    %0 = vector.load %arg1[%c0, %c0_0, %c0_1] : memref<8x8x512xf32, #tpu.memory_space<vmem>>, vector<8x8x512xf32>
    %1 = vector.shape_cast %0 : vector<8x8x512xf32> to vector<64x512xf32>
    %c0_2 = arith.constant 0 : index
    %c0_3 = arith.constant 0 : index
    %2 = vector.load %arg4[%c0_2, %c0_3] : memref<512x128xf32, #tpu.memory_space<vmem>>, vector<512x128xf32>
    %cst = arith.constant dense<0.000000e+00> : vector<64x128xf32>
    %3 = tpu.matmul %1, %2, %cst {dimension_numbers = #tpu.dot_dimension_numbers<[1], [0], [0], [1], [0, 0, 1, 1], [], []>} : vector<64x512xf32>, vector<512x128xf32>, vector<64x128xf32> -> vector<64x128xf32>
    %c0_4 = arith.constant 0 : index
    %c0_5 = arith.constant 0 : index
    %4 = vector.load %arg5[%c0_4, %c0_5] : memref<1x128xf32, #tpu.memory_space<vmem>>, vector<1x128xf32>
    %5 = vector.broadcast %4 : vector<1x128xf32> to vector<64x128xf32>
    %6 = arith.addf %3, %5 : vector<64x128xf32>
    %7 = math.tanh %6 : vector<64x128xf32>
    %8 = vector.shape_cast %7 : vector<64x128xf32> to vector<8x8x128xf32>
    %c0_6 = arith.constant 0 : index
    %c0_7 = arith.constant 0 : index
    %9 = vector.load %arg6[%c0_6, %c0_7] : memref<1x128xf32, #tpu.memory_space<vmem>>, vector<1x128xf32>
    %10 = vector.shape_cast %9 : vector<1x128xf32> to vector<1x1x128xf32>
    %11 = vector.broadcast %10 : vector<1x1x128xf32> to vector<8x8x128xf32>
    %12 = arith.mulf %8, %11 : vector<8x8x128xf32>
    %cst_8 = arith.constant dense<0.000000e+00> : vector<8x8xf32>
    %13 = vector.multi_reduction <add>, %12, %cst_8 [2] : vector<8x8x128xf32> to vector<8x8xf32>
    %c0_9 = arith.constant 0 : index
    %c0_10 = arith.constant 0 : index
    %14 = vector.load %arg2[%c0_9, %c0_10] : memref<8x8xf32, #tpu.memory_space<vmem>>, vector<8x8xf32>
    %cst_11 = arith.constant 0.000000e+00 : f32
    %15 = vector.broadcast %cst_11 : f32 to vector<8x8xf32>
    %16 = arith.cmpf ogt, %14, %15 : vector<8x8xf32>
    %cst_12 = arith.constant -1.000000e+30 : f32
    %17 = vector.broadcast %cst_12 : f32 to vector<8x8xf32>
    %18 = arith.select %16, %13, %17 : vector<8x8xi1>, vector<8x8xf32>
    %cst_13 = arith.constant dense<0xFF800000> : vector<8xf32>
    %19 = vector.multi_reduction <maximumf>, %18, %cst_13 [1] : vector<8x8xf32> to vector<8xf32>
    %20 = vector.shape_cast %19 : vector<8xf32> to vector<8x1xf32>
    %21 = vector.broadcast %20 : vector<8x1xf32> to vector<8x8xf32>
    %22 = arith.subf %18, %21 : vector<8x8xf32>
    %23 = math.exp %22 : vector<8x8xf32>
    %cst_14 = arith.constant dense<0.000000e+00> : vector<8xf32>
    %24 = vector.multi_reduction <add>, %23, %cst_14 [1] : vector<8x8xf32> to vector<8xf32>
    %25 = vector.shape_cast %24 : vector<8xf32> to vector<8x1xf32>
    %26 = tpu.reciprocal %25 {approx = true} : vector<8x1xf32> -> vector<8x1xf32>
    %27 = vector.broadcast %26 : vector<8x1xf32> to vector<8x8xf32>
    %28 = arith.mulf %23, %27 : vector<8x8xf32>
    %29 = vector.shape_cast %28 : vector<8x8xf32> to vector<8x8x1xf32>
    %30 = vector.broadcast %29 : vector<8x8x1xf32> to vector<8x8x512xf32>
    %31 = arith.mulf %30, %0 : vector<8x8x512xf32>
    %cst_15 = arith.constant dense<0.000000e+00> : vector<8x512xf32>
    %32 = vector.multi_reduction <add>, %31, %cst_15 [1] : vector<8x8x512xf32> to vector<8x512xf32>
    %c0_16 = arith.constant 0 : index
    %c0_17 = arith.constant 0 : index
    %c0_18 = arith.constant 0 : index
    %33 = vector.load %arg3[%c0_16, %c0_17, %c0_18] : memref<8x5x512xf32, #tpu.memory_space<vmem>>, vector<8x5x512xf32>
    %34 = vector.shape_cast %32 : vector<8x512xf32> to vector<8x1x512xf32>
    %35 = vector.broadcast %34 : vector<8x1x512xf32> to vector<8x5x512xf32>
    %36 = arith.mulf %33, %35 : vector<8x5x512xf32>
    %cst_19 = arith.constant dense<0.000000e+00> : vector<8x5xf32>
    %37 = vector.multi_reduction <add>, %36, %cst_19 [2] : vector<8x5x512xf32> to vector<8x5xf32>
    %c0_20 = arith.constant 0 : index
    %c0_21 = arith.constant 0 : index
    %38 = vector.load %arg7[%c0_20, %c0_21] : memref<8x5xf32, #tpu.memory_space<vmem>>, vector<8x5xf32>
    tpu.vector_store %arg7[%c0_20, %c0_21], %37 {strides = array<i32>} : memref<8x5xf32, #tpu.memory_space<vmem>>, vector<8x5xf32>,
    return
  }
  func.func @transform_0(%arg0: i32) -> (i32, i32, i32) {
    %c0_i32 = arith.constant 0 : i32
    %c0_i32_0 = arith.constant 0 : i32
    %c0_i32_1 = arith.constant 0 : i32
    return %arg0, %c0_i32, %c0_i32_0 : i32, i32, i32
  }
  func.func @transform_1(%arg0: i32) -> (i32, i32) {
    %c0_i32 = arith.constant 0 : i32
    %c0_i32_0 = arith.constant 0 : i32
    return %arg0, %c0_i32 : i32, i32
  }
  func.func @transform_2(%arg0: i32) -> (i32, i32, i32) {
    %c0_i32 = arith.constant 0 : i32
    %c0_i32_0 = arith.constant 0 : i32
    %c0_i32_1 = arith.constant 0 : i32
    return %arg0, %c0_i32, %c0_i32_0 : i32, i32, i32
  }
  func.func @transform_3(%arg0: i32) -> (i32, i32) {
    %c0_i32 = arith.constant 0 : i32
    %c0_i32_0 = arith.constant 0 : i32
    %c0_i32_1 = arith.constant 0 : i32
    return %c0_i32, %c0_i32_0 : i32, i32
  }
  func.func @transform_4(%arg0: i32) -> (i32, i32) {
    %c0_i32 = arith.constant 0 : i32
    %c0_i32_0 = arith.constant 0 : i32
    %c0_i32_1 = arith.constant 0 : i32
    return %c0_i32, %c0_i32_0 : i32, i32
  }
  func.func @transform_5(%arg0: i32) -> (i32, i32) {
    %c0_i32 = arith.constant 0 : i32
    %c0_i32_0 = arith.constant 0 : i32
    %c0_i32_1 = arith.constant 0 : i32
    return %c0_i32, %c0_i32_0 : i32, i32
  }
  func.func @transform_6(%arg0: i32) -> (i32, i32) {
    %c0_i32 = arith.constant 0 : i32
    %c0_i32_0 = arith.constant 0 : i32
    return %arg0, %c0_i32 : i32, i32
  }
}

</mosaic_0001>

<llo_original>
// kernel: naml_forward.3
$region0: #{naml_forward.3}
  #allocation0 [shape = 'u32[]', space=smem, size = 0x4, offset = 0x4, fixed_abs, tag = 'smem constant byte address 0x4 - core index']
  #allocation1 [shape = 'u32[144,128]{1,0:T(1,128)}', space=vmem, size = 0x12000, scoped, tag = 'internal scratch']
  %s0 = inlined_call_operand.vmem [shape: f32[8,8,512], index: 0, kind: input, shape index: {}]
  %s1 = inlined_call_operand.vmem [shape: f32[8,8], index: 1, kind: input, shape index: {}]
  %s2 = inlined_call_operand.vmem [shape: f32[8,5,512], index: 2, kind: input, shape index: {}]
  %s3 = inlined_call_operand.vmem [shape: f32[512,128], index: 3, kind: input, shape index: {}]
  %s4 = inlined_call_operand.vmem [shape: f32[1,128], index: 4, kind: input, shape index: {}]
  %s5 = inlined_call_operand.vmem [shape: f32[1,128], index: 5, kind: input, shape index: {}]
  %s6 = inlined_call_operand.vmem [shape: f32[8,5], index: 6, kind: output, shape index: {}]
  %s7 = sld [smem:[#allocation0]]
  $region34: #{naml_forward.3} parent=0
    _
  %s9 = ssub.s32 1, %s7
  %s10 = scalar_select 0, %s9, %s7
  // Predicated region
  $region2: #{naml_forward.3} parent=0 // pred_check
    _
  $region3: #{naml_forward.3} parent=0 // pred_check_branch
    %12 = sbr.rel (0) target = $region5
  $region4: #{naml_forward.3} parent=0 // pred_region
    _
  $region5: #{naml_forward.3} parent=0 // pred_fallthru
    _
  // Predicated region
  $region6: #{naml_forward.3} parent=0 // pred_check
    _
  $region7: #{naml_forward.3} parent=0 // pred_check_branch
    %14 = sbr.rel (0) target = $region9
  $region8: #{naml_forward.3} parent=0 // pred_region
    _
  $region9: #{naml_forward.3} parent=0 // pred_fallthru
    _
  // Predicated region
  $region10: #{naml_forward.3} parent=0 // pred_check
    _
  $region11: #{naml_forward.3} parent=0 // pred_check_branch
    %16 = sbr.rel (0) target = $region13
  $region12: #{naml_forward.3} parent=0 // pred_region
    _
  $region13: #{naml_forward.3} parent=0 // pred_fallthru
    _
  // Predicated region
  $region14: #{naml_forward.3} parent=0 // pred_check
    _
  $region15: #{naml_forward.3} parent=0 // pred_check_branch
    %18 = sbr.rel (0) target = $region17
  $region16: #{naml_forward.3} parent=0 // pred_region
    _
  $region17: #{naml_forward.3} parent=0 // pred_fallthru
    _
  // Predicated region
  $region18: #{naml_forward.3} parent=0 // pred_check
    _
  $region19: #{naml_forward.3} parent=0 // pred_check_branch
    %20 = sbr.rel (0) target = $region21
  $region20: #{naml_forward.3} parent=0 // pred_region
    _
  $region21: #{naml_forward.3} parent=0 // pred_fallthru
    _
  // Predicated region
  $region22: #{naml_forward.3} parent=0 // pred_check
    _
  $region23: #{naml_forward.3} parent=0 // pred_check_branch
    %22 = sbr.rel (0) target = $region25
  $region24: #{naml_forward.3} parent=0 // pred_region
    _
  $region25: #{naml_forward.3} parent=0 // pred_fallthru
    _
  %v23 = vld [vmem:[%s0] sm:$0xff]
  %v24 = vld [vmem:[%s0 + $0x8] sm:$0xff]
  %v25 = vld [vmem:[%s0 + $0x10] sm:$0xff]
  %v26 = vld [vmem:[%s0 + $0x18] sm:$0xff]
  %v27 = vld [vmem:[%s0 + $0x20] sm:$0xff]
  %v28 = vld [vmem:[%s0 + $0x28] sm:$0xff]
  %v29 = vld [vmem:[%s0 + $0x30] sm:$0xff]
  %v30 = vld [vmem:[%s0 + $0x38] sm:$0xff]
  %v31 = vld [vmem:[%s0 + $0x40] sm:$0xff]
  %v32 = vld [vmem:[%s0 + $0x48] sm:$0xff]
  %v33 = vld [vmem:[%s0 + $0x50] sm:$0xff]
  %v34 = vld [vmem:[%s0 + $0x58] sm:$0xff]
  %v35 = vld [vmem:[%s0 + $0x60] sm:$0xff]
  %v36 = vld [vmem:[%s0 + $0x68] sm:$0xff]
  %v37 = vld [vmem:[%s0 + $0x70] sm:$0xff]
  %v38 = vld [vmem:[%s0 + $0x78] sm:$0xff]
  %v39 = vld [vmem:[%s0 + $0x80] sm:$0xff]
  %v40 = vld [vmem:[%s0 + $0x88] sm:$0xff]
  %v41 = vld [vmem:[%s0 + $0x90] sm:$0xff]
  %v42 = vld [vmem:[%s0 + $0x98] sm:$0xff]
  %v43 = vld [vmem:[%s0 + $0xa0] sm:$0xff]
  %v44 = vld [vmem:[%s0 + $0xa8] sm:$0xff]
  %v45 = vld [vmem:[%s0 + $0xb0] sm:$0xff]
  %v46 = vld [vmem:[%s0 + $0xb8] sm:$0xff]
  %v47 = vld [vmem:[%s0 + $0xc0] sm:$0xff]
  %v48 = vld [vmem:[%s0 + $0xc8] sm:$0xff]
  %v49 = vld [vmem:[%s0 + $0xd0] sm:$0xff]
  %v50 = vld [vmem:[%s0 + $0xd8] sm:$0xff]
  %v51 = vld [vmem:[%s0 + $0xe0] sm:$0xff]
  %v52 = vld [vmem:[%s0 + $0xe8] sm:$0xff]
  %v53 = vld [vmem:[%s0 + $0xf0] sm:$0xff]
  %v54 = vld [vmem:[%s0 + $0xf8] sm:$0xff]
  %v55 = vld [vmem:[%s3] sm:$0xff]
  %v56 = vld [vmem:[%s3 + $0x8] sm:$0xff]
  %v57 = vld [vmem:[%s3 + $0x10] sm:$0xff]
  %v58 = vld [vmem:[%s3 + $0x18] sm:$0xff]
  %v59 = vld [vmem:[%s3 + $0x20] sm:$0xff]
  %v60 = vld [vmem:[%s3 + $0x28] sm:$0xff]
  %v61 = vld [vmem:[%s3 + $0x30] sm:$0xff]
  %v62 = vld [vmem:[%s3 + $0x38] sm:$0xff]
  %v63 = vld [vmem:[%s3 + $0x40] sm:$0xff]
  %v64 = vld [vmem:[%s3 + $0x48] sm:$0xff]
  %v65 = vld [vmem:[%s3 + $0x50] sm:$0xff]
  %v66 = vld [vmem:[%s3 + $0x58] sm:$0xff]
  %v67 = vld [vmem:[%s3 + $0x60] sm:$0xff]
  %v68 = vld [vmem:[%s3 + $0x68] sm:$0xff]
  %v69 = vld [vmem:[%s3 + $0x70] sm:$0xff]
  %v70 = vld [vmem:[%s3 + $0x78] sm:$0xff]
  %v71 = vld [vmem:[%s3 + $0x80] sm:$0xff]
  %v72 = vld [vmem:[%s3 + $0x88] sm:$0xff]
  %v73 = vld [vmem:[%s3 + $0x90] sm:$0xff]
  %v74 = vld [vmem:[%s3 + $0x98] sm:$0xff]
  %v75 = vld [vmem:[%s3 + $0xa0] sm:$0xff]
  %v76 = vld [vmem:[%s3 + $0xa8] sm:$0xff]
  %v77 = vld [vmem:[%s3 + $0xb0] sm:$0xff]
  %v78 = vld [vmem:[%s3 + $0xb8] sm:$0xff]
  %v79 = vld [vmem:[%s3 + $0xc0] sm:$0xff]
  %v80 = vld [vmem:[%s3 + $0xc8] sm:$0xff]
  %v81 = vld [vmem:[%s3 + $0xd0] sm:$0xff]
  %v82 = vld [vmem:[%s3 + $0xd8] sm:$0xff]
  %v83 = vld [vmem:[%s3 + $0xe0] sm:$0xff]
  %v84 = vld [vmem:[%s3 + $0xe8] sm:$0xff]
  %v85 = vld [vmem:[%s3 + $0xf0] sm:$0xff]
  %v86 = vld [vmem:[%s3 + $0xf8] sm:$0xff]
  %v87 = vld [vmem:[%s3 + $0x100] sm:$0xff]
  %v88 = vld [vmem:[%s3 + $0x108] sm:$0xff]
  %v89 = vld [vmem:[%s3 + $0x110] sm:$0xff]
  %v90 = vld [vmem:[%s3 + $0x118] sm:$0xff]
  %v91 = vld [vmem:[%s3 + $0x120] sm:$0xff]
  %v92 = vld [vmem:[%s3 + $0x128] sm:$0xff]
  %v93 = vld [vmem:[%s3 + $0x130] sm:$0xff]
  %v94 = vld [vmem:[%s3 + $0x138] sm:$0xff]
  %v95 = vld [vmem:[%s3 + $0x140] sm:$0xff]
  %v96 = vld [vmem:[%s3 + $0x148] sm:$0xff]
  %v97 = vld [vmem:[%s3 + $0x150] sm:$0xff]
  %v98 = vld [vmem:[%s3 + $0x158] sm:$0xff]
  %v99 = vld [vmem:[%s3 + $0x160] sm:$0xff]
  %v100 = vld [vmem:[%s3 + $0x168] sm:$0xff]
  %v101 = vld [vmem:[%s3 + $0x170] sm:$0xff]
  %v102 = vld [vmem:[%s3 + $0x178] sm:$0xff]
  %v103 = vld [vmem:[%s3 + $0x180] sm:$0xff]
  %v104 = vld [vmem:[%s3 + $0x188] sm:$0xff]
  %v105 = vld [vmem:[%s3 + $0x190] sm:$0xff]
  %v106 = vld [vmem:[%s3 + $0x198] sm:$0xff]
  %v107 = vld [vmem:[%s3 + $0x1a0] sm:$0xff]
  %v108 = vld [vmem:[%s3 + $0x1a8] sm:$0xff]
  %v109 = vld [vmem:[%s3 + $0x1b0] sm:$0xff]
  %v110 = vld [vmem:[%s3 + $0x1b8] sm:$0xff]
  %v111 = vld [vmem:[%s3 + $0x1c0] sm:$0xff]
  %v112 = vld [vmem:[%s3 + $0x1c8] sm:$0xff]
  %v113 = vld [vmem:[%s3 + $0x1d0] sm:$0xff]
  %v114 = vld [vmem:[%s3 + $0x1d8] sm:$0xff]
  %v115 = vld [vmem:[%s3 + $0x1e0] sm:$0xff]
  %v116 = vld [vmem:[%s3 + $0x1e8] sm:$0xff]
  %v117 = vld [vmem:[%s3 + $0x1f0] sm:$0xff]
  %v118 = vld [vmem:[%s3 + $0x1f8] sm:$0xff]
  %v119 = vld [vmem:[%s4] sm:$0x1]
  %v121 = vlaneseq
  %v122 = vshrl.u32 %v121, 7
  %v123 = vsub.s32 0, %v122
  %v124 = vrot.slane %v119, %v123
  %126 = vmatprep.subr.mxu0 0.0
  %127 = vmatpush1.msra.mxu0 %v55
  %128 = vmatprep.subr.mxu0 0.0
  %129 = vmatpush1.msra.mxu0 %v56
  %130 = vmatprep.subr.mxu0 0.0
  %131 = vmatpush1.msra.mxu0 %v57
  %132 = vmatprep.subr.mxu0 0.0
  %133 = vmatpush1.msra.mxu0 %v58
  %134 = vmatprep.subr.mxu0 0.0
  %135 = vmatpush1.msra.mxu0 %v59
  %136 = vmatprep.subr.mxu0 0.0
  %137 = vmatpush1.msra.mxu0 %v60
  %138 = vmatprep.subr.mxu0 0.0
  %139 = vmatpush1.msra.mxu0 %v61
  %140 = vmatprep.subr.mxu0 0.0
  %141 = vmatpush1.msra.mxu0 %v62
  %142 = vmatprep.subr.mxu0 0.0
  %143 = vmatpush1.msra.mxu0 %v63
  %144 = vmatprep.subr.mxu0 0.0
  %145 = vmatpush1.msra.mxu0 %v64
  %146 = vmatprep.subr.mxu0 0.0
  %147 = vmatpush1.msra.mxu0 %v65
  %148 = vmatprep.subr.mxu0 0.0
  %149 = vmatpush1.msra.mxu0 %v66
  %150 = vmatprep.subr.mxu0 0.0
  %151 = vmatpush1.msra.mxu0 %v67
  %152 = vmatprep.subr.mxu0 0.0
  %153 = vmatpush1.msra.mxu0 %v68
  %154 = vmatprep.subr.mxu0 0.0
  %155 = vmatpush1.msra.mxu0 %v69
  %156 = vmatprep.subr.mxu0 0.0
  %157 = vmatpush1.msra.mxu0 %v70
  %158 = vmatprep.subr.mxu0 0.0
  %159 = vmatpush1.msra.mxu0 %v71
  %160 = vmatprep.subr.mxu0 0.0
  %161 = vmatpush1.msra.mxu0 %v72
  %162 = vmatprep.subr.mxu0 0.0
  %163 = vmatpush1.msra.mxu0 %v73
  %164 = vmatprep.subr.mxu0 0.0
  %165 = vmatpush1.msra.mxu0 %v74
  %166 = vmatprep.subr.mxu0 0.0
  %167 = vmatpush1.msra.mxu0 %v75
  %168 = vmatprep.subr.mxu0 0.0
  %169 = vmatpush1.msra.mxu0 %v76
  %170 = vmatprep.subr.mxu0 0.0
  %171 = vmatpush1.msra.mxu0 %v77
  %172 = vmatprep.subr.mxu0 0.0
  %173 = vmatpush1.msra.mxu0 %v78
  %174 = vmatprep.subr.mxu0 0.0
  %175 = vmatpush1.msra.mxu0 %v79
  %176 = vmatprep.subr.mxu0 0.0
  %177 = vmatpush1.msra.mxu0 %v80
  %178 = vmatprep.subr.mxu0 0.0
  %179 = vmatpush1.msra.mxu0 %v81
  %180 = vmatprep.subr.mxu0 0.0
  %181 = vmatpush1.msra.mxu0 %v82
  %182 = vmatprep.subr.mxu0 0.0
  %183 = vmatpush1.msra.mxu0 %v83
  %184 = vmatprep.subr.mxu0 0.0
  %185 = vmatpush1.msra.mxu0 %v84
  %186 = vmatprep.subr.mxu0 0.0
  %187 = vmatpush1.msra.mxu0 %v85
  %188 = vmatprep.subr.mxu0 0.0
  %189 = vmatpush1.msra.mxu0 %v86
  %190 = vmatprep.mubr.f32.mxu0 %v24
  %191 = vmatmul.mubr.f32.gmra.mrb[0].mxu0 %v23
  %v192 = vpop.f32.mrb[0].mxu0
  %v193 = vadd.f32 %v124, %v192
  %v194 = vpop.f32.mrb[0].mxu0
  %195 = vmatprep.mubr.f32.mxu0 %v28
  %196 = vmatmul.mubr.f32.gmra.mrb[0].mxu0 %v27
  %v197 = vpop.f32.mrb[0].mxu0
  %v198 = vadd.f32 %v124, %v197
  %v199 = vpop.f32.mrb[0].mxu0
  %200 = vmatprep.mubr.f32.mxu0 %v32
  %201 = vmatmul.mubr.f32.gmra.mrb[0].mxu0 %v31
  %v202 = vpop.f32.mrb[0].mxu0
  %v203 = vadd.f32 %v124, %v202
  %v204 = vpop.f32.mrb[0].mxu0
  %205 = vmatprep.mubr.f32.mxu0 %v36
  %206 = vmatmul.mubr.f32.gmra.mrb[0].mxu0 %v35
  %v207 = vpop.f32.mrb[0].mxu0
  %v208 = vadd.f32 %v124, %v207
  %v209 = vpop.f32.mrb[0].mxu0
  %210 = vmatprep.mubr.f32.mxu0 %v40
  %211 = vmatmul.mubr.f32.gmra.mrb[0].mxu0 %v39
  %v212 = vpop.f32.mrb[0].mxu0
  %v213 = vadd.f32 %v124, %v212
  %v214 = vpop.f32.mrb[0].mxu0
  %215 = vmatprep.mubr.f32.mxu0 %v44
  %216 = vmatmul.mubr.f32.gmra.mrb[0].mxu0 %v43
  %v217 = vpop.f32.mrb[0].mxu0
  %v218 = vadd.f32 %v124, %v217
  %v219 = vpop.f32.mrb[0].mxu0
  %220 = vmatprep.mubr.f32.mxu0 %v48
  %221 = vmatmul.mubr.f32.gmra.mrb[0].mxu0 %v47
  %v222 = vpop.f32.mrb[0].mxu0
  %v223 = vadd.f32 %v124, %v222
  %v224 = vpop.f32.mrb[0].mxu0
  %225 = vmatprep.mubr.f32.mxu0 %v52
  %226 = vmatmul.mubr.f32.gmra.mrb[0].mxu0 %v51
  %v227 = vpop.f32.mrb[0].mxu0
  %v228 = vadd.f32 %v124, %v227
  %v229 = vpop.f32.mrb[0].mxu0
  %230 = vdwg.mxu0
  %231 = vmatprep.subr.mxu0 0.0
  %232 = vmatpush1.msra.mxu0 %v87
  %233 = vmatprep.subr.mxu0 0.0
  %234 = vmatpush1.msra.mxu0 %v88
  %235 = vmatprep.subr.mxu0 0.0
  %236 = vmatpush1.msra.mxu0 %v89
  %237 = vmatprep.subr.mxu0 0.0
  %238 = vmatpush1.msra.mxu0 %v90
  %239 = vmatprep.subr.mxu0 0.0
  %240 = vmatpush1.msra.mxu0 %v91
  %241 = vmatprep.subr.mxu0 0.0
  %242 = vmatpush1.msra.mxu0 %v92
  %243 = vmatprep.subr.mxu0 0.0
  %244 = vmatpush1.msra.mxu0 %v93
  %245 = vmatprep.subr.mxu0 0.0
  %246 = vmatpush1.msra.mxu0 %v94
  %247 = vmatprep.subr.mxu0 0.0
  %248 = vmatpush1.msra.mxu0 %v95
  %249 = vmatprep.subr.mxu0 0.0
  %250 = vmatpush1.msra.mxu0 %v96
  %251 = vmatprep.subr.mxu0 0.0
  %252 = vmatpush1.msra.mxu0 %v97
  %253 = vmatprep.subr.mxu0 0.0
  %254 = vmatpush1.msra.mxu0 %v98
  %255 = vmatprep.subr.mxu0 0.0
  %256 = vmatpush1.msra.mxu0 %v99
  %257 = vmatprep.subr.mxu0 0.0
  %258 = vmatpush1.msra.mxu0 %v100
  %259 = vmatprep.subr.mxu0 0.0
  %260 = vmatpush1.msra.mxu0 %v101
  %261 = vmatprep.subr.mxu0 0.0
  %262 = vmatpush1.msra.mxu0 %v102
  %263 = vmatprep.subr.mxu0 0.0
  %264 = vmatpush1.msra.mxu0 %v103
  %265 = vmatprep.subr.mxu0 0.0
  %266 = vmatpush1.msra.mxu0 %v104
  %267 = vmatprep.subr.mxu0 0.0
  %268 = vmatpush1.msra.mxu0 %v105
  %269 = vmatprep.subr.mxu0 0.0
  %270 = vmatpush1.msra.mxu0 %v106
  %271 = vmatprep.subr.mxu0 0.0
  %272 = vmatpush1.msra.mxu0 %v107
  %273 = vmatprep.subr.mxu0 0.0
  %274 = vmatpush1.msra.mxu0 %v108
  %275 = vmatprep.subr.mxu0 0.0
  %276 = vmatpush1.msra.mxu0 %v109
  %277 = vmatprep.subr.mxu0 0.0
  %278 = vmatpush1.msra.mxu0 %v110
  %279 = vmatprep.subr.mxu0 0.0
  %280 = vmatpush1.msra.mxu0 %v111
  %281 = vmatprep.subr.mxu0 0.0
  %282 = vmatpush1.msra.mxu0 %v112
  %283 = vmatprep.subr.mxu0 0.0
  %284 = vmatpush1.msra.mxu0 %v113
  %285 = vmatprep.subr.mxu0 0.0
  %286 = vmatpush1.msra.mxu0 %v114
  %287 = vmatprep.subr.mxu0 0.0
  %288 = vmatpush1.msra.mxu0 %v115
  %289 = vmatprep.subr.mxu0 0.0
  %290 = vmatpush1.msra.mxu0 %v116
  %291 = vmatprep.subr.mxu0 0.0
  %292 = vmatpush1.msra.mxu0 %v117
  %293 = vmatprep.subr.mxu0 0.0
  %294 = vmatpush1.msra.mxu0 %v118
  %295 = vmatprep.mubr.f32.mxu0 %v26
  %296 = vmatmul.mubr.f32.gmra.mrb[0].mxu0 %v25
  %v297 = vpop.f32.mrb[0].mxu0
  %v298 = vadd.f32 %v193, %v297
  %v299 = vpop.f32.mrb[0].mxu0
  %300 = vmatprep.mubr.f32.mxu0 %v30
  %301 = vmatmul.mubr.f32.gmra.mrb[0].mxu0 %v29
  %v302 = vpop.f32.mrb[0].mxu0
  %v303 = vadd.f32 %v198, %v302
  %v304 = vpop.f32.mrb[0].mxu0
  %305 = vmatprep.mubr.f32.mxu0 %v34
  %306 = vmatmul.mubr.f32.gmra.mrb[0].mxu0 %v33
  %v307 = vpop.f32.mrb[0].mxu0
  %v308 = vadd.f32 %v203, %v307
  %v309 = vpop.f32.mrb[0].mxu0
  %310 = vmatprep.mubr.f32.mxu0 %v38
  %311 = vmatmul.mubr.f32.gmra.mrb[0].mxu0 %v37
  %v312 = vpop.f32.mrb[0].mxu0
  %v313 = vadd.f32 %v208, %v312
  %v314 = vpop.f32.mrb[0].mxu0
  %315 = vmatprep.mubr.f32.mxu0 %v42
  %316 = vmatmul.mubr.f32.gmra.mrb[0].mxu0 %v41
  %v317 = vpop.f32.mrb[0].mxu0
  %v318 = vadd.f32 %v213, %v317
  %v319 = vpop.f32.mrb[0].mxu0
  %320 = vmatprep.mubr.f32.mxu0 %v46
  %321 = vmatmul.mubr.f32.gmra.mrb[0].mxu0 %v45
  %v322 = vpop.f32.mrb[0].mxu0
  %v323 = vadd.f32 %v218, %v322
  %v324 = vpop.f32.mrb[0].mxu0
  %325 = vmatprep.mubr.f32.mxu0 %v50
  %326 = vmatmul.mubr.f32.gmra.mrb[0].mxu0 %v49
  %v327 = vpop.f32.mrb[0].mxu0
  %v328 = vadd.f32 %v223, %v327
  %v329 = vpop.f32.mrb[0].mxu0
  %330 = vmatprep.mubr.f32.mxu0 %v54
  %331 = vmatmul.mubr.f32.gmra.mrb[0].mxu0 %v53
  %v332 = vpop.f32.mrb[0].mxu0
  %v333 = vadd.f32 %v228, %v332
  %v334 = vpop.f32.mrb[0].mxu0
  %335 = vdwg.mxu0
  %v336 = vtanh.pop %v298
  %v337 = vtanh.pop %v303
  %v338 = vtanh.pop %v308
  %v339 = vtanh.pop %v313
  %v340 = vtanh.pop %v318
  %v341 = vtanh.pop %v323
  %v342 = vtanh.pop %v328
  %v343 = vtanh.pop %v333
  %v344 = vld [vmem:[%s5] sm:$0x1]
  %v346 = vlaneseq
  %v347 = vshrl.u32 %v346, 7
  %v348 = vsub.s32 0, %v347
  %v349 = vrot.slane %v344, %v348
  %v351 = vmul.f32 %v336, %v349
  %v352 = vmul.f32 %v337, %v349
  %v353 = vmul.f32 %v338, %v349
  %v354 = vmul.f32 %v339, %v349
  %v355 = vmul.f32 %v340, %v349
  %v356 = vmul.f32 %v341, %v349
  %v357 = vmul.f32 %v342, %v349
  %v358 = vmul.f32 %v343, %v349
  %359 = vadd.xlane.f32.xlu0 %v351
  %v360 = vpop.xlane.xlu0 %359
  %361 = vadd.xlane.f32.xlu0 %v352
  %v362 = vpop.xlane.xlu0 %361
  %363 = vadd.xlane.f32.xlu0 %v353
  %v364 = vpop.xlane.xlu0 %363
  %365 = vadd.xlane.f32.xlu0 %v354
  %v366 = vpop.xlane.xlu0 %365
  %367 = vadd.xlane.f32.xlu0 %v355
  %v368 = vpop.xlane.xlu0 %367
  %369 = vadd.xlane.f32.xlu0 %v356
  %v370 = vpop.xlane.xlu0 %369
  %371 = vadd.xlane.f32.xlu0 %v357
  %v372 = vpop.xlane.xlu0 %371
  %373 = vadd.xlane.f32.xlu0 %v358
  %v374 = vpop.xlane.xlu0 %373
  %v375 = vld [vmem:[%s1] sm:$0xff]
  %vm376 = vcmp.gt.f32.partialorder %v375, 0.0
  %v385 = vlaneseq
  %v386 = vand.u32 %v385, 127
  %v387 = vlaneseq
  %v388 = vshrl.u32 %v387, 7
  %v389 = vsub.s32 %v386, %v388
  %v390 = vrot.slane %v360, %v389
  %v391 = vlaneseq
  %v392 = vshrl.u32 %v391, 7
  %v393 = vsub.s32 %v386, %v392
  %v394 = vrot.slane %v362, %v393
  %v395 = vlaneseq
  %v396 = vshrl.u32 %v395, 7
  %v397 = vsub.s32 %v386, %v396
  %v398 = vrot.slane %v364, %v397
  %v399 = vlaneseq
  %v400 = vshrl.u32 %v399, 7
  %v401 = vsub.s32 %v386, %v400
  %v402 = vrot.slane %v366, %v401
  %v403 = vlaneseq
  %v404 = vshrl.u32 %v403, 7
  %v405 = vsub.s32 %v386, %v404
  %v406 = vrot.slane %v368, %v405
  %v407 = vlaneseq
  %v408 = vshrl.u32 %v407, 7
  %v409 = vsub.s32 %v386, %v408
  %v410 = vrot.slane %v370, %v409
  %v411 = vlaneseq
  %v412 = vshrl.u32 %v411, 7
  %v413 = vsub.s32 %v386, %v412
  %v414 = vrot.slane %v372, %v413
  %v415 = vlaneseq
  %v416 = vshrl.u32 %v415, 7
  %v417 = vsub.s32 %v386, %v416
  %v418 = vrot.slane %v374, %v417
  %vm419 = vcmask 1041409
  %v420 = vsel %vm419, %v394, %v390
  %vm421 = vcmask 1042434
  %v422 = vsel %vm421, %v398, %v420
  %vm423 = vcmask 1043459
  %v424 = vsel %vm423, %v402, %v422
  %vm425 = vcmask 1044484
  %v426 = vsel %vm425, %v406, %v424
  %vm427 = vcmask 1045509
  %v428 = vsel %vm427, %v410, %v426
  %vm429 = vcmask 1046534
  %v430 = vsel %vm429, %v414, %v428
  %vm431 = vcmask 1047559
  %v432 = vsel %vm431, %v418, %v430
  %v434 = vsel %vm376, %v432, -1e+30
  %vm435 = vcmask 64512
  %v436 = vsel %vm435, %v434, -inf
  %437 = vmax.xlane.f32.xlu0 %v436
  %v438 = vpop.xlane.xlu0 %437
  %v439 = vsub.f32 %v434, %v438
  %v440 = vmul.f32 %v439, 1.442695
  %v441 = vpow.pop %v440
  %v442 = vsel %vm435, %v441, 0.0
  %443 = vadd.xlane.f32.xlu0 %v442
  %v444 = vpop.xlane.xlu0 %443
  %v445 = vrcp.pop %v444
  %v446 = vmul.f32 %v441, %v445
  %v447 = vlaneseq
  %v448 = vshrl.u32 %v447, 7
  %v449 = vsub.s32 0, %v448
  %v450 = vrot.slane %v446, %v449
  %452 = vbcast.lane.b32.xlu0 %v450, 256
  %v453 = vpop.permute.xlu0 %452
  %v454 = vlaneseq
  %v455 = vshrl.u32 %v454, 7
  %v456 = vsub.s32 1, %v455
  %v457 = vrot.slane %v446, %v456
  %459 = vbcast.lane.b32.xlu0 %v457, 256
  %v460 = vpop.permute.xlu0 %459
  %v461 = vlaneseq
  %v462 = vshrl.u32 %v461, 7
  %v463 = vsub.s32 2, %v462
  %v464 = vrot.slane %v446, %v463
  %466 = vbcast.lane.b32.xlu0 %v464, 256
  %v467 = vpop.permute.xlu0 %466
  %v468 = vlaneseq
  %v469 = vshrl.u32 %v468, 7
  %v470 = vsub.s32 3, %v469
  %v471 = vrot.slane %v446, %v470
  %473 = vbcast.lane.b32.xlu0 %v471, 256
  %v474 = vpop.permute.xlu0 %473
  %v475 = vlaneseq
  %v476 = vshrl.u32 %v475, 7
  %v477 = vsub.s32 4, %v476
  %v478 = vrot.slane %v446, %v477
  %480 = vbcast.lane.b32.xlu0 %v478, 256
  %v481 = vpop.permute.xlu0 %480
  %v482 = vlaneseq
  %v483 = vshrl.u32 %v482, 7
  %v484 = vsub.s32 5, %v483
  %v485 = vrot.slane %v446, %v484
  %487 = vbcast.lane.b32.xlu0 %v485, 256
  %v488 = vpop.permute.xlu0 %487
  %v489 = vlaneseq
  %v490 = vshrl.u32 %v489, 7
  %v491 = vsub.s32 6, %v490
  %v492 = vrot.slane %v446, %v491
  %494 = vbcast.lane.b32.xlu0 %v492, 256
  %v495 = vpop.permute.xlu0 %494
  %v496 = vlaneseq
  %v497 = vshrl.u32 %v496, 7
  %v498 = vsub.s32 7, %v497
  %v499 = vrot.slane %v446, %v498
  %501 = vbcast.lane.b32.xlu0 %v499, 256
  %v502 = vpop.permute.xlu0 %501
  %v503 = vmul.f32 %v453, %v23
  %v504 = vmul.f32 %v453, %v24
  %v505 = vmul.f32 %v453, %v25
  %v506 = vmul.f32 %v453, %v26
  %v507 = vmul.f32 %v460, %v27
  %v508 = vmul.f32 %v460, %v28
  %v509 = vmul.f32 %v460, %v29
  %v510 = vmul.f32 %v460, %v30
  %v511 = vmul.f32 %v467, %v31
  %v512 = vmul.f32 %v467, %v32
  %v513 = vmul.f32 %v467, %v33
  %v514 = vmul.f32 %v467, %v34
  %v515 = vmul.f32 %v474, %v35
  %v516 = vmul.f32 %v474, %v36
  %v517 = vmul.f32 %v474, %v37
  %v518 = vmul.f32 %v474, %v38
  %v519 = vmul.f32 %v481, %v39
  %v520 = vmul.f32 %v481, %v40
  %v521 = vmul.f32 %v481, %v41
  %v522 = vmul.f32 %v481, %v42
  %v523 = vmul.f32 %v488, %v43
  %v524 = vmul.f32 %v488, %v44
  %v525 = vmul.f32 %v488, %v45
  %v526 = vmul.f32 %v488, %v46
  %v527 = vmul.f32 %v495, %v47
  %v528 = vmul.f32 %v495, %v48
  %v529 = vmul.f32 %v495, %v49
  %v530 = vmul.f32 %v495, %v50
  %v531 = vmul.f32 %v502, %v51
  %v532 = vmul.f32 %v502, %v52
  %v533 = vmul.f32 %v502, %v53
  %v534 = vmul.f32 %v502, %v54
  %v535 = vrot.slane %v503, 4
  %v536 = vadd.f32 %v503, %v535
  %v537 = vrot.slane %v536, 2
  %v538 = vadd.f32 %v536, %v537
  %v539 = vrot.slane %v538, 1
  %v540 = vadd.f32 %v538, %v539
  %v541 = vrot.slane %v504, 4
  %v542 = vadd.f32 %v504, %v541
  %v543 = vrot.slane %v542, 2
  %v544 = vadd.f32 %v542, %v543
  %v545 = vrot.slane %v544, 1
  %v546 = vadd.f32 %v544, %v545
  %v547 = vrot.slane %v505, 4
  %v548 = vadd.f32 %v505, %v547
  %v549 = vrot.slane %v548, 2
  %v550 = vadd.f32 %v548, %v549
  %v551 = vrot.slane %v550, 1
  %v552 = vadd.f32 %v550, %v551
  %v553 = vrot.slane %v506, 4
  %v554 = vadd.f32 %v506, %v553
  %v555 = vrot.slane %v554, 2
  %v556 = vadd.f32 %v554, %v555
  %v557 = vrot.slane %v556, 1
  %v558 = vadd.f32 %v556, %v557
  %v559 = vrot.slane %v507, 4
  %v560 = vadd.f32 %v507, %v559
  %v561 = vrot.slane %v560, 2
  %v562 = vadd.f32 %v560, %v561
  %v563 = vrot.slane %v562, 1
  %v564 = vadd.f32 %v562, %v563
  %v565 = vrot.slane %v508, 4
  %v566 = vadd.f32 %v508, %v565
  %v567 = vrot.slane %v566, 2
  %v568 = vadd.f32 %v566, %v567
  %v569 = vrot.slane %v568, 1
  %v570 = vadd.f32 %v568, %v569
  %v571 = vrot.slane %v509, 4
  %v572 = vadd.f32 %v509, %v571
  %v573 = vrot.slane %v572, 2
  %v574 = vadd.f32 %v572, %v573
  %v575 = vrot.slane %v574, 1
  %v576 = vadd.f32 %v574, %v575
  %v577 = vrot.slane %v510, 4
  %v578 = vadd.f32 %v510, %v577
  %v579 = vrot.slane %v578, 2
  %v580 = vadd.f32 %v578, %v579
  %v581 = vrot.slane %v580, 1
  %v582 = vadd.f32 %v580, %v581
  %v583 = vrot.slane %v511, 4
  %v584 = vadd.f32 %v511, %v583
  %v585 = vrot.slane %v584, 2
  %v586 = vadd.f32 %v584, %v585
  %v587 = vrot.slane %v586, 1
  %v588 = vadd.f32 %v586, %v587
  %v589 = vrot.slane %v512, 4
  %v590 = vadd.f32 %v512, %v589
  %v591 = vrot.slane %v590, 2
  %v592 = vadd.f32 %v590, %v591
  %v593 = vrot.slane %v592, 1
  %v594 = vadd.f32 %v592, %v593
  %v595 = vrot.slane %v513, 4
  %v596 = vadd.f32 %v513, %v595
  %v597 = vrot.slane %v596, 2
  %v598 = vadd.f32 %v596, %v597
  %v599 = vrot.slane %v598, 1
  %v600 = vadd.f32 %v598, %v599
  %v601 = vrot.slane %v514, 4
  %v602 = vadd.f32 %v514, %v601
  %v603 = vrot.slane %v602, 2
  %v604 = vadd.f32 %v602, %v603
  %v605 = vrot.slane %v604, 1
  %v606 = vadd.f32 %v604, %v605
  %v607 = vrot.slane %v515, 4
  %v608 = vadd.f32 %v515, %v607
  %v609 = vrot.slane %v608, 2
  %v610 = vadd.f32 %v608, %v609
  %v611 = vrot.slane %v610, 1
  %v612 = vadd.f32 %v610, %v611
  %v613 = vrot.slane %v516, 4
  %v614 = vadd.f32 %v516, %v613
  %v615 = vrot.slane %v614, 2
  %v616 = vadd.f32 %v614, %v615
  %v617 = vrot.slane %v616, 1
  %v618 = vadd.f32 %v616, %v617
  %v619 = vrot.slane %v517, 4
  %v620 = vadd.f32 %v517, %v619
  %v621 = vrot.slane %v620, 2
  %v622 = vadd.f32 %v620, %v621
  %v623 = vrot.slane %v622, 1
  %v624 = vadd.f32 %v622, %v623
  %v625 = vrot.slane %v518, 4
  %v626 = vadd.f32 %v518, %v625
  %v627 = vrot.slane %v626, 2
  %v628 = vadd.f32 %v626, %v627
  %v629 = vrot.slane %v628, 1
  %v630 = vadd.f32 %v628, %v629
  %v631 = vrot.slane %v519, 4
  %v632 = vadd.f32 %v519, %v631
  %v633 = vrot.slane %v632, 2
  %v634 = vadd.f32 %v632, %v633
  %v635 = vrot.slane %v634, 1
  %v636 = vadd.f32 %v634, %v635
  %v637 = vrot.slane %v520, 4
  %v638 = vadd.f32 %v520, %v637
  %v639 = vrot.slane %v638, 2
  %v640 = vadd.f32 %v638, %v639
  %v641 = vrot.slane %v640, 1
  %v642 = vadd.f32 %v640, %v641
  %v643 = vrot.slane %v521, 4
  %v644 = vadd.f32 %v521, %v643
  %v645 = vrot.slane %v644, 2
  %v646 = vadd.f32 %v644, %v645
  %v647 = vrot.slane %v646, 1
  %v648 = vadd.f32 %v646, %v647
  %v649 = vrot.slane %v522, 4
  %v650 = vadd.f32 %v522, %v649
  %v651 = vrot.slane %v650, 2
  %v652 = vadd.f32 %v650, %v651
  %v653 = vrot.slane %v652, 1
  %v654 = vadd.f32 %v652, %v653
  %v655 = vrot.slane %v523, 4
  %v656 = vadd.f32 %v523, %v655
  %v657 = vrot.slane %v656, 2
  %v658 = vadd.f32 %v656, %v657
  %v659 = vrot.slane %v658, 1
  %v660 = vadd.f32 %v658, %v659
  %v661 = vrot.slane %v524, 4
  %v662 = vadd.f32 %v524, %v661
  %v663 = vrot.slane %v662, 2
  %v664 = vadd.f32 %v662, %v663
  %v665 = vrot.slane %v664, 1
  %v666 = vadd.f32 %v664, %v665
  %v667 = vrot.slane %v525, 4
  %v668 = vadd.f32 %v525, %v667
  %v669 = vrot.slane %v668, 2
  %v670 = vadd.f32 %v668, %v669
  %v671 = vrot.slane %v670, 1
  %v672 = vadd.f32 %v670, %v671
  %v673 = vrot.slane %v526, 4
  %v674 = vadd.f32 %v526, %v673
  %v675 = vrot.slane %v674, 2
  %v676 = vadd.f32 %v674, %v675
  %v677 = vrot.slane %v676, 1
  %v678 = vadd.f32 %v676, %v677
  %v679 = vrot.slane %v527, 4
  %v680 = vadd.f32 %v527, %v679
  %v681 = vrot.slane %v680, 2
  %v682 = vadd.f32 %v680, %v681
  %v683 = vrot.slane %v682, 1
  %v684 = vadd.f32 %v682, %v683
  %v685 = vrot.slane %v528, 4
  %v686 = vadd.f32 %v528, %v685
  %v687 = vrot.slane %v686, 2
  %v688 = vadd.f32 %v686, %v687
  %v689 = vrot.slane %v688, 1
  %v690 = vadd.f32 %v688, %v689
  %v691 = vrot.slane %v529, 4
  %v692 = vadd.f32 %v529, %v691
  %v693 = vrot.slane %v692, 2
  %v694 = vadd.f32 %v692, %v693
  %v695 = vrot.slane %v694, 1
  %v696 = vadd.f32 %v694, %v695
  %v697 = vrot.slane %v530, 4
  %v698 = vadd.f32 %v530, %v697
  %v699 = vrot.slane %v698, 2
  %v700 = vadd.f32 %v698, %v699
  %v701 = vrot.slane %v700, 1
  %v702 = vadd.f32 %v700, %v701
  %v703 = vrot.slane %v531, 4
  %v704 = vadd.f32 %v531, %v703
  %v705 = vrot.slane %v704, 2
  %v706 = vadd.f32 %v704, %v705
  %v707 = vrot.slane %v706, 1
  %v708 = vadd.f32 %v706, %v707
  %v709 = vrot.slane %v532, 4
  %v710 = vadd.f32 %v532, %v709
  %v711 = vrot.slane %v710, 2
  %v712 = vadd.f32 %v710, %v711
  %v713 = vrot.slane %v712, 1
  %v714 = vadd.f32 %v712, %v713
  %v715 = vrot.slane %v533, 4
  %v716 = vadd.f32 %v533, %v715
  %v717 = vrot.slane %v716, 2
  %v718 = vadd.f32 %v716, %v717
  %v719 = vrot.slane %v718, 1
  %v720 = vadd.f32 %v718, %v719
  %v721 = vrot.slane %v534, 4
  %v722 = vadd.f32 %v534, %v721
  %v723 = vrot.slane %v722, 2
  %v724 = vadd.f32 %v722, %v723
  %v725 = vrot.slane %v724, 1
  %v726 = vadd.f32 %v724, %v725
  %v727 = vld [vmem:[%s2] sm:$0x1f]
  %v728 = vld [vmem:[%s2 + $0x8] sm:$0x1f]
  %v729 = vld [vmem:[%s2 + $0x10] sm:$0x1f]
  %v730 = vld [vmem:[%s2 + $0x18] sm:$0x1f]
  %v731 = vld [vmem:[%s2 + $0x20] sm:$0x1f]
  %v732 = vld [vmem:[%s2 + $0x28] sm:$0x1f]
  %v733 = vld [vmem:[%s2 + $0x30] sm:$0x1f]
  %v734 = vld [vmem:[%s2 + $0x38] sm:$0x1f]
  %v735 = vld [vmem:[%s2 + $0x40] sm:$0x1f]
  %v736 = vld [vmem:[%s2 + $0x48] sm:$0x1f]
  %v737 = vld [vmem:[%s2 + $0x50] sm:$0x1f]
  %v738 = vld [vmem:[%s2 + $0x58] sm:$0x1f]
  %v739 = vld [vmem:[%s2 + $0x60] sm:$0x1f]
  %v740 = vld [vmem:[%s2 + $0x68] sm:$0x1f]
  %v741 = vld [vmem:[%s2 + $0x70] sm:$0x1f]
  %v742 = vld [vmem:[%s2 + $0x78] sm:$0x1f]
  %v743 = vld [vmem:[%s2 + $0x80] sm:$0x1f]
  %v744 = vld [vmem:[%s2 + $0x88] sm:$0x1f]
  %v745 = vld [vmem:[%s2 + $0x90] sm:$0x1f]
  %v746 = vld [vmem:[%s2 + $0x98] sm:$0x1f]
  %v747 = vld [vmem:[%s2 + $0xa0] sm:$0x1f]
  %v748 = vld [vmem:[%s2 + $0xa8] sm:$0x1f]
  %v749 = vld [vmem:[%s2 + $0xb0] sm:$0x1f]
  %v750 = vld [vmem:[%s2 + $0xb8] sm:$0x1f]
  %v751 = vld [vmem:[%s2 + $0xc0] sm:$0x1f]
  %v752 = vld [vmem:[%s2 + $0xc8] sm:$0x1f]
  %v753 = vld [vmem:[%s2 + $0xd0] sm:$0x1f]
  %v754 = vld [vmem:[%s2 + $0xd8] sm:$0x1f]
  %v755 = vld [vmem:[%s2 + $0xe0] sm:$0x1f]
  %v756 = vld [vmem:[%s2 + $0xe8] sm:$0x1f]
  %v757 = vld [vmem:[%s2 + $0xf0] sm:$0x1f]
  %v758 = vld [vmem:[%s2 + $0xf8] sm:$0x1f]
  %v759 = vmul.f32 %v727, %v540
  %v760 = vmul.f32 %v728, %v546
  %v761 = vmul.f32 %v729, %v552
  %v762 = vmul.f32 %v730, %v558
  %v763 = vmul.f32 %v731, %v564
  %v764 = vmul.f32 %v732, %v570
  %v765 = vmul.f32 %v733, %v576
  %v766 = vmul.f32 %v734, %v582
  %v767 = vmul.f32 %v735, %v588
  %v768 = vmul.f32 %v736, %v594
  %v769 = vmul.f32 %v737, %v600
  %v770 = vmul.f32 %v738, %v606
  %v771 = vmul.f32 %v739, %v612
  %v772 = vmul.f32 %v740, %v618
  %v773 = vmul.f32 %v741, %v624
  %v774 = vmul.f32 %v742, %v630
  %v775 = vmul.f32 %v743, %v636
  %v776 = vmul.f32 %v744, %v642
  %v777 = vmul.f32 %v745, %v648
  %v778 = vmul.f32 %v746, %v654
  %v779 = vmul.f32 %v747, %v660
  %v780 = vmul.f32 %v748, %v666
  %v781 = vmul.f32 %v749, %v672
  %v782 = vmul.f32 %v750, %v678
  %v783 = vmul.f32 %v751, %v684
  %v784 = vmul.f32 %v752, %v690
  %v785 = vmul.f32 %v753, %v696
  %v786 = vmul.f32 %v754, %v702
  %v787 = vmul.f32 %v755, %v708
  %v788 = vmul.f32 %v756, %v714
  %v789 = vmul.f32 %v757, %v720
  %v790 = vmul.f32 %v758, %v726
  %vm791 = vcmask 1044480
  %v792 = vsel %vm791, %v759, 0.0
  %v793 = vsel %vm791, %v760, 0.0
  %v794 = vadd.f32 %v792, %v793
  %v795 = vsel %vm791, %v761, 0.0
  %v796 = vadd.f32 %v794, %v795
  %v797 = vsel %vm791, %v762, 0.0
  %v798 = vadd.f32 %v796, %v797
  %799 = vadd.xlane.f32.xlu0 %v798
  %v800 = vpop.xlane.xlu0 %799
  %v801 = vsel %vm791, %v763, 0.0
  %v802 = vsel %vm791, %v764, 0.0
  %v803 = vadd.f32 %v801, %v802
  %v804 = vsel %vm791, %v765, 0.0
  %v805 = vadd.f32 %v803, %v804
  %v806 = vsel %vm791, %v766, 0.0
  %v807 = vadd.f32 %v805, %v806
  %808 = vadd.xlane.f32.xlu0 %v807
  %v809 = vpop.xlane.xlu0 %808
  %v810 = vsel %vm791, %v767, 0.0
  %v811 = vsel %vm791, %v768, 0.0
  %v812 = vadd.f32 %v810, %v811
  %v813 = vsel %vm791, %v769, 0.0
  %v814 = vadd.f32 %v812, %v813
  %v815 = vsel %vm791, %v770, 0.0
  %v816 = vadd.f32 %v814, %v815
  %817 = vadd.xlane.f32.xlu0 %v816
  %v818 = vpop.xlane.xlu0 %817
  %v819 = vsel %vm791, %v771, 0.0
  %v820 = vsel %vm791, %v772, 0.0
  %v821 = vadd.f32 %v819, %v820
  %v822 = vsel %vm791, %v773, 0.0
  %v823 = vadd.f32 %v821, %v822
  %v824 = vsel %vm791, %v774, 0.0
  %v825 = vadd.f32 %v823, %v824
  %826 = vadd.xlane.f32.xlu0 %v825
  %v827 = vpop.xlane.xlu0 %826
  %v828 = vsel %vm791, %v775, 0.0
  %v829 = vsel %vm791, %v776, 0.0
  %v830 = vadd.f32 %v828, %v829
  %v831 = vsel %vm791, %v777, 0.0
  %v832 = vadd.f32 %v830, %v831
  %v833 = vsel %vm791, %v778, 0.0
  %v834 = vadd.f32 %v832, %v833
  %835 = vadd.xlane.f32.xlu0 %v834
  %v836 = vpop.xlane.xlu0 %835
  %v837 = vsel %vm791, %v779, 0.0
  %v838 = vsel %vm791, %v780, 0.0
  %v839 = vadd.f32 %v837, %v838
  %v840 = vsel %vm791, %v781, 0.0
  %v841 = vadd.f32 %v839, %v840
  %v842 = vsel %vm791, %v782, 0.0
  %v843 = vadd.f32 %v841, %v842
  %844 = vadd.xlane.f32.xlu0 %v843
  %v845 = vpop.xlane.xlu0 %844
  %v846 = vsel %vm791, %v783, 0.0
  %v847 = vsel %vm791, %v784, 0.0
  %v848 = vadd.f32 %v846, %v847
  %v849 = vsel %vm791, %v785, 0.0
  %v850 = vadd.f32 %v848, %v849
  %v851 = vsel %vm791, %v786, 0.0
  %v852 = vadd.f32 %v850, %v851
  %853 = vadd.xlane.f32.xlu0 %v852
  %v854 = vpop.xlane.xlu0 %853
  %v855 = vsel %vm791, %v787, 0.0
  %v856 = vsel %vm791, %v788, 0.0
  %v857 = vadd.f32 %v855, %v856
  %v858 = vsel %vm791, %v789, 0.0
  %v859 = vadd.f32 %v857, %v858
  %v860 = vsel %vm791, %v790, 0.0
  %v861 = vadd.f32 %v859, %v860
  %862 = vadd.xlane.f32.xlu0 %v861
  %v863 = vpop.xlane.xlu0 %862
  %v872 = vlaneseq
  %v873 = vshrl.u32 %v872, 7
  %v874 = vsub.s32 %v386, %v873
  %v875 = vrot.slane %v800, %v874
  %v876 = vlaneseq
  %v877 = vshrl.u32 %v876, 7
  %v878 = vsub.s32 %v386, %v877
  %v879 = vrot.slane %v809, %v878
  %v880 = vlaneseq
  %v881 = vshrl.u32 %v880, 7
  %v882 = vsub.s32 %v386, %v881
  %v883 = vrot.slane %v818, %v882
  %v884 = vlaneseq
  %v885 = vshrl.u32 %v884, 7
  %v886 = vsub.s32 %v386, %v885
  %v887 = vrot.slane %v827, %v886
  %v888 = vlaneseq
  %v889 = vshrl.u32 %v888, 7
  %v890 = vsub.s32 %v386, %v889
  %v891 = vrot.slane %v836, %v890
  %v892 = vlaneseq
  %v893 = vshrl.u32 %v892, 7
  %v894 = vsub.s32 %v386, %v893
  %v895 = vrot.slane %v845, %v894
  %v896 = vlaneseq
  %v897 = vshrl.u32 %v896, 7
  %v898 = vsub.s32 %v386, %v897
  %v899 = vrot.slane %v854, %v898
  %v900 = vlaneseq
  %v901 = vshrl.u32 %v900, 7
  %v902 = vsub.s32 %v386, %v901
  %v903 = vrot.slane %v863, %v902
  %v904 = vsel %vm419, %v879, %v875
  %v905 = vsel %vm421, %v883, %v904
  %v906 = vsel %vm423, %v887, %v905
  %v907 = vsel %vm425, %v891, %v906
  %v908 = vsel %vm427, %v895, %v907
  %v909 = vsel %vm429, %v899, %v908
  %v910 = vsel %vm431, %v903, %v909
  %vm912 = vcmask 39936
  %913 = vst.msk [vmem:[%s6] sm:$0xff] %vm912, %v910
  // Predicated region
  $region26: #{naml_forward.3} parent=0 // pred_check
    _
  $region27: #{naml_forward.3} parent=0 // pred_check_branch
    %915 = sbr.rel (0) target = $region29
  $region28: #{naml_forward.3} parent=0 // pred_region
    _
  $region29: #{naml_forward.3} parent=0 // pred_fallthru
    _
  // Predicated region
  $region30: #{naml_forward.3} parent=0 // pred_check
    _
  $region31: #{naml_forward.3} parent=0 // pred_check_branch
    %917 = sbr.rel (0) target = $region33
  $region32: #{naml_forward.3} parent=0 // pred_region
    _
  $region33: #{naml_forward.3} parent=0 // pred_fallthru
    _

// kernel: naml_forward.2
$region0: #{naml_forward.2}
  #allocation0 [shape = 'u32[]', space=smem, size = 0x4, offset = 0x4, fixed_abs, tag = 'smem constant byte address 0x4 - core index']
  #allocation1 [shape = 'u32[144,128]{1,0:T(1,128)}', space=vmem, size = 0x12000, scoped, tag = 'internal scratch']
  %s0 = inlined_call_operand.vmem [shape: bf16[256,64], index: 0, kind: input, shape index: {}]
  %s1 = inlined_call_operand.vmem [shape: bf16[64,512], index: 1, kind: input, shape index: {}]
  %s2 = inlined_call_operand.vmem [shape: bf16[64,512], index: 2, kind: input, shape index: {}]
  %s3 = inlined_call_operand.vmem [shape: bf16[64,512], index: 3, kind: input, shape index: {}]
  %s4 = inlined_call_operand.vmem [shape: f32[1,512], index: 4, kind: input, shape index: {}]
  %s5 = inlined_call_operand.vmem [shape: bf16[512,128], index: 5, kind: input, shape index: {}]
  %s6 = inlined_call_operand.vmem [shape: f32[1,128], index: 6, kind: input, shape index: {}]
  %s7 = inlined_call_operand.vmem [shape: f32[1,128], index: 7, kind: input, shape index: {}]
  %s8 = inlined_call_operand.vmem [shape: f32[32,512], index: 8, kind: output, shape index: {}]
  %s9 = sld [smem:[#allocation0]]
  $region65: #{naml_forward.2} parent=0
    _
  %s11 = ssub.s32 1, %s9
  %s12 = scalar_select 0, %s11, %s9
  loop: start=0, step=1, limit=4
  $region2: #{naml_forward.2} parent=0 // loop_pre_header
    _
  $region3: #{naml_forward.2} parent=0 // loop_header
    %s14 = sphi 0, %s18
    %p15 = scmp.ge.s32.totalorder %s14, 4
    %s24 = sphi 0, %s26
    %s27 = sphi 0, %s24
    %s28 = sphi 0, %s27
    %s44 = sphi 0, %s28
    %s48 = sphi 0, %s48
    %s50 = sphi 0, %s48
    %s51 = sphi 0, %s50
    %s65 = sphi 0, %s51
    %s69 = sphi 0, %s69
    %s71 = sphi 0, %s69
    %s72 = sphi 0, %s71
    %s86 = sphi 0, %s72
    %s90 = sphi 0, %s90
    %s92 = sphi 0, %s90
    %s93 = sphi 0, %s92
    %s107 = sphi 0, %s93
    %s111 = sphi 0, %s111
    %s113 = sphi 0, %s111
    %s114 = sphi 0, %s113
    %s128 = sphi 0, %s114
    %s132 = sphi 0, %s132
    %s134 = sphi 0, %s132
    %s135 = sphi 0, %s134
    %s149 = sphi 0, %s135
    %s153 = sphi 0, %s153
    %s155 = sphi 0, %s153
    %s156 = sphi 0, %s155
    %s170 = sphi 0, %s156
    %s174 = sphi 0, %s174
    %s176 = sphi 0, %s174
    %s177 = sphi 0, %s176
    %s191 = sphi 0, %s177
    %s197 = sphi 0, %s199
    %s200 = sphi 0, %s197
    %s201 = sphi 0, %s200
    %s217 = sphi 0, %s201
  $region4: #{naml_forward.2} parent=0 // loop_header_branch
    %17 = sbr.rel (%p15) target = $region8
  $region5: #{naml_forward.2} parent=0 // loop_body
    %s19 = ssub.s32 %s14, 1
    %s20 = ssub.s32 %s14, 2
    %s21 = sadd.s32 %s14, 1
    %s22 = ssub.s32 %s14, %s21
    %p23 = scmp.eq.s32.totalorder %s22, 0
    %s25 = sadd.s32 %s24, 1
    %s26 = scalar_select %p23, %s24, %s25
    %p29 = pneg %p23
    %p30 = scmp.eq.s32.totalorder %s14, 1
    %p31 = por %p29, %p30
    %p32 = scmp.ne.s32.totalorder %s24, %s27
    %p33 = scmp.eq.s32.totalorder %s14, 0
    %p34 = por %p32, %p33
    %p35 = scmp.ne.s32.totalorder %s24, %s27
    %p36 = scmp.eq.s32.totalorder %s19, 1
    %p37 = por %p35, %p36
    %p38 = scmp.ne.s32.totalorder %s27, %s28
    %p39 = scmp.eq.s32.totalorder %s19, 0
    %p40 = por %p38, %p39
    %p41 = scmp.ne.s32.totalorder %s27, %s28
    %p42 = scmp.eq.s32.totalorder %s20, 1
    %p43 = por %p41, %p42
    %p45 = scmp.ne.s32.totalorder %s28, %s44
    %p46 = scmp.eq.s32.totalorder %s20, 0
    %p47 = por %p45, %p46
    %s49 = sadd.s32 %s48, 1
    %p52 = scmp.eq.s32.totalorder %s14, 1
    %p53 = scmp.ne.s32.totalorder %s48, %s50
    %p54 = scmp.eq.s32.totalorder %s14, 0
    %p55 = por %p53, %p54
    %p56 = scmp.ne.s32.totalorder %s48, %s50
    %p57 = scmp.eq.s32.totalorder %s19, 1
    %p58 = por %p56, %p57
    %p59 = scmp.ne.s32.totalorder %s50, %s51
    %p60 = scmp.eq.s32.totalorder %s19, 0
    %p61 = por %p59, %p60
    %p62 = scmp.ne.s32.totalorder %s50, %s51
    %p63 = scmp.eq.s32.totalorder %s20, 1
    %p64 = por %p62, %p63
    %p66 = scmp.ne.s32.totalorder %s51, %s65
    %p67 = scmp.eq.s32.totalorder %s20, 0
    %p68 = por %p66, %p67
    %s70 = sadd.s32 %s69, 1
    %p73 = scmp.eq.s32.totalorder %s14, 1
    %p74 = scmp.ne.s32.totalorder %s69, %s71
    %p75 = scmp.eq.s32.totalorder %s14, 0
    %p76 = por %p74, %p75
    %p77 = scmp.ne.s32.totalorder %s69, %s71
    %p78 = scmp.eq.s32.totalorder %s19, 1
    %p79 = por %p77, %p78
    %p80 = scmp.ne.s32.totalorder %s71, %s72
    %p81 = scmp.eq.s32.totalorder %s19, 0
    %p82 = por %p80, %p81
    %p83 = scmp.ne.s32.totalorder %s71, %s72
    %p84 = scmp.eq.s32.totalorder %s20, 1
    %p85 = por %p83, %p84
    %p87 = scmp.ne.s32.totalorder %s72, %s86
    %p88 = scmp.eq.s32.totalorder %s20, 0
    %p89 = por %p87, %p88
    %s91 = sadd.s32 %s90, 1
    %p94 = scmp.eq.s32.totalorder %s14, 1
    %p95 = scmp.ne.s32.totalorder %s90, %s92
    %p96 = scmp.eq.s32.totalorder %s14, 0
    %p97 = por %p95, %p96
    %p98 = scmp.ne.s32.totalorder %s90, %s92
    %p99 = scmp.eq.s32.totalorder %s19, 1
    %p100 = por %p98, %p99
    %p101 = scmp.ne.s32.totalorder %s92, %s93
    %p102 = scmp.eq.s32.totalorder %s19, 0
    %p103 = por %p101, %p102
    %p104 = scmp.ne.s32.totalorder %s92, %s93
    %p105 = scmp.eq.s32.totalorder %s20, 1
    %p106 = por %p104, %p105
    %p108 = scmp.ne.s32.totalorder %s93, %s107
    %p109 = scmp.eq.s32.totalorder %s20, 0
    %p110 = por %p108, %p109
    %s112 = sadd.s32 %s111, 1
    %p115 = scmp.eq.s32.totalorder %s14, 1
    %p116 = scmp.ne.s32.totalorder %s111, %s113
    %p117 = scmp.eq.s32.totalorder %s14, 0
    %p118 = por %p116, %p117
    %p119 = scmp.ne.s32.totalorder %s111, %s113
    %p120 = scmp.eq.s32.totalorder %s19, 1
    %p121 = por %p119, %p120
    %p122 = scmp.ne.s32.totalorder %s113, %s114
    %p123 = scmp.eq.s32.totalorder %s19, 0
    %p124 = por %p122, %p123
    %p125 = scmp.ne.s32.totalorder %s113, %s114
    %p126 = scmp.eq.s32.totalorder %s20, 1
    %p127 = por %p125, %p126
    %p129 = scmp.ne.s32.totalorder %s114, %s128
    %p130 = scmp.eq.s32.totalorder %s20, 0
    %p131 = por %p129, %p130
    %s133 = sadd.s32 %s132, 1
    %p136 = scmp.eq.s32.totalorder %s14, 1
    %p137 = scmp.ne.s32.totalorder %s132, %s134
    %p138 = scmp.eq.s32.totalorder %s14, 0
    %p139 = por %p137, %p138
    %p140 = scmp.ne.s32.totalorder %s132, %s134
    %p141 = scmp.eq.s32.totalorder %s19, 1
    %p142 = por %p140, %p141
    %p143 = scmp.ne.s32.totalorder %s134, %s135
    %p144 = scmp.eq.s32.totalorder %s19, 0
    %p145 = por %p143, %p144
    %p146 = scmp.ne.s32.totalorder %s134, %s135
    %p147 = scmp.eq.s32.totalorder %s20, 1
    %p148 = por %p146, %p147
    %p150 = scmp.ne.s32.totalorder %s135, %s149
    %p151 = scmp.eq.s32.totalorder %s20, 0
    %p152 = por %p150, %p151
    %s154 = sadd.s32 %s153, 1
    %p157 = scmp.eq.s32.totalorder %s14, 1
    %p158 = scmp.ne.s32.totalorder %s153, %s155
    %p159 = scmp.eq.s32.totalorder %s14, 0
    %p160 = por %p158, %p159
    %p161 = scmp.ne.s32.totalorder %s153, %s155
    %p162 = scmp.eq.s32.totalorder %s19, 1
    %p163 = por %p161, %p162
    %p164 = scmp.ne.s32.totalorder %s155, %s156
    %p165 = scmp.eq.s32.totalorder %s19, 0
    %p166 = por %p164, %p165
    %p167 = scmp.ne.s32.totalorder %s155, %s156
    %p168 = scmp.eq.s32.totalorder %s20, 1
    %p169 = por %p167, %p168
    %p171 = scmp.ne.s32.totalorder %s156, %s170
    %p172 = scmp.eq.s32.totalorder %s20, 0
    %p173 = por %p171, %p172
    %s175 = sadd.s32 %s174, 1
    %p178 = scmp.eq.s32.totalorder %s14, 1
    %p179 = scmp.ne.s32.totalorder %s174, %s176
    %p180 = scmp.eq.s32.totalorder %s14, 0
    %p181 = por %p179, %p180
    %p182 = scmp.ne.s32.totalorder %s174, %s176
    %p183 = scmp.eq.s32.totalorder %s19, 1
    %p184 = por %p182, %p183
    %p185 = scmp.ne.s32.totalorder %s176, %s177
    %p186 = scmp.eq.s32.totalorder %s19, 0
    %p187 = por %p185, %p186
    %p188 = scmp.ne.s32.totalorder %s176, %s177
    %p189 = scmp.eq.s32.totalorder %s20, 1
    %p190 = por %p188, %p189
    %p192 = scmp.ne.s32.totalorder %s177, %s191
    %p193 = scmp.eq.s32.totalorder %s20, 0
    %p194 = por %p192, %p193
    %s195 = ssub.s32 %s14, %s21
    %p196 = scmp.eq.s32.totalorder %s195, 0
    %s198 = sadd.s32 %s197, 1
    %s199 = scalar_select %p196, %s197, %s198
    %p202 = pneg %p196
    %p203 = scmp.eq.s32.totalorder %s14, 1
    %p204 = por %p202, %p203
    %p205 = scmp.ne.s32.totalorder %s197, %s200
    %p206 = scmp.eq.s32.totalorder %s14, 0
    %p207 = por %p205, %p206
    %p208 = scmp.ne.s32.totalorder %s197, %s200
    %p209 = scmp.eq.s32.totalorder %s19, 1
    %p210 = por %p208, %p209
    %p211 = scmp.ne.s32.totalorder %s200, %s201
    %p212 = scmp.eq.s32.totalorder %s19, 0
    %p213 = por %p211, %p212
    %p214 = scmp.ne.s32.totalorder %s200, %s201
    %p215 = scmp.eq.s32.totalorder %s20, 1
    %p216 = por %p214, %p215
    %p218 = scmp.ne.s32.totalorder %s201, %s217
    %p219 = scmp.eq.s32.totalorder %s20, 0
    %p220 = por %p218, %p219
    %p221 = scmp.le.s32.totalorder 1, %s14
    %p222 = scmp.lt.s32.totalorder %s14, 3
    %p223 = pnand %p221, %p222
    %p224 = pneg %p223
    // Predicated region
    $region9: #{naml_forward.2} parent=5 // pred_check
      _
    $region10: #{naml_forward.2} parent=5 // pred_check_branch
      %226 = sbr.rel (%p223) target = $region12
    $region11: #{naml_forward.2} parent=5 // pred_region
      %s227 = ssub.s32 %s14, 1
      // Predicated region
      $region13: #{naml_forward.2} parent=11 // pred_check
        %p228 = pneg %p61
      $region14: #{naml_forward.2} parent=11 // pred_check_branch
        %230 = sbr.rel (%p228) target = $region16
      $region15: #{naml_forward.2} parent=11 // pred_region
        _
      $region16: #{naml_forward.2} parent=11 // pred_fallthru
        _
      // Predicated region
      $region17: #{naml_forward.2} parent=11 // pred_check
        %p231 = pneg %p82
      $region18: #{naml_forward.2} parent=11 // pred_check_branch
        %233 = sbr.rel (%p231) target = $region20
      $region19: #{naml_forward.2} parent=11 // pred_region
        _
      $region20: #{naml_forward.2} parent=11 // pred_fallthru
        _
      // Predicated region
      $region21: #{naml_forward.2} parent=11 // pred_check
        %p234 = pneg %p103
      $region22: #{naml_forward.2} parent=11 // pred_check_branch
        %236 = sbr.rel (%p234) target = $region24
      $region23: #{naml_forward.2} parent=11 // pred_region
        _
      $region24: #{naml_forward.2} parent=11 // pred_fallthru
        _
      // Predicated region
      $region25: #{naml_forward.2} parent=11 // pred_check
        %p237 = pneg %p124
      $region26: #{naml_forward.2} parent=11 // pred_check_branch
        %239 = sbr.rel (%p237) target = $region28
      $region27: #{naml_forward.2} parent=11 // pred_region
        _
      $region28: #{naml_forward.2} parent=11 // pred_fallthru
        _
      // Predicated region
      $region29: #{naml_forward.2} parent=11 // pred_check
        %p240 = pneg %p145
      $region30: #{naml_forward.2} parent=11 // pred_check_branch
        %242 = sbr.rel (%p240) target = $region32
      $region31: #{naml_forward.2} parent=11 // pred_region
        _
      $region32: #{naml_forward.2} parent=11 // pred_fallthru
        _
      // Predicated region
      $region33: #{naml_forward.2} parent=11 // pred_check
        %p243 = pneg %p166
      $region34: #{naml_forward.2} parent=11 // pred_check_branch
        %245 = sbr.rel (%p243) target = $region36
      $region35: #{naml_forward.2} parent=11 // pred_region
        _
      $region36: #{naml_forward.2} parent=11 // pred_fallthru
        _
      // Predicated region
      $region37: #{naml_forward.2} parent=11 // pred_check
        %p246 = pneg %p187
      $region38: #{naml_forward.2} parent=11 // pred_check_branch
        %248 = sbr.rel (%p246) target = $region40
      $region39: #{naml_forward.2} parent=11 // pred_region
        _
      $region40: #{naml_forward.2} parent=11 // pred_fallthru
        _
    $region12: #{naml_forward.2} parent=5 // pred_fallthru
      _
    %p249 = scmp.lt.s32.totalorder %s14, 2
    // Predicated region
    $region41: #{naml_forward.2} parent=5 // pred_check
      %p250 = pneg %p249
    $region42: #{naml_forward.2} parent=5 // pred_check_branch
      %252 = sbr.rel (%p250) target = $region44
    $region43: #{naml_forward.2} parent=5 // pred_region
      // Predicated region
      $region45: #{naml_forward.2} parent=43 // pred_check
        %p253 = pneg %p34
      $region46: #{naml_forward.2} parent=43 // pred_check_branch
        %255 = sbr.rel (%p253) target = $region48
      $region47: #{naml_forward.2} parent=43 // pred_region
        %s256 = smul.u32 16, %s14
        %p257 = scmp.lt.s32.totalorder %s256, 31
        %s258 = scalar_select %p257, %s256, 31
        %s259 = smul.addr %s258, 4
        %s260 = scalar_lea.vmem %s0, %s259
        %s261 = smul.u32 16, %s14
      $region48: #{naml_forward.2} parent=43 // pred_fallthru
        _
    $region44: #{naml_forward.2} parent=5 // pred_fallthru
      _
    %p262 = scmp.le.s32.totalorder 1, %s14
    %p263 = scmp.lt.s32.totalorder %s14, 3
    %p264 = pnand %p262, %p263
    %p265 = pneg %p264
    // Predicated region
    $region49: #{naml_forward.2} parent=5 // pred_check
      _
    $region50: #{naml_forward.2} parent=5 // pred_check_branch
      %267 = sbr.rel (%p264) target = $region52
    $region51: #{naml_forward.2} parent=5 // pred_region
      %s268 = ssub.s32 %s14, 1
      %s269 = smul.u32 16, %s19
      %p270 = scmp.lt.s32.totalorder %s269, 31
      %s271 = scalar_select %p270, %s269, 31
      %s272 = smul.addr %s271, 4
      %s273 = scalar_lea.vmem %s0, %s272
      %p274 = pneg %p40
      %p275 = pneg %p37
      %p276 = pneg %p61
      %p277 = pneg %p58
      %p278 = pneg %p82
      %p279 = pneg %p79
      %p280 = pneg %p103
      %p281 = pneg %p100
      %p282 = pneg %p124
      %p283 = pneg %p121
      %p284 = pneg %p145
      %p285 = pneg %p142
      %p286 = pneg %p166
      %p287 = pneg %p163
      %p288 = pneg %p187
      %p289 = pneg %p184
      %p290 = pneg %p213
      %p291 = pneg %p210
      %s292 = smul.u32 2, %s19
      %p293 = scmp.lt.s32.totalorder %s292, 3
      %s294 = scalar_select %p293, %s292, 3
      %s295 = smul.addr %s294, 4
      %s296 = smul.addr %s295, 8
      %s297 = scalar_lea.vmem %s8, %s296
      %s298 = smul.u32 16, %s19
      %p299 = scmp.lt.s32.totalorder %s298, 31
      %s300 = scalar_select %p299, %s298, 31
      %s301 = smul.addr %s300, 4
      %s302 = scalar_lea.vmem %s0, %s301
      %s303 = smul.u32 16, %s19
      %s304 = smul.u32 2, %s19
      %p305 = scmp.lt.s32.totalorder %s304, 3
      %s306 = scalar_select %p305, %s304, 3
      %s307 = smul.addr %s306, 4
      %s308 = smul.addr %s307, 8
      %s309 = scalar_lea.vmem %s8, %s308
      %s310 = smul.u32 2, %s19
      %v312 = vld [vmem:[%s302] sm:$0xf]
      %v313 = vld [vmem:[%s302 + $0x4] sm:$0xf]
      %v314 = vld [vmem:[%s302 + $0x8] sm:$0xf]
      %v315 = vld [vmem:[%s302 + $0xc] sm:$0xf]
      %v316 = vld [vmem:[%s302 + $0x10] sm:$0xf]
      %v317 = vld [vmem:[%s302 + $0x14] sm:$0xf]
      %v318 = vld [vmem:[%s302 + $0x18] sm:$0xf]
      %v319 = vld [vmem:[%s302 + $0x1c] sm:$0xf]
      %v320 = vld [vmem:[%s302 + $0x20] sm:$0xf]
      %v321 = vld [vmem:[%s302 + $0x24] sm:$0xf]
      %v322 = vld [vmem:[%s302 + $0x28] sm:$0xf]
      %v323 = vld [vmem:[%s302 + $0x2c] sm:$0xf]
      %v324 = vld [vmem:[%s302 + $0x30] sm:$0xf]
      %v325 = vld [vmem:[%s302 + $0x34] sm:$0xf]
      %v326 = vld [vmem:[%s302 + $0x38] sm:$0xf]
      %v327 = vld [vmem:[%s302 + $0x3c] sm:$0xf]
      %v328 = vld [vmem:[%s1] sm:$0xff]
      %v329 = vld [vmem:[%s1 + $0x8] sm:$0xff]
      %v330 = vld [vmem:[%s1 + $0x10] sm:$0xff]
      %v331 = vld [vmem:[%s1 + $0x18] sm:$0xff]
      %v332 = vld [vmem:[%s1 + $0x20] sm:$0xff]
      %v333 = vld [vmem:[%s1 + $0x28] sm:$0xff]
      %v334 = vld [vmem:[%s1 + $0x30] sm:$0xff]
      %v335 = vld [vmem:[%s1 + $0x38] sm:$0xff]
      %v336 = vld [vmem:[%s1 + $0x40] sm:$0xff]
      %v337 = vld [vmem:[%s1 + $0x48] sm:$0xff]
      %v338 = vld [vmem:[%s1 + $0x50] sm:$0xff]
      %v339 = vld [vmem:[%s1 + $0x58] sm:$0xff]
      %v340 = vld [vmem:[%s1 + $0x60] sm:$0xff]
      %v341 = vld [vmem:[%s1 + $0x68] sm:$0xff]
      %v342 = vld [vmem:[%s1 + $0x70] sm:$0xff]
      %v343 = vld [vmem:[%s1 + $0x78] sm:$0xff]
      %v360 = vunpack.c.l.b16 %v312
      %v361 = vunpack.c.l.b16 %v313
      %v362 = vunpack.c.l.b16 %v314
      %v363 = vunpack.c.l.b16 %v315
      %v364 = vunpack.c.l.b16 %v316
      %v365 = vunpack.c.l.b16 %v317
      %v366 = vunpack.c.l.b16 %v318
      %v367 = vunpack.c.l.b16 %v319
      %v368 = vunpack.c.l.b16 %v320
      %v369 = vunpack.c.l.b16 %v321
      %v370 = vunpack.c.l.b16 %v322
      %v371 = vunpack.c.l.b16 %v323
      %v372 = vunpack.c.l.b16 %v324
      %v373 = vunpack.c.l.b16 %v325
      %v374 = vunpack.c.l.b16 %v326
      %v375 = vunpack.c.l.b16 %v327
      %v376 = vpack.c.b16 %v361, %v360
      %v377 = vpack.c.b16 %v363, %v362
      %v378 = vpack.c.b16 %v365, %v364
      %v379 = vpack.c.b16 %v367, %v366
      %v380 = vpack.c.b16 %v369, %v368
      %v381 = vpack.c.b16 %v371, %v370
      %v382 = vpack.c.b16 %v373, %v372
      %v383 = vpack.c.b16 %v375, %v374
      %v400 = vunpack.c.l.b16 %v328
      %v401 = vunpack.c.h.b16 %v328
      %v402 = vunpack.c.l.b16 %v329
      %v403 = vunpack.c.h.b16 %v329
      %v404 = vunpack.c.l.b16 %v330
      %v405 = vunpack.c.h.b16 %v330
      %v406 = vunpack.c.l.b16 %v331
      %v407 = vunpack.c.h.b16 %v331
      %v408 = vunpack.c.l.b16 %v332
      %v409 = vunpack.c.h.b16 %v332
      %v410 = vunpack.c.l.b16 %v333
      %v411 = vunpack.c.h.b16 %v333
      %v412 = vunpack.c.l.b16 %v334
      %v413 = vunpack.c.h.b16 %v334
      %v414 = vunpack.c.l.b16 %v335
      %v415 = vunpack.c.h.b16 %v335
      %v416 = vunpack.c.l.b16 %v336
      %v417 = vunpack.c.h.b16 %v336
      %v418 = vunpack.c.l.b16 %v337
      %v419 = vunpack.c.h.b16 %v337
      %v420 = vunpack.c.l.b16 %v338
      %v421 = vunpack.c.h.b16 %v338
      %v422 = vunpack.c.l.b16 %v339
      %v423 = vunpack.c.h.b16 %v339
      %v424 = vunpack.c.l.b16 %v340
      %v425 = vunpack.c.h.b16 %v340
      %v426 = vunpack.c.l.b16 %v341
      %v427 = vunpack.c.h.b16 %v341
      %v428 = vunpack.c.l.b16 %v342
      %v429 = vunpack.c.h.b16 %v342
      %v430 = vunpack.c.l.b16 %v343
      %v431 = vunpack.c.h.b16 %v343
      %v432 = vpack.c.b16 %v404, %v400
      %v433 = vpack.c.b16 %v405, %v401
      %v434 = vpack.c.b16 %v406, %v402
      %v435 = vpack.c.b16 %v407, %v403
      %v436 = vpack.c.b16 %v412, %v408
      %v437 = vpack.c.b16 %v413, %v409
      %v438 = vpack.c.b16 %v414, %v410
      %v439 = vpack.c.b16 %v415, %v411
      %v440 = vpack.c.b16 %v420, %v416
      %v441 = vpack.c.b16 %v421, %v417
      %v442 = vpack.c.b16 %v422, %v418
      %v443 = vpack.c.b16 %v423, %v419
      %v444 = vpack.c.b16 %v428, %v424
      %v445 = vpack.c.b16 %v429, %v425
      %v446 = vpack.c.b16 %v430, %v426
      %v447 = vpack.c.b16 %v431, %v427
      %vm464 = vcmask 523264
      %v466 = vsel %vm464, %v376, 0
      %v469 = vsel %vm464, %v377, 0
      %v472 = vsel %vm464, %v378, 0
      %v475 = vsel %vm464, %v379, 0
      %v478 = vsel %vm464, %v380, 0
      %v481 = vsel %vm464, %v381, 0
      %v484 = vsel %vm464, %v382, 0
      %v487 = vsel %vm464, %v383, 0
      %489 = vmatprep.subr.bf16.mxu0 %v433
      %490 = vmatpush1.bf16.msra.mxu0 %v432
      %491 = vmatprep.subr.bf16.mxu0 %v437
      %492 = vmatpush1.bf16.msra.mxu0 %v436
      %493 = vmatprep.subr.bf16.mxu0 %v441
      %494 = vmatpush1.bf16.msra.mxu0 %v440
      %495 = vmatprep.subr.bf16.mxu0 %v445
      %496 = vmatpush1.bf16.msra.mxu0 %v444
      %497 = vmatprep.subr.bf16.mxu0 0
      %498 = vmatpush1.bf16.msra.mxu0 0
      %499 = vmatprep.subr.bf16.mxu0 0
      %500 = vmatpush1.bf16.msra.mxu0 0
      %501 = vmatprep.subr.bf16.mxu0 0
      %502 = vmatpush1.bf16.msra.mxu0 0
      %503 = vmatprep.subr.bf16.mxu0 0
      %504 = vmatpush1.bf16.msra.mxu0 0
      %505 = vmatprep.subr.bf16.mxu0 0
      %506 = vmatpush1.bf16.msra.mxu0 0
      %507 = vmatprep.subr.bf16.mxu0 0
      %508 = vmatpush1.bf16.msra.mxu0 0
      %509 = vmatprep.subr.bf16.mxu0 0
      %510 = vmatpush1.bf16.msra.mxu0 0
      %511 = vmatprep.subr.bf16.mxu0 0
      %512 = vmatpush1.bf16.msra.mxu0 0
      %513 = vmatprep.subr.bf16.mxu0 0
      %514 = vmatpush1.bf16.msra.mxu0 0
      %515 = vmatprep.subr.bf16.mxu0 0
      %516 = vmatpush1.bf16.msra.mxu0 0
      %517 = vmatprep.subr.bf16.mxu0 0
      %518 = vmatpush1.bf16.msra.mxu0 0
      %519 = vmatprep.subr.bf16.mxu0 0
      %520 = vmatpush1.bf16.msra.mxu0 0
      %521 = vmatprep.mubr.bf16.mxu0 0
      %522 = vmatmul.mubr.bf16.gmra.mrb[0].mxu0 %v466
      %v523 = vpop.f32.mrb[0].mxu0
      %v524 = vadd.f32 0.0, %v523
      %v525 = vpop.f32.mrb[0].mxu0
      %v526 = vadd.f32 0.0, %v525
      %v527 = vpop.f32.mrb[0].mxu0
      %v528 = vadd.f32 0.0, %v527
      %v529 = vpop.f32.mrb[0].mxu0
      %v530 = vadd.f32 0.0, %v529
      %531 = vmatprep.mubr.bf16.mxu0 0
      %532 = vmatmul.mubr.bf16.gmra.mrb[0].mxu0 %v469
      %v533 = vpop.f32.mrb[0].mxu0
      %v534 = vadd.f32 0.0, %v533
      %v535 = vpop.f32.mrb[0].mxu0
      %v536 = vadd.f32 0.0, %v535
      %v537 = vpop.f32.mrb[0].mxu0
      %v538 = vadd.f32 0.0, %v537
      %v539 = vpop.f32.mrb[0].mxu0
      %v540 = vadd.f32 0.0, %v539
      %541 = vmatprep.mubr.bf16.mxu0 0
      %542 = vmatmul.mubr.bf16.gmra.mrb[0].mxu0 %v472
      %v543 = vpop.f32.mrb[0].mxu0
      %v544 = vadd.f32 0.0, %v543
      %v545 = vpop.f32.mrb[0].mxu0
      %v546 = vadd.f32 0.0, %v545
      %v547 = vpop.f32.mrb[0].mxu0
      %v548 = vadd.f32 0.0, %v547
      %v549 = vpop.f32.mrb[0].mxu0
      %v550 = vadd.f32 0.0, %v549
      %551 = vmatprep.mubr.bf16.mxu0 0
      %552 = vmatmul.mubr.bf16.gmra.mrb[0].mxu0 %v475
      %v553 = vpop.f32.mrb[0].mxu0
      %v554 = vadd.f32 0.0, %v553
      %v555 = vpop.f32.mrb[0].mxu0
      %v556 = vadd.f32 0.0, %v555
      %v557 = vpop.f32.mrb[0].mxu0
      %v558 = vadd.f32 0.0, %v557
      %v559 = vpop.f32.mrb[0].mxu0
      %v560 = vadd.f32 0.0, %v559
      %561 = vmatprep.mubr.bf16.mxu0 0
      %562 = vmatmul.mubr.bf16.gmra.mrb[0].mxu0 %v478
      %v563 = vpop.f32.mrb[0].mxu0
      %v564 = vadd.f32 0.0, %v563
      %v565 = vpop.f32.mrb[0].mxu0
      %v566 = vadd.f32 0.0, %v565
      %v567 = vpop.f32.mrb[0].mxu0
      %v568 = vadd.f32 0.0, %v567
      %v569 = vpop.f32.mrb[0].mxu0
      %v570 = vadd.f32 0.0, %v569
      %571 = vmatprep.mubr.bf16.mxu0 0
      %572 = vmatmul.mubr.bf16.gmra.mrb[0].mxu0 %v481
      %v573 = vpop.f32.mrb[0].mxu0
      %v574 = vadd.f32 0.0, %v573
      %v575 = vpop.f32.mrb[0].mxu0
      %v576 = vadd.f32 0.0, %v575
      %v577 = vpop.f32.mrb[0].mxu0
      %v578 = vadd.f32 0.0, %v577
      %v579 = vpop.f32.mrb[0].mxu0
      %v580 = vadd.f32 0.0, %v579
      %581 = vmatprep.mubr.bf16.mxu0 0
      %582 = vmatmul.mubr.bf16.gmra.mrb[0].mxu0 %v484
      %v583 = vpop.f32.mrb[0].mxu0
      %v584 = vadd.f32 0.0, %v583
      %v585 = vpop.f32.mrb[0].mxu0
      %v586 = vadd.f32 0.0, %v585
      %v587 = vpop.f32.mrb[0].mxu0
      %v588 = vadd.f32 0.0, %v587
      %v589 = vpop.f32.mrb[0].mxu0
      %v590 = vadd.f32 0.0, %v589
      %591 = vmatprep.mubr.bf16.mxu0 0
      %592 = vmatmul.mubr.bf16.gmra.mrb[0].mxu0 %v487
      %v593 = vpop.f32.mrb[0].mxu0
      %v594 = vadd.f32 0.0, %v593
      %v595 = vpop.f32.mrb[0].mxu0
      %v596 = vadd.f32 0.0, %v595
      %v597 = vpop.f32.mrb[0].mxu0
      %v598 = vadd.f32 0.0, %v597
      %v599 = vpop.f32.mrb[0].mxu0
      %v600 = vadd.f32 0.0, %v599
      %601 = vdwg.mxu0
      %602 = vmatprep.subr.bf16.mxu0 %v435
      %603 = vmatpush1.bf16.msra.mxu0 %v434
      %604 = vmatprep.subr.bf16.mxu0 %v439
      %605 = vmatpush1.bf16.msra.mxu0 %v438
      %606 = vmatprep.subr.bf16.mxu0 %v443
      %607 = vmatpush1.bf16.msra.mxu0 %v442
      %608 = vmatprep.subr.bf16.mxu0 %v447
      %609 = vmatpush1.bf16.msra.mxu0 %v446
      %610 = vmatprep.subr.bf16.mxu0 0
      %611 = vmatpush1.bf16.msra.mxu0 0
      %612 = vmatprep.subr.bf16.mxu0 0
      %613 = vmatpush1.bf16.msra.mxu0 0
      %614 = vmatprep.subr.bf16.mxu0 0
      %615 = vmatpush1.bf16.msra.mxu0 0
      %616 = vmatprep.subr.bf16.mxu0 0
      %617 = vmatpush1.bf16.msra.mxu0 0
      %618 = vmatprep.subr.bf16.mxu0 0
      %619 = vmatpush1.bf16.msra.mxu0 0
      %620 = vmatprep.subr.bf16.mxu0 0
      %621 = vmatpush1.bf16.msra.mxu0 0
      %622 = vmatprep.subr.bf16.mxu0 0
      %623 = vmatpush1.bf16.msra.mxu0 0
      %624 = vmatprep.subr.bf16.mxu0 0
      %625 = vmatpush1.bf16.msra.mxu0 0
      %626 = vmatprep.subr.bf16.mxu0 0
      %627 = vmatpush1.bf16.msra.mxu0 0
      %628 = vmatprep.subr.bf16.mxu0 0
      %629 = vmatpush1.bf16.msra.mxu0 0
      %630 = vmatprep.subr.bf16.mxu0 0
      %631 = vmatpush1.bf16.msra.mxu0 0
      %632 = vmatprep.subr.bf16.mxu0 0
      %633 = vmatpush1.bf16.msra.mxu0 0
      %634 = vmatprep.mubr.bf16.mxu0 0
      %635 = vmatmul.mubr.bf16.gmra.mrb[0].mxu0 %v466
      %v636 = vpop.f32.mrb[0].mxu0
      %v637 = vadd.f32 0.0, %v636
      %v638 = vpop.f32.mrb[0].mxu0
      %v639 = vadd.f32 0.0, %v638
      %v640 = vpop.f32.mrb[0].mxu0
      %v641 = vadd.f32 0.0, %v640
      %v642 = vpop.f32.mrb[0].mxu0
      %v643 = vadd.f32 0.0, %v642
      %644 = vmatprep.mubr.bf16.mxu0 0
      %645 = vmatmul.mubr.bf16.gmra.mrb[0].mxu0 %v469
      %v646 = vpop.f32.mrb[0].mxu0
      %v647 = vadd.f32 0.0, %v646
      %v648 = vpop.f32.mrb[0].mxu0
      %v649 = vadd.f32 0.0, %v648
      %v650 = vpop.f32.mrb[0].mxu0
      %v651 = vadd.f32 0.0, %v650
      %v652 = vpop.f32.mrb[0].mxu0
      %v653 = vadd.f32 0.0, %v652
      %654 = vmatprep.mubr.bf16.mxu0 0
      %655 = vmatmul.mubr.bf16.gmra.mrb[0].mxu0 %v472
      %v656 = vpop.f32.mrb[0].mxu0
      %v657 = vadd.f32 0.0, %v656
      %v658 = vpop.f32.mrb[0].mxu0
      %v659 = vadd.f32 0.0, %v658
      %v660 = vpop.f32.mrb[0].mxu0
      %v661 = vadd.f32 0.0, %v660
      %v662 = vpop.f32.mrb[0].mxu0
      %v663 = vadd.f32 0.0, %v662
      %664 = vmatprep.mubr.bf16.mxu0 0
      %665 = vmatmul.mubr.bf16.gmra.mrb[0].mxu0 %v475
      %v666 = vpop.f32.mrb[0].mxu0
      %v667 = vadd.f32 0.0, %v666
      %v668 = vpop.f32.mrb[0].mxu0
      %v669 = vadd.f32 0.0, %v668
      %v670 = vpop.f32.mrb[0].mxu0
      %v671 = vadd.f32 0.0, %v670
      %v672 = vpop.f32.mrb[0].mxu0
      %v673 = vadd.f32 0.0, %v672
      %674 = vmatprep.mubr.bf16.mxu0 0
      %675 = vmatmul.mubr.bf16.gmra.mrb[0].mxu0 %v478
      %v676 = vpop.f32.mrb[0].mxu0
      %v677 = vadd.f32 0.0, %v676
      %v678 = vpop.f32.mrb[0].mxu0
      %v679 = vadd.f32 0.0, %v678
      %v680 = vpop.f32.mrb[0].mxu0
      %v681 = vadd.f32 0.0, %v680
      %v682 = vpop.f32.mrb[0].mxu0
      %v683 = vadd.f32 0.0, %v682
      %684 = vmatprep.mubr.bf16.mxu0 0
      %685 = vmatmul.mubr.bf16.gmra.mrb[0].mxu0 %v481
      %v686 = vpop.f32.mrb[0].mxu0
      %v687 = vadd.f32 0.0, %v686
      %v688 = vpop.f32.mrb[0].mxu0
      %v689 = vadd.f32 0.0, %v688
      %v690 = vpop.f32.mrb[0].mxu0
      %v691 = vadd.f32 0.0, %v690
      %v692 = vpop.f32.mrb[0].mxu0
      %v693 = vadd.f32 0.0, %v692
      %694 = vmatprep.mubr.bf16.mxu0 0
      %695 = vmatmul.mubr.bf16.gmra.mrb[0].mxu0 %v484
      %v696 = vpop.f32.mrb[0].mxu0
      %v697 = vadd.f32 0.0, %v696
      %v698 = vpop.f32.mrb[0].mxu0
      %v699 = vadd.f32 0.0, %v698
      %v700 = vpop.f32.mrb[0].mxu0
      %v701 = vadd.f32 0.0, %v700
      %v702 = vpop.f32.mrb[0].mxu0
      %v703 = vadd.f32 0.0, %v702
      %704 = vmatprep.mubr.bf16.mxu0 0
      %705 = vmatmul.mubr.bf16.gmra.mrb[0].mxu0 %v487
      %v706 = vpop.f32.mrb[0].mxu0
      %v707 = vadd.f32 0.0, %v706
      %v708 = vpop.f32.mrb[0].mxu0
      %v709 = vadd.f32 0.0, %v708
      %v710 = vpop.f32.mrb[0].mxu0
      %v711 = vadd.f32 0.0, %v710
      %v712 = vpop.f32.mrb[0].mxu0
      %v713 = vadd.f32 0.0, %v712
      %714 = vdwg.mxu0
      %v715 = vld [vmem:[%s2] sm:$0xff]
      %v716 = vld [vmem:[%s2 + $0x8] sm:$0xff]
      %v717 = vld [vmem:[%s2 + $0x10] sm:$0xff]
      %v718 = vld [vmem:[%s2 + $0x18] sm:$0xff]
      %v719 = vld [vmem:[%s2 + $0x20] sm:$0xff]
      %v720 = vld [vmem:[%s2 + $0x28] sm:$0xff]
      %v721 = vld [vmem:[%s2 + $0x30] sm:$0xff]
      %v722 = vld [vmem:[%s2 + $0x38] sm:$0xff]
      %v723 = vld [vmem:[%s2 + $0x40] sm:$0xff]
      %v724 = vld [vmem:[%s2 + $0x48] sm:$0xff]
      %v725 = vld [vmem:[%s2 + $0x50] sm:$0xff]
      %v726 = vld [vmem:[%s2 + $0x58] sm:$0xff]
      %v727 = vld [vmem:[%s2 + $0x60] sm:$0xff]
      %v728 = vld [vmem:[%s2 + $0x68] sm:$0xff]
      %v729 = vld [vmem:[%s2 + $0x70] sm:$0xff]
      %v730 = vld [vmem:[%s2 + $0x78] sm:$0xff]
      %v731 = vld [vmem:[%s3] sm:$0xff]
      %v732 = vld [vmem:[%s3 + $0x8] sm:$0xff]
      %v733 = vld [vmem:[%s3 + $0x10] sm:$0xff]
      %v734 = vld [vmem:[%s3 + $0x18] sm:$0xff]
      %v735 = vld [vmem:[%s3 + $0x20] sm:$0xff]
      %v736 = vld [vmem:[%s3 + $0x28] sm:$0xff]
      %v737 = vld [vmem:[%s3 + $0x30] sm:$0xff]
      %v738 = vld [vmem:[%s3 + $0x38] sm:$0xff]
      %v739 = vld [vmem:[%s3 + $0x40] sm:$0xff]
      %v740 = vld [vmem:[%s3 + $0x48] sm:$0xff]
      %v741 = vld [vmem:[%s3 + $0x50] sm:$0xff]
      %v742 = vld [vmem:[%s3 + $0x58] sm:$0xff]
      %v743 = vld [vmem:[%s3 + $0x60] sm:$0xff]
      %v744 = vld [vmem:[%s3 + $0x68] sm:$0xff]
      %v745 = vld [vmem:[%s3 + $0x70] sm:$0xff]
      %v746 = vld [vmem:[%s3 + $0x78] sm:$0xff]
      %v763 = vunpack.c.l.b16 %v731
      %v764 = vunpack.c.h.b16 %v731
      %v765 = vunpack.c.l.b16 %v732
      %v766 = vunpack.c.h.b16 %v732
      %v767 = vunpack.c.l.b16 %v733
      %v768 = vunpack.c.h.b16 %v733
      %v769 = vunpack.c.l.b16 %v734
      %v770 = vunpack.c.h.b16 %v734
      %v771 = vunpack.c.l.b16 %v735
      %v772 = vunpack.c.h.b16 %v735
      %v773 = vunpack.c.l.b16 %v736
      %v774 = vunpack.c.h.b16 %v736
      %v775 = vunpack.c.l.b16 %v737
      %v776 = vunpack.c.h.b16 %v737
      %v777 = vunpack.c.l.b16 %v738
      %v778 = vunpack.c.h.b16 %v738
      %v779 = vunpack.c.l.b16 %v739
      %v780 = vunpack.c.h.b16 %v739
      %v781 = vunpack.c.l.b16 %v740
      %v782 = vunpack.c.h.b16 %v740
      %v783 = vunpack.c.l.b16 %v741
      %v784 = vunpack.c.h.b16 %v741
      %v785 = vunpack.c.l.b16 %v742
      %v786 = vunpack.c.h.b16 %v742
      %v787 = vunpack.c.l.b16 %v743
      %v788 = vunpack.c.h.b16 %v743
      %v789 = vunpack.c.l.b16 %v744
      %v790 = vunpack.c.h.b16 %v744
      %v791 = vunpack.c.l.b16 %v745
      %v792 = vunpack.c.h.b16 %v745
      %v793 = vunpack.c.l.b16 %v746
      %v794 = vunpack.c.h.b16 %v746
      %v795 = vpack.c.b16 %v767, %v763
      %v796 = vpack.c.b16 %v768, %v764
      %v797 = vpack.c.b16 %v769, %v765
      %v798 = vpack.c.b16 %v770, %v766
      %v799 = vpack.c.b16 %v775, %v771
      %v800 = vpack.c.b16 %v776, %v772
      %v801 = vpack.c.b16 %v777, %v773
      %v802 = vpack.c.b16 %v778, %v774
      %v803 = vpack.c.b16 %v783, %v779
      %v804 = vpack.c.b16 %v784, %v780
      %v805 = vpack.c.b16 %v785, %v781
      %v806 = vpack.c.b16 %v786, %v782
      %v807 = vpack.c.b16 %v791, %v787
      %v808 = vpack.c.b16 %v792, %v788
      %v809 = vpack.c.b16 %v793, %v789
      %v810 = vpack.c.b16 %v794, %v790
      %827 = vmatprep.subr.bf16.mxu0 %v796
      %828 = vmatpush1.bf16.msra.mxu0 %v795
      %829 = vmatprep.subr.bf16.mxu0 %v800
      %830 = vmatpush1.bf16.msra.mxu0 %v799
      %831 = vmatprep.subr.bf16.mxu0 %v804
      %832 = vmatpush1.bf16.msra.mxu0 %v803
      %833 = vmatprep.subr.bf16.mxu0 %v808
      %834 = vmatpush1.bf16.msra.mxu0 %v807
      %835 = vmatprep.subr.bf16.mxu0 0
      %836 = vmatpush1.bf16.msra.mxu0 0
      %837 = vmatprep.subr.bf16.mxu0 0
      %838 = vmatpush1.bf16.msra.mxu0 0
      %839 = vmatprep.subr.bf16.mxu0 0
      %840 = vmatpush1.bf16.msra.mxu0 0
      %841 = vmatprep.subr.bf16.mxu0 0
      %842 = vmatpush1.bf16.msra.mxu0 0
      %843 = vmatprep.subr.bf16.mxu0 0
      %844 = vmatpush1.bf16.msra.mxu0 0
      %845 = vmatprep.subr.bf16.mxu0 0
      %846 = vmatpush1.bf16.msra.mxu0 0
      %847 = vmatprep.subr.bf16.mxu0 0
      %848 = vmatpush1.bf16.msra.mxu0 0
      %849 = vmatprep.subr.bf16.mxu0 0
      %850 = vmatpush1.bf16.msra.mxu0 0
      %851 = vmatprep.subr.bf16.mxu0 0
      %852 = vmatpush1.bf16.msra.mxu0 0
      %853 = vmatprep.subr.bf16.mxu0 0
      %854 = vmatpush1.bf16.msra.mxu0 0
      %855 = vmatprep.subr.bf16.mxu0 0
      %856 = vmatpush1.bf16.msra.mxu0 0
      %857 = vmatprep.subr.bf16.mxu0 0
      %858 = vmatpush1.bf16.msra.mxu0 0
      %859 = vmatprep.mubr.bf16.mxu0 0
      %860 = vmatmul.mubr.bf16.gmra.mrb[0].mxu0 %v466
      %v861 = vpop.f32.mrb[0].mxu0
      %v862 = vadd.f32 0.0, %v861
      %v863 = vpop.f32.mrb[0].mxu0
      %v864 = vadd.f32 0.0, %v863
      %v865 = vpop.f32.mrb[0].mxu0
      %v866 = vadd.f32 0.0, %v865
      %v867 = vpop.f32.mrb[0].mxu0
      %v868 = vadd.f32 0.0, %v867
      %869 = vmatprep.mubr.bf16.mxu0 0
      %870 = vmatmul.mubr.bf16.gmra.mrb[0].mxu0 %v469
      %v871 = vpop.f32.mrb[0].mxu0
      %v872 = vadd.f32 0.0, %v871
      %v873 = vpop.f32.mrb[0].mxu0
      %v874 = vadd.f32 0.0, %v873
      %v875 = vpop.f32.mrb[0].mxu0
      %v876 = vadd.f32 0.0, %v875
      %v877 = vpop.f32.mrb[0].mxu0
      %v878 = vadd.f32 0.0, %v877
      %879 = vmatprep.mubr.bf16.mxu0 0
      %880 = vmatmul.mubr.bf16.gmra.mrb[0].mxu0 %v472
      %v881 = vpop.f32.mrb[0].mxu0
      %v882 = vadd.f32 0.0, %v881
      %v883 = vpop.f32.mrb[0].mxu0
      %v884 = vadd.f32 0.0, %v883
      %v885 = vpop.f32.mrb[0].mxu0
      %v886 = vadd.f32 0.0, %v885
      %v887 = vpop.f32.mrb[0].mxu0
      %v888 = vadd.f32 0.0, %v887
      %889 = vmatprep.mubr.bf16.mxu0 0
      %890 = vmatmul.mubr.bf16.gmra.mrb[0].mxu0 %v475
      %v891 = vpop.f32.mrb[0].mxu0
      %v892 = vadd.f32 0.0, %v891
      %v893 = vpop.f32.mrb[0].mxu0
      %v894 = vadd.f32 0.0, %v893
      %v895 = vpop.f32.mrb[0].mxu0
      %v896 = vadd.f32 0.0, %v895
      %v897 = vpop.f32.mrb[0].mxu0
      %v898 = vadd.f32 0.0, %v897
      %899 = vmatprep.mubr.bf16.mxu0 0
      %900 = vmatmul.mubr.bf16.gmra.mrb[0].mxu0 %v478
      %v901 = vpop.f32.mrb[0].mxu0
      %v902 = vadd.f32 0.0, %v901
      %v903 = vpop.f32.mrb[0].mxu0
      %v904 = vadd.f32 0.0, %v903
      %v905 = vpop.f32.mrb[0].mxu0
      %v906 = vadd.f32 0.0, %v905
      %v907 = vpop.f32.mrb[0].mxu0
      %v908 = vadd.f32 0.0, %v907
      %909 = vmatprep.mubr.bf16.mxu0 0
      %910 = vmatmul.mubr.bf16.gmra.mrb[0].mxu0 %v481
      %v911 = vpop.f32.mrb[0].mxu0
      %v912 = vadd.f32 0.0, %v911
      %v913 = vpop.f32.mrb[0].mxu0
      %v914 = vadd.f32 0.0, %v913
      %v915 = vpop.f32.mrb[0].mxu0
      %v916 = vadd.f32 0.0, %v915
      %v917 = vpop.f32.mrb[0].mxu0
      %v918 = vadd.f32 0.0, %v917
      %919 = vmatprep.mubr.bf16.mxu0 0
      %920 = vmatmul.mubr.bf16.gmra.mrb[0].mxu0 %v484
      %v921 = vpop.f32.mrb[0].mxu0
      %v922 = vadd.f32 0.0, %v921
      %v923 = vpop.f32.mrb[0].mxu0
      %v924 = vadd.f32 0.0, %v923
      %v925 = vpop.f32.mrb[0].mxu0
      %v926 = vadd.f32 0.0, %v925
      %v927 = vpop.f32.mrb[0].mxu0
      %v928 = vadd.f32 0.0, %v927
      %929 = vmatprep.mubr.bf16.mxu0 0
      %930 = vmatmul.mubr.bf16.gmra.mrb[0].mxu0 %v487
      %v931 = vpop.f32.mrb[0].mxu0
      %v932 = vadd.f32 0.0, %v931
      %v933 = vpop.f32.mrb[0].mxu0
      %v934 = vadd.f32 0.0, %v933
      %v935 = vpop.f32.mrb[0].mxu0
      %v936 = vadd.f32 0.0, %v935
      %v937 = vpop.f32.mrb[0].mxu0
      %v938 = vadd.f32 0.0, %v937
      %939 = vdwg.mxu0
      %940 = vmatprep.subr.bf16.mxu0 %v798
      %941 = vmatpush1.bf16.msra.mxu0 %v797
      %942 = vmatprep.subr.bf16.mxu0 %v802
      %943 = vmatpush1.bf16.msra.mxu0 %v801
      %944 = vmatprep.subr.bf16.mxu0 %v806
      %945 = vmatpush1.bf16.msra.mxu0 %v805
      %946 = vmatprep.subr.bf16.mxu0 %v810
      %947 = vmatpush1.bf16.msra.mxu0 %v809
      %948 = vmatprep.subr.bf16.mxu0 0
      %949 = vmatpush1.bf16.msra.mxu0 0
      %950 = vmatprep.subr.bf16.mxu0 0
      %951 = vmatpush1.bf16.msra.mxu0 0
      %952 = vmatprep.subr.bf16.mxu0 0
      %953 = vmatpush1.bf16.msra.mxu0 0
      %954 = vmatprep.subr.bf16.mxu0 0
      %955 = vmatpush1.bf16.msra.mxu0 0
      %956 = vmatprep.subr.bf16.mxu0 0
      %957 = vmatpush1.bf16.msra.mxu0 0
      %958 = vmatprep.subr.bf16.mxu0 0
      %959 = vmatpush1.bf16.msra.mxu0 0
      %960 = vmatprep.subr.bf16.mxu0 0
      %961 = vmatpush1.bf16.msra.mxu0 0
      %962 = vmatprep.subr.bf16.mxu0 0
      %963 = vmatpush1.bf16.msra.mxu0 0
      %964 = vmatprep.subr.bf16.mxu0 0
      %965 = vmatpush1.bf16.msra.mxu0 0
      %966 = vmatprep.subr.bf16.mxu0 0
      %967 = vmatpush1.bf16.msra.mxu0 0
      %968 = vmatprep.subr.bf16.mxu0 0
      %969 = vmatpush1.bf16.msra.mxu0 0
      %970 = vmatprep.subr.bf16.mxu0 0
      %971 = vmatpush1.bf16.msra.mxu0 0
      %972 = vmatprep.mubr.bf16.mxu0 0
      %973 = vmatmul.mubr.bf16.gmra.mrb[0].mxu0 %v466
      %v974 = vpop.f32.mrb[0].mxu0
      %v975 = vadd.f32 0.0, %v974
      %v976 = vpop.f32.mrb[0].mxu0
      %v977 = vadd.f32 0.0, %v976
      %v978 = vpop.f32.mrb[0].mxu0
      %v979 = vadd.f32 0.0, %v978
      %v980 = vpop.f32.mrb[0].mxu0
      %v981 = vadd.f32 0.0, %v980
      %982 = vmatprep.mubr.bf16.mxu0 0
      %983 = vmatmul.mubr.bf16.gmra.mrb[0].mxu0 %v469
      %v984 = vpop.f32.mrb[0].mxu0
      %v985 = vadd.f32 0.0, %v984
      %v986 = vpop.f32.mrb[0].mxu0
      %v987 = vadd.f32 0.0, %v986
      %v988 = vpop.f32.mrb[0].mxu0
      %v989 = vadd.f32 0.0, %v988
      %v990 = vpop.f32.mrb[0].mxu0
      %v991 = vadd.f32 0.0, %v990
      %992 = vmatprep.mubr.bf16.mxu0 0
      %993 = vmatmul.mubr.bf16.gmra.mrb[0].mxu0 %v472
      %v994 = vpop.f32.mrb[0].mxu0
      %v995 = vadd.f32 0.0, %v994
      %v996 = vpop.f32.mrb[0].mxu0
      %v997 = vadd.f32 0.0, %v996
      %v998 = vpop.f32.mrb[0].mxu0
      %v999 = vadd.f32 0.0, %v998
      %v1000 = vpop.f32.mrb[0].mxu0
      %v1001 = vadd.f32 0.0, %v1000
      %1002 = vmatprep.mubr.bf16.mxu0 0
      %1003 = vmatmul.mubr.bf16.gmra.mrb[0].mxu0 %v475
      %v1004 = vpop.f32.mrb[0].mxu0
      %v1005 = vadd.f32 0.0, %v1004
      %v1006 = vpop.f32.mrb[0].mxu0
      %v1007 = vadd.f32 0.0, %v1006
      %v1008 = vpop.f32.mrb[0].mxu0
      %v1009 = vadd.f32 0.0, %v1008
      %v1010 = vpop.f32.mrb[0].mxu0
      %v1011 = vadd.f32 0.0, %v1010
      %1012 = vmatprep.mubr.bf16.mxu0 0
      %1013 = vmatmul.mubr.bf16.gmra.mrb[0].mxu0 %v478
      %v1014 = vpop.f32.mrb[0].mxu0
      %v1015 = vadd.f32 0.0, %v1014
      %v1016 = vpop.f32.mrb[0].mxu0
      %v1017 = vadd.f32 0.0, %v1016
      %v1018 = vpop.f32.mrb[0].mxu0
      %v1019 = vadd.f32 0.0, %v1018
      %v1020 = vpop.f32.mrb[0].mxu0
      %v1021 = vadd.f32 0.0, %v1020
      %1022 = vmatprep.mubr.bf16.mxu0 0
      %1023 = vmatmul.mubr.bf16.gmra.mrb[0].mxu0 %v481
      %v1024 = vpop.f32.mrb[0].mxu0
      %v1025 = vadd.f32 0.0, %v1024
      %v1026 = vpop.f32.mrb[0].mxu0
      %v1027 = vadd.f32 0.0, %v1026
      %v1028 = vpop.f32.mrb[0].mxu0
      %v1029 = vadd.f32 0.0, %v1028
      %v1030 = vpop.f32.mrb[0].mxu0
      %v1031 = vadd.f32 0.0, %v1030
      %1032 = vmatprep.mubr.bf16.mxu0 0
      %1033 = vmatmul.mubr.bf16.gmra.mrb[0].mxu0 %v484
      %v1034 = vpop.f32.mrb[0].mxu0
      %v1035 = vadd.f32 0.0, %v1034
      %v1036 = vpop.f32.mrb[0].mxu0
      %v1037 = vadd.f32 0.0, %v1036
      %v1038 = vpop.f32.mrb[0].mxu0
      %v1039 = vadd.f32 0.0, %v1038
      %v1040 = vpop.f32.mrb[0].mxu0
      %v1041 = vadd.f32 0.0, %v1040
      %1042 = vmatprep.mubr.bf16.mxu0 0
      %1043 = vmatmul.mubr.bf16.gmra.mrb[0].mxu0 %v487
      %v1044 = vpop.f32.mrb[0].mxu0
      %v1045 = vadd.f32 0.0, %v1044
      %v1046 = vpop.f32.mrb[0].mxu0
      %v1047 = vadd.f32 0.0, %v1046
      %v1048 = vpop.f32.mrb[0].mxu0
      %v1049 = vadd.f32 0.0, %v1048
      %v1050 = vpop.f32.mrb[0].mxu0
      %v1051 = vadd.f32 0.0, %v1050
      %1052 = vdwg.mxu0
      %v1053 = vlaneseq
      %v1054 = vshrl.u32 %v1053, 7
      %v1055 = vadd.s32 %v1054, 8
      %v1056 = vadd.s32 %v1054, 16
      %v1057 = vadd.s32 %v1054, 24
      %v1058 = vadd.s32 %v1054, 32
      %v1059 = vadd.s32 %v1054, 40
      %v1060 = vadd.s32 %v1054, 48
      %v1061 = vadd.s32 %v1054, 56
      %v1062 = vadd.s32 %v1054, 64
      %v1063 = vadd.s32 %v1054, 72
      %v1064 = vadd.s32 %v1054, 80
      %v1065 = vadd.s32 %v1054, 88
      %v1066 = vadd.s32 %v1054, 96
      %v1067 = vadd.s32 %v1054, 104
      %v1068 = vadd.s32 %v1054, 112
      %v1069 = vadd.s32 %v1054, 120
      %vm1070 = vcmp.lt.s32.totalorder %v1054, 0
      %v1071 = vsub.s32 0, %v1054
      %v1072 = vsel %vm1070, %v1071, %v1054
      %v1073 = vshrl.u32 %v1072, 3
      %v1074 = vand.u32 %v1072, 7
      %v1075 = vsub.s32 0, %v1074
      %v1076 = vsel %vm1070, %v1075, %v1074
      %vm1077 = vcmp.lt.s32.totalorder %v1055, 0
      %v1078 = vsub.s32 0, %v1055
      %v1079 = vsel %vm1077, %v1078, %v1055
      %v1080 = vshrl.u32 %v1079, 3
      %v1081 = vand.u32 %v1079, 7
      %v1082 = vsub.s32 0, %v1081
      %v1083 = vsel %vm1077, %v1082, %v1081
      %vm1084 = vcmp.lt.s32.totalorder %v1056, 0
      %v1085 = vsub.s32 0, %v1056
      %v1086 = vsel %vm1084, %v1085, %v1056
      %v1087 = vshrl.u32 %v1086, 3
      %v1088 = vand.u32 %v1086, 7
      %v1089 = vsub.s32 0, %v1088
      %v1090 = vsel %vm1084, %v1089, %v1088
      %vm1091 = vcmp.lt.s32.totalorder %v1057, 0
      %v1092 = vsub.s32 0, %v1057
      %v1093 = vsel %vm1091, %v1092, %v1057
      %v1094 = vshrl.u32 %v1093, 3
      %v1095 = vand.u32 %v1093, 7
      %v1096 = vsub.s32 0, %v1095
      %v1097 = vsel %vm1091, %v1096, %v1095
      %vm1098 = vcmp.lt.s32.totalorder %v1058, 0
      %v1099 = vsub.s32 0, %v1058
      %v1100 = vsel %vm1098, %v1099, %v1058
      %v1101 = vshrl.u32 %v1100, 3
      %v1102 = vand.u32 %v1100, 7
      %v1103 = vsub.s32 0, %v1102
      %v1104 = vsel %vm1098, %v1103, %v1102
      %vm1105 = vcmp.lt.s32.totalorder %v1059, 0
      %v1106 = vsub.s32 0, %v1059
      %v1107 = vsel %vm1105, %v1106, %v1059
      %v1108 = vshrl.u32 %v1107, 3
      %v1109 = vand.u32 %v1107, 7
      %v1110 = vsub.s32 0, %v1109
      %v1111 = vsel %vm1105, %v1110, %v1109
      %vm1112 = vcmp.lt.s32.totalorder %v1060, 0
      %v1113 = vsub.s32 0, %v1060
      %v1114 = vsel %vm1112, %v1113, %v1060
      %v1115 = vshrl.u32 %v1114, 3
      %v1116 = vand.u32 %v1114, 7
      %v1117 = vsub.s32 0, %v1116
      %v1118 = vsel %vm1112, %v1117, %v1116
      %vm1119 = vcmp.lt.s32.totalorder %v1061, 0
      %v1120 = vsub.s32 0, %v1061
      %v1121 = vsel %vm1119, %v1120, %v1061
      %v1122 = vshrl.u32 %v1121, 3
      %v1123 = vand.u32 %v1121, 7
      %v1124 = vsub.s32 0, %v1123
      %v1125 = vsel %vm1119, %v1124, %v1123
      %vm1126 = vcmp.lt.s32.totalorder %v1062, 0
      %v1127 = vsub.s32 0, %v1062
      %v1128 = vsel %vm1126, %v1127, %v1062
      %v1129 = vshrl.u32 %v1128, 3
      %v1130 = vand.u32 %v1128, 7
      %v1131 = vsub.s32 0, %v1130
      %v1132 = vsel %vm1126, %v1131, %v1130
      %vm1133 = vcmp.lt.s32.totalorder %v1063, 0
      %v1134 = vsub.s32 0, %v1063
      %v1135 = vsel %vm1133, %v1134, %v1063
      %v1136 = vshrl.u32 %v1135, 3
      %v1137 = vand.u32 %v1135, 7
      %v1138 = vsub.s32 0, %v1137
      %v1139 = vsel %vm1133, %v1138, %v1137
      %vm1140 = vcmp.lt.s32.totalorder %v1064, 0
      %v1141 = vsub.s32 0, %v1064
      %v1142 = vsel %vm1140, %v1141, %v1064
      %v1143 = vshrl.u32 %v1142, 3
      %v1144 = vand.u32 %v1142, 7
      %v1145 = vsub.s32 0, %v1144
      %v1146 = vsel %vm1140, %v1145, %v1144
      %vm1147 = vcmp.lt.s32.totalorder %v1065, 0
      %v1148 = vsub.s32 0, %v1065
      %v1149 = vsel %vm1147, %v1148, %v1065
      %v1150 = vshrl.u32 %v1149, 3
      %v1151 = vand.u32 %v1149, 7
      %v1152 = vsub.s32 0, %v1151
      %v1153 = vsel %vm1147, %v1152, %v1151
      %vm1154 = vcmp.lt.s32.totalorder %v1066, 0
      %v1155 = vsub.s32 0, %v1066
      %v1156 = vsel %vm1154, %v1155, %v1066
      %v1157 = vshrl.u32 %v1156, 3
      %v1158 = vand.u32 %v1156, 7
      %v1159 = vsub.s32 0, %v1158
      %v1160 = vsel %vm1154, %v1159, %v1158
      %vm1161 = vcmp.lt.s32.totalorder %v1067, 0
      %v1162 = vsub.s32 0, %v1067
      %v1163 = vsel %vm1161, %v1162, %v1067
      %v1164 = vshrl.u32 %v1163, 3
      %v1165 = vand.u32 %v1163, 7
      %v1166 = vsub.s32 0, %v1165
      %v1167 = vsel %vm1161, %v1166, %v1165
      %vm1168 = vcmp.lt.s32.totalorder %v1068, 0
      %v1169 = vsub.s32 0, %v1068
      %v1170 = vsel %vm1168, %v1169, %v1068
      %v1171 = vshrl.u32 %v1170, 3
      %v1172 = vand.u32 %v1170, 7
      %v1173 = vsub.s32 0, %v1172
      %v1174 = vsel %vm1168, %v1173, %v1172
      %vm1175 = vcmp.lt.s32.totalorder %v1069, 0
      %v1176 = vsub.s32 0, %v1069
      %v1177 = vsel %vm1175, %v1176, %v1069
      %v1178 = vshrl.u32 %v1177, 3
      %v1179 = vand.u32 %v1177, 7
      %v1180 = vsub.s32 0, %v1179
      %v1181 = vsel %vm1175, %v1180, %v1179
      %vm1182 = vcmp.ne.s32.totalorder %v1076, 0
      %vm1183 = vcmp.ne.s32.totalorder %v1083, 0
      %vm1184 = vcmp.ne.s32.totalorder %v1090, 0
      %vm1185 = vcmp.ne.s32.totalorder %v1097, 0
      %vm1186 = vcmp.ne.s32.totalorder %v1104, 0
      %vm1187 = vcmp.ne.s32.totalorder %v1111, 0
      %vm1188 = vcmp.ne.s32.totalorder %v1118, 0
      %vm1189 = vcmp.ne.s32.totalorder %v1125, 0
      %vm1190 = vcmp.ne.s32.totalorder %v1132, 0
      %vm1191 = vcmp.ne.s32.totalorder %v1139, 0
      %vm1192 = vcmp.ne.s32.totalorder %v1146, 0
      %vm1193 = vcmp.ne.s32.totalorder %v1153, 0
      %vm1194 = vcmp.ne.s32.totalorder %v1160, 0
      %vm1195 = vcmp.ne.s32.totalorder %v1167, 0
      %vm1196 = vcmp.ne.s32.totalorder %v1174, 0
      %vm1197 = vcmp.ne.s32.totalorder %v1181, 0
      %vm1198 = vcmp.lt.s32.totalorder %v1076, 0
      %vm1199 = vcmp.lt.s32.totalorder %v1083, 0
      %vm1200 = vcmp.lt.s32.totalorder %v1090, 0
      %vm1201 = vcmp.lt.s32.totalorder %v1097, 0
      %vm1202 = vcmp.lt.s32.totalorder %v1104, 0
      %vm1203 = vcmp.lt.s32.totalorder %v1111, 0
      %vm1204 = vcmp.lt.s32.totalorder %v1118, 0
      %vm1205 = vcmp.lt.s32.totalorder %v1125, 0
      %vm1206 = vcmp.lt.s32.totalorder %v1132, 0
      %vm1207 = vcmp.lt.s32.totalorder %v1139, 0
      %vm1208 = vcmp.lt.s32.totalorder %v1146, 0
      %vm1209 = vcmp.lt.s32.totalorder %v1153, 0
      %vm1210 = vcmp.lt.s32.totalorder %v1160, 0
      %vm1211 = vcmp.lt.s32.totalorder %v1167, 0
      %vm1212 = vcmp.lt.s32.totalorder %v1174, 0
      %vm1213 = vcmp.lt.s32.totalorder %v1181, 0
      %vm1214 = vmand %vm1198, %vm1182
      %vm1215 = vmand %vm1199, %vm1183
      %vm1216 = vmand %vm1200, %vm1184
      %vm1217 = vmand %vm1201, %vm1185
      %vm1218 = vmand %vm1202, %vm1186
      %vm1219 = vmand %vm1203, %vm1187
      %vm1220 = vmand %vm1204, %vm1188
      %vm1221 = vmand %vm1205, %vm1189
      %vm1222 = vmand %vm1206, %vm1190
      %vm1223 = vmand %vm1207, %vm1191
      %vm1224 = vmand %vm1208, %vm1192
      %vm1225 = vmand %vm1209, %vm1193
      %vm1226 = vmand %vm1210, %vm1194
      %vm1227 = vmand %vm1211, %vm1195
      %vm1228 = vmand %vm1212, %vm1196
      %vm1229 = vmand %vm1213, %vm1197
      %v1230 = vadd.s32 %v1076, 8
      %v1231 = vadd.s32 %v1083, 8
      %v1232 = vadd.s32 %v1090, 8
      %v1233 = vadd.s32 %v1097, 8
      %v1234 = vadd.s32 %v1104, 8
      %v1235 = vadd.s32 %v1111, 8
      %v1236 = vadd.s32 %v1118, 8
      %v1237 = vadd.s32 %v1125, 8
      %v1238 = vadd.s32 %v1132, 8
      %v1239 = vadd.s32 %v1139, 8
      %v1240 = vadd.s32 %v1146, 8
      %v1241 = vadd.s32 %v1153, 8
      %v1242 = vadd.s32 %v1160, 8
      %v1243 = vadd.s32 %v1167, 8
      %v1244 = vadd.s32 %v1174, 8
      %v1245 = vadd.s32 %v1181, 8
      %v1246 = vsel %vm1214, %v1230, %v1076
      %v1247 = vsel %vm1215, %v1231, %v1083
      %v1248 = vsel %vm1216, %v1232, %v1090
      %v1249 = vsel %vm1217, %v1233, %v1097
      %v1250 = vsel %vm1218, %v1234, %v1104
      %v1251 = vsel %vm1219, %v1235, %v1111
      %v1252 = vsel %vm1220, %v1236, %v1118
      %v1253 = vsel %vm1221, %v1237, %v1125
      %v1254 = vsel %vm1222, %v1238, %v1132
      %v1255 = vsel %vm1223, %v1239, %v1139
      %v1256 = vsel %vm1224, %v1240, %v1146
      %v1257 = vsel %vm1225, %v1241, %v1153
      %v1258 = vsel %vm1226, %v1242, %v1160
      %v1259 = vsel %vm1227, %v1243, %v1167
      %v1260 = vsel %vm1228, %v1244, %v1174
      %v1261 = vsel %vm1229, %v1245, %v1181
      %vm1262 = vcmp.eq.s32.totalorder %v1246, 0
      %vm1263 = vcmp.eq.s32.totalorder %v1247, 0
      %vm1264 = vcmp.eq.s32.totalorder %v1248, 0
      %vm1265 = vcmp.eq.s32.totalorder %v1249, 0
      %vm1266 = vcmp.eq.s32.totalorder %v1250, 0
      %vm1267 = vcmp.eq.s32.totalorder %v1251, 0
      %vm1268 = vcmp.eq.s32.totalorder %v1252, 0
      %vm1269 = vcmp.eq.s32.totalorder %v1253, 0
      %vm1270 = vcmp.eq.s32.totalorder %v1254, 0
      %vm1271 = vcmp.eq.s32.totalorder %v1255, 0
      %vm1272 = vcmp.eq.s32.totalorder %v1256, 0
      %vm1273 = vcmp.eq.s32.totalorder %v1257, 0
      %vm1274 = vcmp.eq.s32.totalorder %v1258, 0
      %vm1275 = vcmp.eq.s32.totalorder %v1259, 0
      %vm1276 = vcmp.eq.s32.totalorder %v1260, 0
      %vm1277 = vcmp.eq.s32.totalorder %v1261, 0
      %vm1278 = vcmp.eq.s32.totalorder %v1246, 7
      %vm1279 = vcmp.eq.s32.totalorder %v1247, 7
      %vm1280 = vcmp.eq.s32.totalorder %v1248, 7
      %vm1281 = vcmp.eq.s32.totalorder %v1249, 7
      %vm1282 = vcmp.eq.s32.totalorder %v1250, 7
      %vm1283 = vcmp.eq.s32.totalorder %v1251, 7
      %vm1284 = vcmp.eq.s32.totalorder %v1252, 7
      %vm1285 = vcmp.eq.s32.totalorder %v1253, 7
      %vm1286 = vcmp.eq.s32.totalorder %v1254, 7
      %vm1287 = vcmp.eq.s32.totalorder %v1255, 7
      %vm1288 = vcmp.eq.s32.totalorder %v1256, 7
      %vm1289 = vcmp.eq.s32.totalorder %v1257, 7
      %vm1290 = vcmp.eq.s32.totalorder %v1258, 7
      %vm1291 = vcmp.eq.s32.totalorder %v1259, 7
      %vm1292 = vcmp.eq.s32.totalorder %v1260, 7
      %vm1293 = vcmp.eq.s32.totalorder %v1261, 7
      %v1294 = vrot.slane %v524, 7
      %v1295 = vrot.slane %v526, 7
      %v1296 = vrot.slane %v637, 7
      %v1297 = vrot.slane %v639, 7
      %v1298 = vrot.slane %v528, 7
      %v1299 = vrot.slane %v530, 7
      %v1300 = vrot.slane %v641, 7
      %v1301 = vrot.slane %v643, 7
      %v1302 = vrot.slane %v534, 7
      %v1303 = vrot.slane %v536, 7
      %v1304 = vrot.slane %v647, 7
      %v1305 = vrot.slane %v649, 7
      %v1306 = vrot.slane %v538, 7
      %v1307 = vrot.slane %v540, 7
      %v1308 = vrot.slane %v651, 7
      %v1309 = vrot.slane %v653, 7
      %v1310 = vrot.slane %v544, 7
      %v1311 = vrot.slane %v546, 7
      %v1312 = vrot.slane %v657, 7
      %v1313 = vrot.slane %v659, 7
      %v1314 = vrot.slane %v548, 7
      %v1315 = vrot.slane %v550, 7
      %v1316 = vrot.slane %v661, 7
      %v1317 = vrot.slane %v663, 7
      %v1318 = vrot.slane %v554, 7
      %v1319 = vrot.slane %v556, 7
      %v1320 = vrot.slane %v667, 7
      %v1321 = vrot.slane %v669, 7
      %v1322 = vrot.slane %v558, 7
      %v1323 = vrot.slane %v560, 7
      %v1324 = vrot.slane %v671, 7
      %v1325 = vrot.slane %v673, 7
      %v1326 = vrot.slane %v564, 7
      %v1327 = vrot.slane %v566, 7
      %v1328 = vrot.slane %v677, 7
      %v1329 = vrot.slane %v679, 7
      %v1330 = vrot.slane %v568, 7
      %v1331 = vrot.slane %v570, 7
      %v1332 = vrot.slane %v681, 7
      %v1333 = vrot.slane %v683, 7
      %v1334 = vrot.slane %v574, 7
      %v1335 = vrot.slane %v576, 7
      %v1336 = vrot.slane %v687, 7
      %v1337 = vrot.slane %v689, 7
      %v1338 = vrot.slane %v578, 7
      %v1339 = vrot.slane %v580, 7
      %v1340 = vrot.slane %v691, 7
      %v1341 = vrot.slane %v693, 7
      %v1342 = vrot.slane %v584, 7
      %v1343 = vrot.slane %v586, 7
      %v1344 = vrot.slane %v697, 7
      %v1345 = vrot.slane %v699, 7
      %v1346 = vrot.slane %v588, 7
      %v1347 = vrot.slane %v590, 7
      %v1348 = vrot.slane %v701, 7
      %v1349 = vrot.slane %v703, 7
      %v1350 = vrot.slane %v594, 7
      %v1351 = vrot.slane %v596, 7
      %v1352 = vrot.slane %v707, 7
      %v1353 = vrot.slane %v709, 7
      %v1354 = vrot.slane %v598, 7
      %v1355 = vrot.slane %v600, 7
      %v1356 = vrot.slane %v711, 7
      %v1357 = vrot.slane %v713, 7
      %vm1358 = vcmp.lt.s32.totalorder %v1054, 1
      %v1359 = vsel %vm1358, %v1350, %v1354
      %v1360 = vsel %vm1358, %v1351, %v1355
      %v1361 = vsel %vm1358, %v1352, %v1356
      %v1362 = vsel %vm1358, %v1353, %v1357
      %v1363 = vsel %vm1358, %v1346, %v1350
      %v1364 = vsel %vm1358, %v1347, %v1351
      %v1365 = vsel %vm1358, %v1348, %v1352
      %v1366 = vsel %vm1358, %v1349, %v1353
      %v1367 = vsel %vm1358, %v1342, %v1346
      %v1368 = vsel %vm1358, %v1343, %v1347
      %v1369 = vsel %vm1358, %v1344, %v1348
      %v1370 = vsel %vm1358, %v1345, %v1349
      %v1371 = vsel %vm1358, %v1338, %v1342
      %v1372 = vsel %vm1358, %v1339, %v1343
      %v1373 = vsel %vm1358, %v1340, %v1344
      %v1374 = vsel %vm1358, %v1341, %v1345
      %v1375 = vsel %vm1358, %v1334, %v1338
      %v1376 = vsel %vm1358, %v1335, %v1339
      %v1377 = vsel %vm1358, %v1336, %v1340
      %v1378 = vsel %vm1358, %v1337, %v1341
      %v1379 = vsel %vm1358, %v1330, %v1334
      %v1380 = vsel %vm1358, %v1331, %v1335
      %v1381 = vsel %vm1358, %v1332, %v1336
      %v1382 = vsel %vm1358, %v1333, %v1337
      %v1383 = vsel %vm1358, %v1326, %v1330
      %v1384 = vsel %vm1358, %v1327, %v1331
      %v1385 = vsel %vm1358, %v1328, %v1332
      %v1386 = vsel %vm1358, %v1329, %v1333
      %v1387 = vsel %vm1358, %v1322, %v1326
      %v1388 = vsel %vm1358, %v1323, %v1327
      %v1389 = vsel %vm1358, %v1324, %v1328
      %v1390 = vsel %vm1358, %v1325, %v1329
      %v1391 = vsel %vm1358, %v1318, %v1322
      %v1392 = vsel %vm1358, %v1319, %v1323
      %v1393 = vsel %vm1358, %v1320, %v1324
      %v1394 = vsel %vm1358, %v1321, %v1325
      %v1395 = vsel %vm1358, %v1314, %v1318
      %v1396 = vsel %vm1358, %v1315, %v1319
      %v1397 = vsel %vm1358, %v1316, %v1320
      %v1398 = vsel %vm1358, %v1317, %v1321
      %v1399 = vsel %vm1358, %v1310, %v1314
      %v1400 = vsel %vm1358, %v1311, %v1315
      %v1401 = vsel %vm1358, %v1312, %v1316
      %v1402 = vsel %vm1358, %v1313, %v1317
      %v1403 = vsel %vm1358, %v1306, %v1310
      %v1404 = vsel %vm1358, %v1307, %v1311
      %v1405 = vsel %vm1358, %v1308, %v1312
      %v1406 = vsel %vm1358, %v1309, %v1313
      %v1407 = vsel %vm1358, %v1302, %v1306
      %v1408 = vsel %vm1358, %v1303, %v1307
      %v1409 = vsel %vm1358, %v1304, %v1308
      %v1410 = vsel %vm1358, %v1305, %v1309
      %v1411 = vsel %vm1358, %v1298, %v1302
      %v1412 = vsel %vm1358, %v1299, %v1303
      %v1413 = vsel %vm1358, %v1300, %v1304
      %v1414 = vsel %vm1358, %v1301, %v1305
      %v1415 = vsel %vm1358, %v1294, %v1298
      %v1416 = vsel %vm1358, %v1295, %v1299
      %v1417 = vsel %vm1358, %v1296, %v1300
      %v1418 = vsel %vm1358, %v1297, %v1301
      %v1419 = vsel %vm1358, %v1354, %v1294
      %v1420 = vsel %vm1358, %v1355, %v1295
      %v1421 = vsel %vm1358, %v1356, %v1296
      %v1422 = vsel %vm1358, %v1357, %v1297
      %v1423 = vrot.slane %v862, 1
      %v1424 = vrot.slane %v864, 1
      %v1425 = vrot.slane %v975, 1
      %v1426 = vrot.slane %v977, 1
      %v1427 = vrot.slane %v866, 1
      %v1428 = vrot.slane %v868, 1
      %v1429 = vrot.slane %v979, 1
      %v1430 = vrot.slane %v981, 1
      %v1431 = vrot.slane %v872, 1
      %v1432 = vrot.slane %v874, 1
      %v1433 = vrot.slane %v985, 1
      %v1434 = vrot.slane %v987, 1
      %v1435 = vrot.slane %v876, 1
      %v1436 = vrot.slane %v878, 1
      %v1437 = vrot.slane %v989, 1
      %v1438 = vrot.slane %v991, 1
      %v1439 = vrot.slane %v882, 1
      %v1440 = vrot.slane %v884, 1
      %v1441 = vrot.slane %v995, 1
      %v1442 = vrot.slane %v997, 1
      %v1443 = vrot.slane %v886, 1
      %v1444 = vrot.slane %v888, 1
      %v1445 = vrot.slane %v999, 1
      %v1446 = vrot.slane %v1001, 1
      %v1447 = vrot.slane %v892, 1
      %v1448 = vrot.slane %v894, 1
      %v1449 = vrot.slane %v1005, 1
      %v1450 = vrot.slane %v1007, 1
      %v1451 = vrot.slane %v896, 1
      %v1452 = vrot.slane %v898, 1
      %v1453 = vrot.slane %v1009, 1
      %v1454 = vrot.slane %v1011, 1
      %v1455 = vrot.slane %v902, 1
      %v1456 = vrot.slane %v904, 1
      %v1457 = vrot.slane %v1015, 1
      %v1458 = vrot.slane %v1017, 1
      %v1459 = vrot.slane %v906, 1
      %v1460 = vrot.slane %v908, 1
      %v1461 = vrot.slane %v1019, 1
      %v1462 = vrot.slane %v1021, 1
      %v1463 = vrot.slane %v912, 1
      %v1464 = vrot.slane %v914, 1
      %v1465 = vrot.slane %v1025, 1
      %v1466 = vrot.slane %v1027, 1
      %v1467 = vrot.slane %v916, 1
      %v1468 = vrot.slane %v918, 1
      %v1469 = vrot.slane %v1029, 1
      %v1470 = vrot.slane %v1031, 1
      %v1471 = vrot.slane %v922, 1
      %v1472 = vrot.slane %v924, 1
      %v1473 = vrot.slane %v1035, 1
      %v1474 = vrot.slane %v1037, 1
      %v1475 = vrot.slane %v926, 1
      %v1476 = vrot.slane %v928, 1
      %v1477 = vrot.slane %v1039, 1
      %v1478 = vrot.slane %v1041, 1
      %v1479 = vrot.slane %v932, 1
      %v1480 = vrot.slane %v934, 1
      %v1481 = vrot.slane %v1045, 1
      %v1482 = vrot.slane %v1047, 1
      %v1483 = vrot.slane %v936, 1
      %v1484 = vrot.slane %v938, 1
      %v1485 = vrot.slane %v1049, 1
      %v1486 = vrot.slane %v1051, 1
      %vm1487 = vcmp.lt.s32.totalorder %v1054, 7
      %v1488 = vsel %vm1487, %v1479, %v1483
      %v1489 = vsel %vm1487, %v1480, %v1484
      %v1490 = vsel %vm1487, %v1481, %v1485
      %v1491 = vsel %vm1487, %v1482, %v1486
      %v1492 = vsel %vm1487, %v1475, %v1479
      %v1493 = vsel %vm1487, %v1476, %v1480
      %v1494 = vsel %vm1487, %v1477, %v1481
      %v1495 = vsel %vm1487, %v1478, %v1482
      %v1496 = vsel %vm1487, %v1471, %v1475
      %v1497 = vsel %vm1487, %v1472, %v1476
      %v1498 = vsel %vm1487, %v1473, %v1477
      %v1499 = vsel %vm1487, %v1474, %v1478
      %v1500 = vsel %vm1487, %v1467, %v1471
      %v1501 = vsel %vm1487, %v1468, %v1472
      %v1502 = vsel %vm1487, %v1469, %v1473
      %v1503 = vsel %vm1487, %v1470, %v1474
      %v1504 = vsel %vm1487, %v1463, %v1467
      %v1505 = vsel %vm1487, %v1464, %v1468
      %v1506 = vsel %vm1487, %v1465, %v1469
      %v1507 = vsel %vm1487, %v1466, %v1470
      %v1508 = vsel %vm1487, %v1459, %v1463
      %v1509 = vsel %vm1487, %v1460, %v1464
      %v1510 = vsel %vm1487, %v1461, %v1465
      %v1511 = vsel %vm1487, %v1462, %v1466
      %v1512 = vsel %vm1487, %v1455, %v1459
      %v1513 = vsel %vm1487, %v1456, %v1460
      %v1514 = vsel %vm1487, %v1457, %v1461
      %v1515 = vsel %vm1487, %v1458, %v1462
      %v1516 = vsel %vm1487, %v1451, %v1455
      %v1517 = vsel %vm1487, %v1452, %v1456
      %v1518 = vsel %vm1487, %v1453, %v1457
      %v1519 = vsel %vm1487, %v1454, %v1458
      %v1520 = vsel %vm1487, %v1447, %v1451
      %v1521 = vsel %vm1487, %v1448, %v1452
      %v1522 = vsel %vm1487, %v1449, %v1453
      %v1523 = vsel %vm1487, %v1450, %v1454
      %v1524 = vsel %vm1487, %v1443, %v1447
      %v1525 = vsel %vm1487, %v1444, %v1448
      %v1526 = vsel %vm1487, %v1445, %v1449
      %v1527 = vsel %vm1487, %v1446, %v1450
      %v1528 = vsel %vm1487, %v1439, %v1443
      %v1529 = vsel %vm1487, %v1440, %v1444
      %v1530 = vsel %vm1487, %v1441, %v1445
      %v1531 = vsel %vm1487, %v1442, %v1446
      %v1532 = vsel %vm1487, %v1435, %v1439
      %v1533 = vsel %vm1487, %v1436, %v1440
      %v1534 = vsel %vm1487, %v1437, %v1441
      %v1535 = vsel %vm1487, %v1438, %v1442
      %v1536 = vsel %vm1487, %v1431, %v1435
      %v1537 = vsel %vm1487, %v1432, %v1436
      %v1538 = vsel %vm1487, %v1433, %v1437
      %v1539 = vsel %vm1487, %v1434, %v1438
      %v1540 = vsel %vm1487, %v1427, %v1431
      %v1541 = vsel %vm1487, %v1428, %v1432
      %v1542 = vsel %vm1487, %v1429, %v1433
      %v1543 = vsel %vm1487, %v1430, %v1434
      %v1544 = vsel %vm1487, %v1423, %v1427
      %v1545 = vsel %vm1487, %v1424, %v1428
      %v1546 = vsel %vm1487, %v1425, %v1429
      %v1547 = vsel %vm1487, %v1426, %v1430
      %v1548 = vsel %vm1487, %v1483, %v1423
      %v1549 = vsel %vm1487, %v1484, %v1424
      %v1550 = vsel %vm1487, %v1485, %v1425
      %v1551 = vsel %vm1487, %v1486, %v1426
      %v1552 = vsel %vm1262, 1, 0
      %v1553 = vsel %vm1263, 1, 0
      %v1554 = vsel %vm1264, 1, 0
      %v1555 = vsel %vm1265, 1, 0
      %v1556 = vsel %vm1266, 1, 0
      %v1557 = vsel %vm1267, 1, 0
      %v1558 = vsel %vm1268, 1, 0
      %v1559 = vsel %vm1269, 1, 0
      %v1560 = vsel %vm1270, 1, 0
      %v1561 = vsel %vm1271, 1, 0
      %v1562 = vsel %vm1272, 1, 0
      %v1563 = vsel %vm1273, 1, 0
      %v1564 = vsel %vm1274, 1, 0
      %v1565 = vsel %vm1275, 1, 0
      %v1566 = vsel %vm1276, 1, 0
      %v1567 = vsel %vm1277, 1, 0
      %vm1568 = vcmp.eq.s32.totalorder %v1552, 1
      %vm1569 = vcmp.eq.s32.totalorder %v1553, 1
      %vm1570 = vcmp.eq.s32.totalorder %v1554, 1
      %vm1571 = vcmp.eq.s32.totalorder %v1555, 1
      %vm1572 = vcmp.eq.s32.totalorder %v1556, 1
      %vm1573 = vcmp.eq.s32.totalorder %v1557, 1
      %vm1574 = vcmp.eq.s32.totalorder %v1558, 1
      %vm1575 = vcmp.eq.s32.totalorder %v1559, 1
      %vm1576 = vcmp.eq.s32.totalorder %v1560, 1
      %vm1577 = vcmp.eq.s32.totalorder %v1561, 1
      %vm1578 = vcmp.eq.s32.totalorder %v1562, 1
      %vm1579 = vcmp.eq.s32.totalorder %v1563, 1
      %vm1580 = vcmp.eq.s32.totalorder %v1564, 1
      %vm1581 = vcmp.eq.s32.totalorder %v1565, 1
      %vm1582 = vcmp.eq.s32.totalorder %v1566, 1
      %vm1583 = vcmp.eq.s32.totalorder %v1567, 1
      %v1584 = vsel %vm1568, 0.0, %v1419
      %v1585 = vsel %vm1568, 0.0, %v1420
      %v1586 = vsel %vm1568, 0.0, %v1421
      %v1587 = vsel %vm1568, 0.0, %v1422
      %v1588 = vsel %vm1569, 0.0, %v1415
      %v1589 = vsel %vm1569, 0.0, %v1416
      %v1590 = vsel %vm1569, 0.0, %v1417
      %v1591 = vsel %vm1569, 0.0, %v1418
      %v1592 = vsel %vm1570, 0.0, %v1411
      %v1593 = vsel %vm1570, 0.0, %v1412
      %v1594 = vsel %vm1570, 0.0, %v1413
      %v1595 = vsel %vm1570, 0.0, %v1414
      %v1596 = vsel %vm1571, 0.0, %v1407
      %v1597 = vsel %vm1571, 0.0, %v1408
      %v1598 = vsel %vm1571, 0.0, %v1409
      %v1599 = vsel %vm1571, 0.0, %v1410
      %v1600 = vsel %vm1572, 0.0, %v1403
      %v1601 = vsel %vm1572, 0.0, %v1404
      %v1602 = vsel %vm1572, 0.0, %v1405
      %v1603 = vsel %vm1572, 0.0, %v1406
      %v1604 = vsel %vm1573, 0.0, %v1399
      %v1605 = vsel %vm1573, 0.0, %v1400
      %v1606 = vsel %vm1573, 0.0, %v1401
      %v1607 = vsel %vm1573, 0.0, %v1402
      %v1608 = vsel %vm1574, 0.0, %v1395
      %v1609 = vsel %vm1574, 0.0, %v1396
      %v1610 = vsel %vm1574, 0.0, %v1397
      %v1611 = vsel %vm1574, 0.0, %v1398
      %v1612 = vsel %vm1575, 0.0, %v1391
      %v1613 = vsel %vm1575, 0.0, %v1392
      %v1614 = vsel %vm1575, 0.0, %v1393
      %v1615 = vsel %vm1575, 0.0, %v1394
      %v1616 = vsel %vm1576, 0.0, %v1387
      %v1617 = vsel %vm1576, 0.0, %v1388
      %v1618 = vsel %vm1576, 0.0, %v1389
      %v1619 = vsel %vm1576, 0.0, %v1390
      %v1620 = vsel %vm1577, 0.0, %v1383
      %v1621 = vsel %vm1577, 0.0, %v1384
      %v1622 = vsel %vm1577, 0.0, %v1385
      %v1623 = vsel %vm1577, 0.0, %v1386
      %v1624 = vsel %vm1578, 0.0, %v1379
      %v1625 = vsel %vm1578, 0.0, %v1380
      %v1626 = vsel %vm1578, 0.0, %v1381
      %v1627 = vsel %vm1578, 0.0, %v1382
      %v1628 = vsel %vm1579, 0.0, %v1375
      %v1629 = vsel %vm1579, 0.0, %v1376
      %v1630 = vsel %vm1579, 0.0, %v1377
      %v1631 = vsel %vm1579, 0.0, %v1378
      %v1632 = vsel %vm1580, 0.0, %v1371
      %v1633 = vsel %vm1580, 0.0, %v1372
      %v1634 = vsel %vm1580, 0.0, %v1373
      %v1635 = vsel %vm1580, 0.0, %v1374
      %v1636 = vsel %vm1581, 0.0, %v1367
      %v1637 = vsel %vm1581, 0.0, %v1368
      %v1638 = vsel %vm1581, 0.0, %v1369
      %v1639 = vsel %vm1581, 0.0, %v1370
      %v1640 = vsel %vm1582, 0.0, %v1363
      %v1641 = vsel %vm1582, 0.0, %v1364
      %v1642 = vsel %vm1582, 0.0, %v1365
      %v1643 = vsel %vm1582, 0.0, %v1366
      %v1644 = vsel %vm1583, 0.0, %v1359
      %v1645 = vsel %vm1583, 0.0, %v1360
      %v1646 = vsel %vm1583, 0.0, %v1361
      %v1647 = vsel %vm1583, 0.0, %v1362
      %v1664 = vunpack.c.l.b16 %v715
      %v1665 = vunpack.c.h.b16 %v715
      %v1666 = vunpack.c.l.b16 %v716
      %v1667 = vunpack.c.h.b16 %v716
      %v1668 = vunpack.c.l.b16 %v717
      %v1669 = vunpack.c.h.b16 %v717
      %v1670 = vunpack.c.l.b16 %v718
      %v1671 = vunpack.c.h.b16 %v718
      %v1672 = vunpack.c.l.b16 %v719
      %v1673 = vunpack.c.h.b16 %v719
      %v1674 = vunpack.c.l.b16 %v720
      %v1675 = vunpack.c.h.b16 %v720
      %v1676 = vunpack.c.l.b16 %v721
      %v1677 = vunpack.c.h.b16 %v721
      %v1678 = vunpack.c.l.b16 %v722
      %v1679 = vunpack.c.h.b16 %v722
      %v1680 = vunpack.c.l.b16 %v723
      %v1681 = vunpack.c.h.b16 %v723
      %v1682 = vunpack.c.l.b16 %v724
      %v1683 = vunpack.c.h.b16 %v724
      %v1684 = vunpack.c.l.b16 %v725
      %v1685 = vunpack.c.h.b16 %v725
      %v1686 = vunpack.c.l.b16 %v726
      %v1687 = vunpack.c.h.b16 %v726
      %v1688 = vunpack.c.l.b16 %v727
      %v1689 = vunpack.c.h.b16 %v727
      %v1690 = vunpack.c.l.b16 %v728
      %v1691 = vunpack.c.h.b16 %v728
      %v1692 = vunpack.c.l.b16 %v729
      %v1693 = vunpack.c.h.b16 %v729
      %v1694 = vunpack.c.l.b16 %v730
      %v1695 = vunpack.c.h.b16 %v730
      %v1696 = vpack.c.b16 %v1668, %v1664
      %v1697 = vpack.c.b16 %v1669, %v1665
      %v1698 = vpack.c.b16 %v1670, %v1666
      %v1699 = vpack.c.b16 %v1671, %v1667
      %v1700 = vpack.c.b16 %v1676, %v1672
      %v1701 = vpack.c.b16 %v1677, %v1673
      %v1702 = vpack.c.b16 %v1678, %v1674
      %v1703 = vpack.c.b16 %v1679, %v1675
      %v1704 = vpack.c.b16 %v1684, %v1680
      %v1705 = vpack.c.b16 %v1685, %v1681
      %v1706 = vpack.c.b16 %v1686, %v1682
      %v1707 = vpack.c.b16 %v1687, %v1683
      %v1708 = vpack.c.b16 %v1692, %v1688
      %v1709 = vpack.c.b16 %v1693, %v1689
      %v1710 = vpack.c.b16 %v1694, %v1690
      %v1711 = vpack.c.b16 %v1695, %v1691
      %1728 = vmatprep.subr.bf16.mxu0 %v1697
      %1729 = vmatpush1.bf16.msra.mxu0 %v1696
      %1730 = vmatprep.subr.bf16.mxu0 %v1701
      %1731 = vmatpush1.bf16.msra.mxu0 %v1700
      %1732 = vmatprep.subr.bf16.mxu0 %v1705
      %1733 = vmatpush1.bf16.msra.mxu0 %v1704
      %1734 = vmatprep.subr.bf16.mxu0 %v1709
      %1735 = vmatpush1.bf16.msra.mxu0 %v1708
      %1736 = vmatprep.subr.bf16.mxu0 0
      %1737 = vmatpush1.bf16.msra.mxu0 0
      %1738 = vmatprep.subr.bf16.mxu0 0
      %1739 = vmatpush1.bf16.msra.mxu0 0
      %1740 = vmatprep.subr.bf16.mxu0 0
      %1741 = vmatpush1.bf16.msra.mxu0 0
      %1742 = vmatprep.subr.bf16.mxu0 0
      %1743 = vmatpush1.bf16.msra.mxu0 0
      %1744 = vmatprep.subr.bf16.mxu0 0
      %1745 = vmatpush1.bf16.msra.mxu0 0
      %1746 = vmatprep.subr.bf16.mxu0 0
      %1747 = vmatpush1.bf16.msra.mxu0 0
      %1748 = vmatprep.subr.bf16.mxu0 0
      %1749 = vmatpush1.bf16.msra.mxu0 0
      %1750 = vmatprep.subr.bf16.mxu0 0
      %1751 = vmatpush1.bf16.msra.mxu0 0
      %1752 = vmatprep.subr.bf16.mxu0 0
      %1753 = vmatpush1.bf16.msra.mxu0 0
      %1754 = vmatprep.subr.bf16.mxu0 0
      %1755 = vmatpush1.bf16.msra.mxu0 0
      %1756 = vmatprep.subr.bf16.mxu0 0
      %1757 = vmatpush1.bf16.msra.mxu0 0
      %1758 = vmatprep.subr.bf16.mxu0 0
      %1759 = vmatpush1.bf16.msra.mxu0 0
      %1760 = vmatprep.mubr.bf16.mxu0 0
      %1761 = vmatmul.mubr.bf16.gmra.mrb[0].mxu0 %v466
      %v1762 = vpop.f32.mrb[0].mxu0
      %v1763 = vadd.f32 %v1584, %v1762
      %v1764 = vpop.f32.mrb[0].mxu0
      %v1765 = vadd.f32 %v1585, %v1764
      %v1766 = vpop.f32.mrb[0].mxu0
      %v1767 = vadd.f32 %v1588, %v1766
      %v1768 = vpop.f32.mrb[0].mxu0
      %v1769 = vadd.f32 %v1589, %v1768
      %1770 = vmatprep.mubr.bf16.mxu0 0
      %1771 = vmatmul.mubr.bf16.gmra.mrb[0].mxu0 %v469
      %v1772 = vpop.f32.mrb[0].mxu0
      %v1773 = vadd.f32 %v1592, %v1772
      %v1774 = vpop.f32.mrb[0].mxu0
      %v1775 = vadd.f32 %v1593, %v1774
      %v1776 = vpop.f32.mrb[0].mxu0
      %v1777 = vadd.f32 %v1596, %v1776
      %v1778 = vpop.f32.mrb[0].mxu0
      %v1779 = vadd.f32 %v1597, %v1778
      %1780 = vmatprep.mubr.bf16.mxu0 0
      %1781 = vmatmul.mubr.bf16.gmra.mrb[0].mxu0 %v472
      %v1782 = vpop.f32.mrb[0].mxu0
      %v1783 = vadd.f32 %v1600, %v1782
      %v1784 = vpop.f32.mrb[0].mxu0
      %v1785 = vadd.f32 %v1601, %v1784
      %v1786 = vpop.f32.mrb[0].mxu0
      %v1787 = vadd.f32 %v1604, %v1786
      %v1788 = vpop.f32.mrb[0].mxu0
      %v1789 = vadd.f32 %v1605, %v1788
      %1790 = vmatprep.mubr.bf16.mxu0 0
      %1791 = vmatmul.mubr.bf16.gmra.mrb[0].mxu0 %v475
      %v1792 = vpop.f32.mrb[0].mxu0
      %v1793 = vadd.f32 %v1608, %v1792
      %v1794 = vpop.f32.mrb[0].mxu0
      %v1795 = vadd.f32 %v1609, %v1794
      %v1796 = vpop.f32.mrb[0].mxu0
      %v1797 = vadd.f32 %v1612, %v1796
      %v1798 = vpop.f32.mrb[0].mxu0
      %v1799 = vadd.f32 %v1613, %v1798
      %1800 = vmatprep.mubr.bf16.mxu0 0
      %1801 = vmatmul.mubr.bf16.gmra.mrb[0].mxu0 %v478
      %v1802 = vpop.f32.mrb[0].mxu0
      %v1803 = vadd.f32 %v1616, %v1802
      %v1804 = vpop.f32.mrb[0].mxu0
      %v1805 = vadd.f32 %v1617, %v1804
      %v1806 = vpop.f32.mrb[0].mxu0
      %v1807 = vadd.f32 %v1620, %v1806
      %v1808 = vpop.f32.mrb[0].mxu0
      %v1809 = vadd.f32 %v1621, %v1808
      %1810 = vmatprep.mubr.bf16.mxu0 0
      %1811 = vmatmul.mubr.bf16.gmra.mrb[0].mxu0 %v481
      %v1812 = vpop.f32.mrb[0].mxu0
      %v1813 = vadd.f32 %v1624, %v1812
      %v1814 = vpop.f32.mrb[0].mxu0
      %v1815 = vadd.f32 %v1625, %v1814
      %v1816 = vpop.f32.mrb[0].mxu0
      %v1817 = vadd.f32 %v1628, %v1816
      %v1818 = vpop.f32.mrb[0].mxu0
      %v1819 = vadd.f32 %v1629, %v1818
      %1820 = vmatprep.mubr.bf16.mxu0 0
      %1821 = vmatmul.mubr.bf16.gmra.mrb[0].mxu0 %v484
      %v1822 = vpop.f32.mrb[0].mxu0
      %v1823 = vadd.f32 %v1632, %v1822
      %v1824 = vpop.f32.mrb[0].mxu0
      %v1825 = vadd.f32 %v1633, %v1824
      %v1826 = vpop.f32.mrb[0].mxu0
      %v1827 = vadd.f32 %v1636, %v1826
      %v1828 = vpop.f32.mrb[0].mxu0
      %v1829 = vadd.f32 %v1637, %v1828
      %1830 = vmatprep.mubr.bf16.mxu0 0
      %1831 = vmatmul.mubr.bf16.gmra.mrb[0].mxu0 %v487
      %v1832 = vpop.f32.mrb[0].mxu0
      %v1833 = vadd.f32 %v1640, %v1832
      %v1834 = vpop.f32.mrb[0].mxu0
      %v1835 = vadd.f32 %v1641, %v1834
      %v1836 = vpop.f32.mrb[0].mxu0
      %v1837 = vadd.f32 %v1644, %v1836
      %v1838 = vpop.f32.mrb[0].mxu0
      %v1839 = vadd.f32 %v1645, %v1838
      %1840 = vdwg.mxu0
      %1841 = vmatprep.subr.bf16.mxu0 %v1699
      %1842 = vmatpush1.bf16.msra.mxu0 %v1698
      %1843 = vmatprep.subr.bf16.mxu0 %v1703
      %1844 = vmatpush1.bf16.msra.mxu0 %v1702
      %1845 = vmatprep.subr.bf16.mxu0 %v1707
      %1846 = vmatpush1.bf16.msra.mxu0 %v1706
      %1847 = vmatprep.subr.bf16.mxu0 %v1711
      %1848 = vmatpush1.bf16.msra.mxu0 %v1710
      %1849 = vmatprep.subr.bf16.mxu0 0
      %1850 = vmatpush1.bf16.msra.mxu0 0
      %1851 = vmatprep.subr.bf16.mxu0 0
      %1852 = vmatpush1.bf16.msra.mxu0 0
      %1853 = vmatprep.subr.bf16.mxu0 0
      %1854 = vmatpush1.bf16.msra.mxu0 0
      %1855 = vmatprep.subr.bf16.mxu0 0
      %1856 = vmatpush1.bf16.msra.mxu0 0
      %1857 = vmatprep.subr.bf16.mxu0 0
      %1858 = vmatpush1.bf16.msra.mxu0 0
      %1859 = vmatprep.subr.bf16.mxu0 0
      %1860 = vmatpush1.bf16.msra.mxu0 0
      %1861 = vmatprep.subr.bf16.mxu0 0
      %1862 = vmatpush1.bf16.msra.mxu0 0
      %1863 = vmatprep.subr.bf16.mxu0 0
      %1864 = vmatpush1.bf16.msra.mxu0 0
      %1865 = vmatprep.subr.bf16.mxu0 0
      %1866 = vmatpush1.bf16.msra.mxu0 0
      %1867 = vmatprep.subr.bf16.mxu0 0
      %1868 = vmatpush1.bf16.msra.mxu0 0
      %1869 = vmatprep.subr.bf16.mxu0 0
      %1870 = vmatpush1.bf16.msra.mxu0 0
      %1871 = vmatprep.subr.bf16.mxu0 0
      %1872 = vmatpush1.bf16.msra.mxu0 0
      %1873 = vmatprep.mubr.bf16.mxu0 0
      %1874 = vmatmul.mubr.bf16.gmra.mrb[0].mxu0 %v466
      %v1875 = vpop.f32.mrb[0].mxu0
      %v1876 = vadd.f32 %v1586, %v1875
      %v1877 = vpop.f32.mrb[0].mxu0
      %v1878 = vadd.f32 %v1587, %v1877
      %v1879 = vpop.f32.mrb[0].mxu0
      %v1880 = vadd.f32 %v1590, %v1879
      %v1881 = vpop.f32.mrb[0].mxu0
      %v1882 = vadd.f32 %v1591, %v1881
      %1883 = vmatprep.mubr.bf16.mxu0 0
      %1884 = vmatmul.mubr.bf16.gmra.mrb[0].mxu0 %v469
      %v1885 = vpop.f32.mrb[0].mxu0
      %v1886 = vadd.f32 %v1594, %v1885
      %v1887 = vpop.f32.mrb[0].mxu0
      %v1888 = vadd.f32 %v1595, %v1887
      %v1889 = vpop.f32.mrb[0].mxu0
      %v1890 = vadd.f32 %v1598, %v1889
      %v1891 = vpop.f32.mrb[0].mxu0
      %v1892 = vadd.f32 %v1599, %v1891
      %1893 = vmatprep.mubr.bf16.mxu0 0
      %1894 = vmatmul.mubr.bf16.gmra.mrb[0].mxu0 %v472
      %v1895 = vpop.f32.mrb[0].mxu0
      %v1896 = vadd.f32 %v1602, %v1895
      %v1897 = vpop.f32.mrb[0].mxu0
      %v1898 = vadd.f32 %v1603, %v1897
      %v1899 = vpop.f32.mrb[0].mxu0
      %v1900 = vadd.f32 %v1606, %v1899
      %v1901 = vpop.f32.mrb[0].mxu0
      %v1902 = vadd.f32 %v1607, %v1901
      %1903 = vmatprep.mubr.bf16.mxu0 0
      %1904 = vmatmul.mubr.bf16.gmra.mrb[0].mxu0 %v475
      %v1905 = vpop.f32.mrb[0].mxu0
      %v1906 = vadd.f32 %v1610, %v1905
      %v1907 = vpop.f32.mrb[0].mxu0
      %v1908 = vadd.f32 %v1611, %v1907
      %v1909 = vpop.f32.mrb[0].mxu0
      %v1910 = vadd.f32 %v1614, %v1909
      %v1911 = vpop.f32.mrb[0].mxu0
      %v1912 = vadd.f32 %v1615, %v1911
      %1913 = vmatprep.mubr.bf16.mxu0 0
      %1914 = vmatmul.mubr.bf16.gmra.mrb[0].mxu0 %v478
      %v1915 = vpop.f32.mrb[0].mxu0
      %v1916 = vadd.f32 %v1618, %v1915
      %v1917 = vpop.f32.mrb[0].mxu0
      %v1918 = vadd.f32 %v1619, %v1917
      %v1919 = vpop.f32.mrb[0].mxu0
      %v1920 = vadd.f32 %v1622, %v1919
      %v1921 = vpop.f32.mrb[0].mxu0
      %v1922 = vadd.f32 %v1623, %v1921
      %1923 = vmatprep.mubr.bf16.mxu0 0
      %1924 = vmatmul.mubr.bf16.gmra.mrb[0].mxu0 %v481
      %v1925 = vpop.f32.mrb[0].mxu0
      %v1926 = vadd.f32 %v1626, %v1925
      %v1927 = vpop.f32.mrb[0].mxu0
      %v1928 = vadd.f32 %v1627, %v1927
      %v1929 = vpop.f32.mrb[0].mxu0
      %v1930 = vadd.f32 %v1630, %v1929
      %v1931 = vpop.f32.mrb[0].mxu0
      %v1932 = vadd.f32 %v1631, %v1931
      %1933 = vmatprep.mubr.bf16.mxu0 0
      %1934 = vmatmul.mubr.bf16.gmra.mrb[0].mxu0 %v484
      %v1935 = vpop.f32.mrb[0].mxu0
      %v1936 = vadd.f32 %v1634, %v1935
      %v1937 = vpop.f32.mrb[0].mxu0
      %v1938 = vadd.f32 %v1635, %v1937
      %v1939 = vpop.f32.mrb[0].mxu0
      %v1940 = vadd.f32 %v1638, %v1939
      %v1941 = vpop.f32.mrb[0].mxu0
      %v1942 = vadd.f32 %v1639, %v1941
      %1943 = vmatprep.mubr.bf16.mxu0 0
      %1944 = vmatmul.mubr.bf16.gmra.mrb[0].mxu0 %v487
      %v1945 = vpop.f32.mrb[0].mxu0
      %v1946 = vadd.f32 %v1642, %v1945
      %v1947 = vpop.f32.mrb[0].mxu0
      %v1948 = vadd.f32 %v1643, %v1947
      %v1949 = vpop.f32.mrb[0].mxu0
      %v1950 = vadd.f32 %v1646, %v1949
      %v1951 = vpop.f32.mrb[0].mxu0
      %v1952 = vadd.f32 %v1647, %v1951
      %1953 = vdwg.mxu0
      %v1954 = vsel %vm1278, 1, 0
      %v1955 = vsel %vm1279, 1, 0
      %v1956 = vsel %vm1280, 1, 0
      %v1957 = vsel %vm1281, 1, 0
      %v1958 = vsel %vm1282, 1, 0
      %v1959 = vsel %vm1283, 1, 0
      %v1960 = vsel %vm1284, 1, 0
      %v1961 = vsel %vm1285, 1, 0
      %v1962 = vsel %vm1286, 1, 0
      %v1963 = vsel %vm1287, 1, 0
      %v1964 = vsel %vm1288, 1, 0
      %v1965 = vsel %vm1289, 1, 0
      %v1966 = vsel %vm1290, 1, 0
      %v1967 = vsel %vm1291, 1, 0
      %v1968 = vsel %vm1292, 1, 0
      %v1969 = vsel %vm1293, 1, 0
      %vm1970 = vcmp.eq.s32.totalorder %v1954, 1
      %vm1971 = vcmp.eq.s32.totalorder %v1955, 1
      %vm1972 = vcmp.eq.s32.totalorder %v1956, 1
      %vm1973 = vcmp.eq.s32.totalorder %v1957, 1
      %vm1974 = vcmp.eq.s32.totalorder %v1958, 1
      %vm1975 = vcmp.eq.s32.totalorder %v1959, 1
      %vm1976 = vcmp.eq.s32.totalorder %v1960, 1
      %vm1977 = vcmp.eq.s32.totalorder %v1961, 1
      %vm1978 = vcmp.eq.s32.totalorder %v1962, 1
      %vm1979 = vcmp.eq.s32.totalorder %v1963, 1
      %vm1980 = vcmp.eq.s32.totalorder %v1964, 1
      %vm1981 = vcmp.eq.s32.totalorder %v1965, 1
      %vm1982 = vcmp.eq.s32.totalorder %v1966, 1
      %vm1983 = vcmp.eq.s32.totalorder %v1967, 1
      %vm1984 = vcmp.eq.s32.totalorder %v1968, 1
      %vm1985 = vcmp.eq.s32.totalorder %v1969, 1
      %v1986 = vsel %vm1970, 0.0, %v1544
      %v1987 = vsel %vm1970, 0.0, %v1545
      %v1988 = vsel %vm1970, 0.0, %v1546
      %v1989 = vsel %vm1970, 0.0, %v1547
      %v1990 = vsel %vm1971, 0.0, %v1540
      %v1991 = vsel %vm1971, 0.0, %v1541
      %v1992 = vsel %vm1971, 0.0, %v1542
      %v1993 = vsel %vm1971, 0.0, %v1543
      %v1994 = vsel %vm1972, 0.0, %v1536
      %v1995 = vsel %vm1972, 0.0, %v1537
      %v1996 = vsel %vm1972, 0.0, %v1538
      %v1997 = vsel %vm1972, 0.0, %v1539
      %v1998 = vsel %vm1973, 0.0, %v1532
      %v1999 = vsel %vm1973, 0.0, %v1533
      %v2000 = vsel %vm1973, 0.0, %v1534
      %v2001 = vsel %vm1973, 0.0, %v1535
      %v2002 = vsel %vm1974, 0.0, %v1528
      %v2003 = vsel %vm1974, 0.0, %v1529
      %v2004 = vsel %vm1974, 0.0, %v1530
      %v2005 = vsel %vm1974, 0.0, %v1531
      %v2006 = vsel %vm1975, 0.0, %v1524
      %v2007 = vsel %vm1975, 0.0, %v1525
      %v2008 = vsel %vm1975, 0.0, %v1526
      %v2009 = vsel %vm1975, 0.0, %v1527
      %v2010 = vsel %vm1976, 0.0, %v1520
      %v2011 = vsel %vm1976, 0.0, %v1521
      %v2012 = vsel %vm1976, 0.0, %v1522
      %v2013 = vsel %vm1976, 0.0, %v1523
      %v2014 = vsel %vm1977, 0.0, %v1516
      %v2015 = vsel %vm1977, 0.0, %v1517
      %v2016 = vsel %vm1977, 0.0, %v1518
      %v2017 = vsel %vm1977, 0.0, %v1519
      %v2018 = vsel %vm1978, 0.0, %v1512
      %v2019 = vsel %vm1978, 0.0, %v1513
      %v2020 = vsel %vm1978, 0.0, %v1514
      %v2021 = vsel %vm1978, 0.0, %v1515
      %v2022 = vsel %vm1979, 0.0, %v1508
      %v2023 = vsel %vm1979, 0.0, %v1509
      %v2024 = vsel %vm1979, 0.0, %v1510
      %v2025 = vsel %vm1979, 0.0, %v1511
      %v2026 = vsel %vm1980, 0.0, %v1504
      %v2027 = vsel %vm1980, 0.0, %v1505
      %v2028 = vsel %vm1980, 0.0, %v1506
      %v2029 = vsel %vm1980, 0.0, %v1507
      %v2030 = vsel %vm1981, 0.0, %v1500
      %v2031 = vsel %vm1981, 0.0, %v1501
      %v2032 = vsel %vm1981, 0.0, %v1502
      %v2033 = vsel %vm1981, 0.0, %v1503
      %v2034 = vsel %vm1982, 0.0, %v1496
      %v2035 = vsel %vm1982, 0.0, %v1497
      %v2036 = vsel %vm1982, 0.0, %v1498
      %v2037 = vsel %vm1982, 0.0, %v1499
      %v2038 = vsel %vm1983, 0.0, %v1492
      %v2039 = vsel %vm1983, 0.0, %v1493
      %v2040 = vsel %vm1983, 0.0, %v1494
      %v2041 = vsel %vm1983, 0.0, %v1495
      %v2042 = vsel %vm1984, 0.0, %v1488
      %v2043 = vsel %vm1984, 0.0, %v1489
      %v2044 = vsel %vm1984, 0.0, %v1490
      %v2045 = vsel %vm1984, 0.0, %v1491
      %v2046 = vsel %vm1985, 0.0, %v1548
      %v2047 = vsel %vm1985, 0.0, %v1549
      %v2048 = vsel %vm1985, 0.0, %v1550
      %v2049 = vsel %vm1985, 0.0, %v1551
      %v2050 = vadd.f32 %v1763, %v1986
      %v2051 = vadd.f32 %v1765, %v1987
      %v2052 = vadd.f32 %v1876, %v1988
      %v2053 = vadd.f32 %v1878, %v1989
      %v2054 = vadd.f32 %v1767, %v1990
      %v2055 = vadd.f32 %v1769, %v1991
      %v2056 = vadd.f32 %v1880, %v1992
      %v2057 = vadd.f32 %v1882, %v1993
      %v2058 = vadd.f32 %v1773, %v1994
      %v2059 = vadd.f32 %v1775, %v1995
      %v2060 = vadd.f32 %v1886, %v1996
      %v2061 = vadd.f32 %v1888, %v1997
      %v2062 = vadd.f32 %v1777, %v1998
      %v2063 = vadd.f32 %v1779, %v1999
      %v2064 = vadd.f32 %v1890, %v2000
      %v2065 = vadd.f32 %v1892, %v2001
      %v2066 = vadd.f32 %v1783, %v2002
      %v2067 = vadd.f32 %v1785, %v2003
      %v2068 = vadd.f32 %v1896, %v2004
      %v2069 = vadd.f32 %v1898, %v2005
      %v2070 = vadd.f32 %v1787, %v2006
      %v2071 = vadd.f32 %v1789, %v2007
      %v2072 = vadd.f32 %v1900, %v2008
      %v2073 = vadd.f32 %v1902, %v2009
      %v2074 = vadd.f32 %v1793, %v2010
      %v2075 = vadd.f32 %v1795, %v2011
      %v2076 = vadd.f32 %v1906, %v2012
      %v2077 = vadd.f32 %v1908, %v2013
      %v2078 = vadd.f32 %v1797, %v2014
      %v2079 = vadd.f32 %v1799, %v2015
      %v2080 = vadd.f32 %v1910, %v2016
      %v2081 = vadd.f32 %v1912, %v2017
      %v2082 = vadd.f32 %v1803, %v2018
      %v2083 = vadd.f32 %v1805, %v2019
      %v2084 = vadd.f32 %v1916, %v2020
      %v2085 = vadd.f32 %v1918, %v2021
      %v2086 = vadd.f32 %v1807, %v2022
      %v2087 = vadd.f32 %v1809, %v2023
      %v2088 = vadd.f32 %v1920, %v2024
      %v2089 = vadd.f32 %v1922, %v2025
      %v2090 = vadd.f32 %v1813, %v2026
      %v2091 = vadd.f32 %v1815, %v2027
      %v2092 = vadd.f32 %v1926, %v2028
      %v2093 = vadd.f32 %v1928, %v2029
      %v2094 = vadd.f32 %v1817, %v2030
      %v2095 = vadd.f32 %v1819, %v2031
      %v2096 = vadd.f32 %v1930, %v2032
      %v2097 = vadd.f32 %v1932, %v2033
      %v2098 = vadd.f32 %v1823, %v2034
      %v2099 = vadd.f32 %v1825, %v2035
      %v2100 = vadd.f32 %v1936, %v2036
      %v2101 = vadd.f32 %v1938, %v2037
      %v2102 = vadd.f32 %v1827, %v2038
      %v2103 = vadd.f32 %v1829, %v2039
      %v2104 = vadd.f32 %v1940, %v2040
      %v2105 = vadd.f32 %v1942, %v2041
      %v2106 = vadd.f32 %v1833, %v2042
      %v2107 = vadd.f32 %v1835, %v2043
      %v2108 = vadd.f32 %v1946, %v2044
      %v2109 = vadd.f32 %v1948, %v2045
      %v2110 = vadd.f32 %v1837, %v2046
      %v2111 = vadd.f32 %v1839, %v2047
      %v2112 = vadd.f32 %v1950, %v2048
      %v2113 = vadd.f32 %v1952, %v2049
      %v2114 = vld [vmem:[%s4] sm:$0xf]
      %v2116 = vlaneseq
      %v2117 = vshrl.u32 %v2116, 7
      %v2118 = vsub.s32 0, %v2117
      %v2119 = vrot.slane %v2114, %v2118
      %v2120 = vlaneseq
      %v2121 = vshrl.u32 %v2120, 7
      %v2122 = vsub.s32 1, %v2121
      %v2123 = vrot.slane %v2114, %v2122
      %v2124 = vlaneseq
      %v2125 = vshrl.u32 %v2124, 7
      %v2126 = vsub.s32 2, %v2125
      %v2127 = vrot.slane %v2114, %v2126
      %v2128 = vlaneseq
      %v2129 = vshrl.u32 %v2128, 7
      %v2130 = vsub.s32 3, %v2129
      %v2131 = vrot.slane %v2114, %v2130
      %v2136 = vadd.f32 %v2050, %v2119
      %v2137 = vadd.f32 %v2051, %v2123
      %v2138 = vadd.f32 %v2052, %v2127
      %v2139 = vadd.f32 %v2053, %v2131
      %v2140 = vadd.f32 %v2054, %v2119
      %v2141 = vadd.f32 %v2055, %v2123
      %v2142 = vadd.f32 %v2056, %v2127
      %v2143 = vadd.f32 %v2057, %v2131
      %v2144 = vadd.f32 %v2058, %v2119
      %v2145 = vadd.f32 %v2059, %v2123
      %v2146 = vadd.f32 %v2060, %v2127
      %v2147 = vadd.f32 %v2061, %v2131
      %v2148 = vadd.f32 %v2062, %v2119
      %v2149 = vadd.f32 %v2063, %v2123
      %v2150 = vadd.f32 %v2064, %v2127
      %v2151 = vadd.f32 %v2065, %v2131
      %v2152 = vadd.f32 %v2066, %v2119
      %v2153 = vadd.f32 %v2067, %v2123
      %v2154 = vadd.f32 %v2068, %v2127
      %v2155 = vadd.f32 %v2069, %v2131
      %v2156 = vadd.f32 %v2070, %v2119
      %v2157 = vadd.f32 %v2071, %v2123
      %v2158 = vadd.f32 %v2072, %v2127
      %v2159 = vadd.f32 %v2073, %v2131
      %v2160 = vadd.f32 %v2074, %v2119
      %v2161 = vadd.f32 %v2075, %v2123
      %v2162 = vadd.f32 %v2076, %v2127
      %v2163 = vadd.f32 %v2077, %v2131
      %v2164 = vadd.f32 %v2078, %v2119
      %v2165 = vadd.f32 %v2079, %v2123
      %v2166 = vadd.f32 %v2080, %v2127
      %v2167 = vadd.f32 %v2081, %v2131
      %v2168 = vadd.f32 %v2082, %v2119
      %v2169 = vadd.f32 %v2083, %v2123
      %v2170 = vadd.f32 %v2084, %v2127
      %v2171 = vadd.f32 %v2085, %v2131
      %v2172 = vadd.f32 %v2086, %v2119
      %v2173 = vadd.f32 %v2087, %v2123
      %v2174 = vadd.f32 %v2088, %v2127
      %v2175 = vadd.f32 %v2089, %v2131
      %v2176 = vadd.f32 %v2090, %v2119
      %v2177 = vadd.f32 %v2091, %v2123
      %v2178 = vadd.f32 %v2092, %v2127
      %v2179 = vadd.f32 %v2093, %v2131
      %v2180 = vadd.f32 %v2094, %v2119
      %v2181 = vadd.f32 %v2095, %v2123
      %v2182 = vadd.f32 %v2096, %v2127
      %v2183 = vadd.f32 %v2097, %v2131
      %v2184 = vadd.f32 %v2098, %v2119
      %v2185 = vadd.f32 %v2099, %v2123
      %v2186 = vadd.f32 %v2100, %v2127
      %v2187 = vadd.f32 %v2101, %v2131
      %v2188 = vadd.f32 %v2102, %v2119
      %v2189 = vadd.f32 %v2103, %v2123
      %v2190 = vadd.f32 %v2104, %v2127
      %v2191 = vadd.f32 %v2105, %v2131
      %v2192 = vadd.f32 %v2106, %v2119
      %v2193 = vadd.f32 %v2107, %v2123
      %v2194 = vadd.f32 %v2108, %v2127
      %v2195 = vadd.f32 %v2109, %v2131
      %v2196 = vadd.f32 %v2110, %v2119
      %v2197 = vadd.f32 %v2111, %v2123
      %v2198 = vadd.f32 %v2112, %v2127
      %v2199 = vadd.f32 %v2113, %v2131
      %v2200 = vmax.f32 %v2136, 0.0
      %v2201 = vmax.f32 %v2137, 0.0
      %v2202 = vmax.f32 %v2138, 0.0
      %v2203 = vmax.f32 %v2139, 0.0
      %v2204 = vmax.f32 %v2140, 0.0
      %v2205 = vmax.f32 %v2141, 0.0
      %v2206 = vmax.f32 %v2142, 0.0
      %v2207 = vmax.f32 %v2143, 0.0
      %v2208 = vmax.f32 %v2144, 0.0
      %v2209 = vmax.f32 %v2145, 0.0
      %v2210 = vmax.f32 %v2146, 0.0
      %v2211 = vmax.f32 %v2147, 0.0
      %v2212 = vmax.f32 %v2148, 0.0
      %v2213 = vmax.f32 %v2149, 0.0
      %v2214 = vmax.f32 %v2150, 0.0
      %v2215 = vmax.f32 %v2151, 0.0
      %v2216 = vmax.f32 %v2152, 0.0
      %v2217 = vmax.f32 %v2153, 0.0
      %v2218 = vmax.f32 %v2154, 0.0
      %v2219 = vmax.f32 %v2155, 0.0
      %v2220 = vmax.f32 %v2156, 0.0
      %v2221 = vmax.f32 %v2157, 0.0
      %v2222 = vmax.f32 %v2158, 0.0
      %v2223 = vmax.f32 %v2159, 0.0
      %v2224 = vmax.f32 %v2160, 0.0
      %v2225 = vmax.f32 %v2161, 0.0
      %v2226 = vmax.f32 %v2162, 0.0
      %v2227 = vmax.f32 %v2163, 0.0
      %v2228 = vmax.f32 %v2164, 0.0
      %v2229 = vmax.f32 %v2165, 0.0
      %v2230 = vmax.f32 %v2166, 0.0
      %v2231 = vmax.f32 %v2167, 0.0
      %v2232 = vmax.f32 %v2168, 0.0
      %v2233 = vmax.f32 %v2169, 0.0
      %v2234 = vmax.f32 %v2170, 0.0
      %v2235 = vmax.f32 %v2171, 0.0
      %v2236 = vmax.f32 %v2172, 0.0
      %v2237 = vmax.f32 %v2173, 0.0
      %v2238 = vmax.f32 %v2174, 0.0
      %v2239 = vmax.f32 %v2175, 0.0
      %v2240 = vmax.f32 %v2176, 0.0
      %v2241 = vmax.f32 %v2177, 0.0
      %v2242 = vmax.f32 %v2178, 0.0
      %v2243 = vmax.f32 %v2179, 0.0
      %v2244 = vmax.f32 %v2180, 0.0
      %v2245 = vmax.f32 %v2181, 0.0
      %v2246 = vmax.f32 %v2182, 0.0
      %v2247 = vmax.f32 %v2183, 0.0
      %v2248 = vmax.f32 %v2184, 0.0
      %v2249 = vmax.f32 %v2185, 0.0
      %v2250 = vmax.f32 %v2186, 0.0
      %v2251 = vmax.f32 %v2187, 0.0
      %v2252 = vmax.f32 %v2188, 0.0
      %v2253 = vmax.f32 %v2189, 0.0
      %v2254 = vmax.f32 %v2190, 0.0
      %v2255 = vmax.f32 %v2191, 0.0
      %v2256 = vmax.f32 %v2192, 0.0
      %v2257 = vmax.f32 %v2193, 0.0
      %v2258 = vmax.f32 %v2194, 0.0
      %v2259 = vmax.f32 %v2195, 0.0
      %v2260 = vmax.f32 %v2196, 0.0
      %v2261 = vmax.f32 %v2197, 0.0
      %v2262 = vmax.f32 %v2198, 0.0
      %v2263 = vmax.f32 %v2199, 0.0
      %v2264 = vpack.c.bf16 %v2204, %v2200
      %v2265 = vpack.c.bf16 %v2205, %v2201
      %v2266 = vpack.c.bf16 %v2206, %v2202
      %v2267 = vpack.c.bf16 %v2207, %v2203
      %v2268 = vpack.c.bf16 %v2212, %v2208
      %v2269 = vpack.c.bf16 %v2213, %v2209
      %v2270 = vpack.c.bf16 %v2214, %v2210
      %v2271 = vpack.c.bf16 %v2215, %v2211
      %v2272 = vpack.c.bf16 %v2220, %v2216
      %v2273 = vpack.c.bf16 %v2221, %v2217
      %v2274 = vpack.c.bf16 %v2222, %v2218
      %v2275 = vpack.c.bf16 %v2223, %v2219
      %v2276 = vpack.c.bf16 %v2228, %v2224
      %v2277 = vpack.c.bf16 %v2229, %v2225
      %v2278 = vpack.c.bf16 %v2230, %v2226
      %v2279 = vpack.c.bf16 %v2231, %v2227
      %v2280 = vpack.c.bf16 %v2236, %v2232
      %v2281 = vpack.c.bf16 %v2237, %v2233
      %v2282 = vpack.c.bf16 %v2238, %v2234
      %v2283 = vpack.c.bf16 %v2239, %v2235
      %v2284 = vpack.c.bf16 %v2244, %v2240
      %v2285 = vpack.c.bf16 %v2245, %v2241
      %v2286 = vpack.c.bf16 %v2246, %v2242
      %v2287 = vpack.c.bf16 %v2247, %v2243
      %v2288 = vpack.c.bf16 %v2252, %v2248
      %v2289 = vpack.c.bf16 %v2253, %v2249
      %v2290 = vpack.c.bf16 %v2254, %v2250
      %v2291 = vpack.c.bf16 %v2255, %v2251
      %v2292 = vpack.c.bf16 %v2260, %v2256
      %v2293 = vpack.c.bf16 %v2261, %v2257
      %v2294 = vpack.c.bf16 %v2262, %v2258
      %v2295 = vpack.c.bf16 %v2263, %v2259
      %v2296 = vld [vmem:[%s5] sm:$0xf]
      %v2297 = vld [vmem:[%s5 + $0x4] sm:$0xf]
      %v2298 = vld [vmem:[%s5 + $0x8] sm:$0xf]
      %v2299 = vld [vmem:[%s5 + $0xc] sm:$0xf]
      %v2300 = vld [vmem:[%s5 + $0x10] sm:$0xf]
      %v2301 = vld [vmem:[%s5 + $0x14] sm:$0xf]
      %v2302 = vld [vmem:[%s5 + $0x18] sm:$0xf]
      %v2303 = vld [vmem:[%s5 + $0x1c] sm:$0xf]
      %v2304 = vld [vmem:[%s5 + $0x20] sm:$0xf]
      %v2305 = vld [vmem:[%s5 + $0x24] sm:$0xf]
      %v2306 = vld [vmem:[%s5 + $0x28] sm:$0xf]
      %v2307 = vld [vmem:[%s5 + $0x2c] sm:$0xf]
      %v2308 = vld [vmem:[%s5 + $0x30] sm:$0xf]
      %v2309 = vld [vmem:[%s5 + $0x34] sm:$0xf]
      %v2310 = vld [vmem:[%s5 + $0x38] sm:$0xf]
      %v2311 = vld [vmem:[%s5 + $0x3c] sm:$0xf]
      %v2312 = vld [vmem:[%s5 + $0x40] sm:$0xf]
      %v2313 = vld [vmem:[%s5 + $0x44] sm:$0xf]
      %v2314 = vld [vmem:[%s5 + $0x48] sm:$0xf]
      %v2315 = vld [vmem:[%s5 + $0x4c] sm:$0xf]
      %v2316 = vld [vmem:[%s5 + $0x50] sm:$0xf]
      %v2317 = vld [vmem:[%s5 + $0x54] sm:$0xf]
      %v2318 = vld [vmem:[%s5 + $0x58] sm:$0xf]
      %v2319 = vld [vmem:[%s5 + $0x5c] sm:$0xf]
      %v2320 = vld [vmem:[%s5 + $0x60] sm:$0xf]
      %v2321 = vld [vmem:[%s5 + $0x64] sm:$0xf]
      %v2322 = vld [vmem:[%s5 + $0x68] sm:$0xf]
      %v2323 = vld [vmem:[%s5 + $0x6c] sm:$0xf]
      %v2324 = vld [vmem:[%s5 + $0x70] sm:$0xf]
      %v2325 = vld [vmem:[%s5 + $0x74] sm:$0xf]
      %v2326 = vld [vmem:[%s5 + $0x78] sm:$0xf]
      %v2327 = vld [vmem:[%s5 + $0x7c] sm:$0xf]
      %v2328 = vld [vmem:[%s5 + $0x80] sm:$0xf]
      %v2329 = vld [vmem:[%s5 + $0x84] sm:$0xf]
      %v2330 = vld [vmem:[%s5 + $0x88] sm:$0xf]
      %v2331 = vld [vmem:[%s5 + $0x8c] sm:$0xf]
      %v2332 = vld [vmem:[%s5 + $0x90] sm:$0xf]
      %v2333 = vld [vmem:[%s5 + $0x94] sm:$0xf]
      %v2334 = vld [vmem:[%s5 + $0x98] sm:$0xf]
      %v2335 = vld [vmem:[%s5 + $0x9c] sm:$0xf]
      %v2336 = vld [vmem:[%s5 + $0xa0] sm:$0xf]
      %v2337 = vld [vmem:[%s5 + $0xa4] sm:$0xf]
      %v2338 = vld [vmem:[%s5 + $0xa8] sm:$0xf]
      %v2339 = vld [vmem:[%s5 + $0xac] sm:$0xf]
      %v2340 = vld [vmem:[%s5 + $0xb0] sm:$0xf]
      %v2341 = vld [vmem:[%s5 + $0xb4] sm:$0xf]
      %v2342 = vld [vmem:[%s5 + $0xb8] sm:$0xf]
      %v2343 = vld [vmem:[%s5 + $0xbc] sm:$0xf]
      %v2344 = vld [vmem:[%s5 + $0xc0] sm:$0xf]
      %v2345 = vld [vmem:[%s5 + $0xc4] sm:$0xf]
      %v2346 = vld [vmem:[%s5 + $0xc8] sm:$0xf]
      %v2347 = vld [vmem:[%s5 + $0xcc] sm:$0xf]
      %v2348 = vld [vmem:[%s5 + $0xd0] sm:$0xf]
      %v2349 = vld [vmem:[%s5 + $0xd4] sm:$0xf]
      %v2350 = vld [vmem:[%s5 + $0xd8] sm:$0xf]
      %v2351 = vld [vmem:[%s5 + $0xdc] sm:$0xf]
      %v2352 = vld [vmem:[%s5 + $0xe0] sm:$0xf]
      %v2353 = vld [vmem:[%s5 + $0xe4] sm:$0xf]
      %v2354 = vld [vmem:[%s5 + $0xe8] sm:$0xf]
      %v2355 = vld [vmem:[%s5 + $0xec] sm:$0xf]
      %v2356 = vld [vmem:[%s5 + $0xf0] sm:$0xf]
      %v2357 = vld [vmem:[%s5 + $0xf4] sm:$0xf]
      %v2358 = vld [vmem:[%s5 + $0xf8] sm:$0xf]
      %v2359 = vld [vmem:[%s5 + $0xfc] sm:$0xf]
      %v2360 = vld [vmem:[%s6] sm:$0x1]
      %v2362 = vlaneseq
      %v2363 = vshrl.u32 %v2362, 7
      %v2364 = vsub.s32 0, %v2363
      %v2365 = vrot.slane %v2360, %v2364
      %v2431 = vunpack.c.l.b16 %v2296
      %v2432 = vunpack.c.l.b16 %v2297
      %v2433 = vunpack.c.l.b16 %v2298
      %v2434 = vunpack.c.l.b16 %v2299
      %v2435 = vunpack.c.l.b16 %v2300
      %v2436 = vunpack.c.l.b16 %v2301
      %v2437 = vunpack.c.l.b16 %v2302
      %v2438 = vunpack.c.l.b16 %v2303
      %v2439 = vunpack.c.l.b16 %v2304
      %v2440 = vunpack.c.l.b16 %v2305
      %v2441 = vunpack.c.l.b16 %v2306
      %v2442 = vunpack.c.l.b16 %v2307
      %v2443 = vunpack.c.l.b16 %v2308
      %v2444 = vunpack.c.l.b16 %v2309
      %v2445 = vunpack.c.l.b16 %v2310
      %v2446 = vunpack.c.l.b16 %v2311
      %v2447 = vunpack.c.l.b16 %v2312
      %v2448 = vunpack.c.l.b16 %v2313
      %v2449 = vunpack.c.l.b16 %v2314
      %v2450 = vunpack.c.l.b16 %v2315
      %v2451 = vunpack.c.l.b16 %v2316
      %v2452 = vunpack.c.l.b16 %v2317
      %v2453 = vunpack.c.l.b16 %v2318
      %v2454 = vunpack.c.l.b16 %v2319
      %v2455 = vunpack.c.l.b16 %v2320
      %v2456 = vunpack.c.l.b16 %v2321
      %v2457 = vunpack.c.l.b16 %v2322
      %v2458 = vunpack.c.l.b16 %v2323
      %v2459 = vunpack.c.l.b16 %v2324
      %v2460 = vunpack.c.l.b16 %v2325
      %v2461 = vunpack.c.l.b16 %v2326
      %v2462 = vunpack.c.l.b16 %v2327
      %v2463 = vunpack.c.l.b16 %v2328
      %v2464 = vunpack.c.l.b16 %v2329
      %v2465 = vunpack.c.l.b16 %v2330
      %v2466 = vunpack.c.l.b16 %v2331
      %v2467 = vunpack.c.l.b16 %v2332
      %v2468 = vunpack.c.l.b16 %v2333
      %v2469 = vunpack.c.l.b16 %v2334
      %v2470 = vunpack.c.l.b16 %v2335
      %v2471 = vunpack.c.l.b16 %v2336
      %v2472 = vunpack.c.l.b16 %v2337
      %v2473 = vunpack.c.l.b16 %v2338
      %v2474 = vunpack.c.l.b16 %v2339
      %v2475 = vunpack.c.l.b16 %v2340
      %v2476 = vunpack.c.l.b16 %v2341
      %v2477 = vunpack.c.l.b16 %v2342
      %v2478 = vunpack.c.l.b16 %v2343
      %v2479 = vunpack.c.l.b16 %v2344
      %v2480 = vunpack.c.l.b16 %v2345
      %v2481 = vunpack.c.l.b16 %v2346
      %v2482 = vunpack.c.l.b16 %v2347
      %v2483 = vunpack.c.l.b16 %v2348
      %v2484 = vunpack.c.l.b16 %v2349
      %v2485 = vunpack.c.l.b16 %v2350
      %v2486 = vunpack.c.l.b16 %v2351
      %v2487 = vunpack.c.l.b16 %v2352
      %v2488 = vunpack.c.l.b16 %v2353
      %v2489 = vunpack.c.l.b16 %v2354
      %v2490 = vunpack.c.l.b16 %v2355
      %v2491 = vunpack.c.l.b16 %v2356
      %v2492 = vunpack.c.l.b16 %v2357
      %v2493 = vunpack.c.l.b16 %v2358
      %v2494 = vunpack.c.l.b16 %v2359
      %v2495 = vpack.c.b16 %v2432, %v2431
      %v2496 = vpack.c.b16 %v2434, %v2433
      %v2497 = vpack.c.b16 %v2436, %v2435
      %v2498 = vpack.c.b16 %v2438, %v2437
      %v2499 = vpack.c.b16 %v2440, %v2439
      %v2500 = vpack.c.b16 %v2442, %v2441
      %v2501 = vpack.c.b16 %v2444, %v2443
      %v2502 = vpack.c.b16 %v2446, %v2445
      %v2503 = vpack.c.b16 %v2448, %v2447
      %v2504 = vpack.c.b16 %v2450, %v2449
      %v2505 = vpack.c.b16 %v2452, %v2451
      %v2506 = vpack.c.b16 %v2454, %v2453
      %v2507 = vpack.c.b16 %v2456, %v2455
      %v2508 = vpack.c.b16 %v2458, %v2457
      %v2509 = vpack.c.b16 %v2460, %v2459
      %v2510 = vpack.c.b16 %v2462, %v2461
      %v2511 = vpack.c.b16 %v2464, %v2463
      %v2512 = vpack.c.b16 %v2466, %v2465
      %v2513 = vpack.c.b16 %v2468, %v2467
      %v2514 = vpack.c.b16 %v2470, %v2469
      %v2515 = vpack.c.b16 %v2472, %v2471
      %v2516 = vpack.c.b16 %v2474, %v2473
      %v2517 = vpack.c.b16 %v2476, %v2475
      %v2518 = vpack.c.b16 %v2478, %v2477
      %v2519 = vpack.c.b16 %v2480, %v2479
      %v2520 = vpack.c.b16 %v2482, %v2481
      %v2521 = vpack.c.b16 %v2484, %v2483
      %v2522 = vpack.c.b16 %v2486, %v2485
      %v2523 = vpack.c.b16 %v2488, %v2487
      %v2524 = vpack.c.b16 %v2490, %v2489
      %v2525 = vpack.c.b16 %v2492, %v2491
      %v2526 = vpack.c.b16 %v2494, %v2493
      %2559 = vmatprep.subr.bf16.mxu0 0
      %2560 = vmatpush1.bf16.msra.mxu0 %v2495
      %2561 = vmatprep.subr.bf16.mxu0 0
      %2562 = vmatpush1.bf16.msra.mxu0 %v2496
      %2563 = vmatprep.subr.bf16.mxu0 0
      %2564 = vmatpush1.bf16.msra.mxu0 %v2497
      %2565 = vmatprep.subr.bf16.mxu0 0
      %2566 = vmatpush1.bf16.msra.mxu0 %v2498
      %2567 = vmatprep.subr.bf16.mxu0 0
      %2568 = vmatpush1.bf16.msra.mxu0 %v2499
      %2569 = vmatprep.subr.bf16.mxu0 0
      %2570 = vmatpush1.bf16.msra.mxu0 %v2500
      %2571 = vmatprep.subr.bf16.mxu0 0
      %2572 = vmatpush1.bf16.msra.mxu0 %v2501
      %2573 = vmatprep.subr.bf16.mxu0 0
      %2574 = vmatpush1.bf16.msra.mxu0 %v2502
      %2575 = vmatprep.subr.bf16.mxu0 0
      %2576 = vmatpush1.bf16.msra.mxu0 %v2503
      %2577 = vmatprep.subr.bf16.mxu0 0
      %2578 = vmatpush1.bf16.msra.mxu0 %v2504
      %2579 = vmatprep.subr.bf16.mxu0 0
      %2580 = vmatpush1.bf16.msra.mxu0 %v2505
      %2581 = vmatprep.subr.bf16.mxu0 0
      %2582 = vmatpush1.bf16.msra.mxu0 %v2506
      %2583 = vmatprep.subr.bf16.mxu0 0
      %2584 = vmatpush1.bf16.msra.mxu0 %v2507
      %2585 = vmatprep.subr.bf16.mxu0 0
      %2586 = vmatpush1.bf16.msra.mxu0 %v2508
      %2587 = vmatprep.subr.bf16.mxu0 0
      %2588 = vmatpush1.bf16.msra.mxu0 %v2509
      %2589 = vmatprep.subr.bf16.mxu0 0
      %2590 = vmatpush1.bf16.msra.mxu0 %v2510
      %2591 = vmatprep.mubr.bf16.mxu0 %v2265
      %2592 = vmatmul.mubr.bf16.gmra.mrb[0].mxu0 %v2264
      %v2593 = vpop.f32.mrb[0].mxu0
      %v2594 = vadd.f32 %v2365, %v2593
      %v2595 = vpop.f32.mrb[0].mxu0
      %v2596 = vpop.f32.mrb[0].mxu0
      %v2597 = vadd.f32 %v2365, %v2596
      %v2598 = vpop.f32.mrb[0].mxu0
      %2599 = vmatprep.mubr.bf16.mxu0 %v2269
      %2600 = vmatmul.mubr.bf16.gmra.mrb[0].mxu0 %v2268
      %v2601 = vpop.f32.mrb[0].mxu0
      %v2602 = vadd.f32 %v2365, %v2601
      %v2603 = vpop.f32.mrb[0].mxu0
      %v2604 = vpop.f32.mrb[0].mxu0
      %v2605 = vadd.f32 %v2365, %v2604
      %v2606 = vpop.f32.mrb[0].mxu0
      %2607 = vmatprep.mubr.bf16.mxu0 %v2273
      %2608 = vmatmul.mubr.bf16.gmra.mrb[0].mxu0 %v2272
      %v2609 = vpop.f32.mrb[0].mxu0
      %v2610 = vadd.f32 %v2365, %v2609
      %v2611 = vpop.f32.mrb[0].mxu0
      %v2612 = vpop.f32.mrb[0].mxu0
      %v2613 = vadd.f32 %v2365, %v2612
      %v2614 = vpop.f32.mrb[0].mxu0
      %2615 = vmatprep.mubr.bf16.mxu0 %v2277
      %2616 = vmatmul.mubr.bf16.gmra.mrb[0].mxu0 %v2276
      %v2617 = vpop.f32.mrb[0].mxu0
      %v2618 = vadd.f32 %v2365, %v2617
      %v2619 = vpop.f32.mrb[0].mxu0
      %v2620 = vpop.f32.mrb[0].mxu0
      %v2621 = vadd.f32 %v2365, %v2620
      %v2622 = vpop.f32.mrb[0].mxu0
      %2623 = vmatprep.mubr.bf16.mxu0 %v2281
      %2624 = vmatmul.mubr.bf16.gmra.mrb[0].mxu0 %v2280
      %v2625 = vpop.f32.mrb[0].mxu0
      %v2626 = vadd.f32 %v2365, %v2625
      %v2627 = vpop.f32.mrb[0].mxu0
      %v2628 = vpop.f32.mrb[0].mxu0
      %v2629 = vadd.f32 %v2365, %v2628
      %v2630 = vpop.f32.mrb[0].mxu0
      %2631 = vmatprep.mubr.bf16.mxu0 %v2285
      %2632 = vmatmul.mubr.bf16.gmra.mrb[0].mxu0 %v2284
      %v2633 = vpop.f32.mrb[0].mxu0
      %v2634 = vadd.f32 %v2365, %v2633
      %v2635 = vpop.f32.mrb[0].mxu0
      %v2636 = vpop.f32.mrb[0].mxu0
      %v2637 = vadd.f32 %v2365, %v2636
      %v2638 = vpop.f32.mrb[0].mxu0
      %2639 = vmatprep.mubr.bf16.mxu0 %v2289
      %2640 = vmatmul.mubr.bf16.gmra.mrb[0].mxu0 %v2288
      %v2641 = vpop.f32.mrb[0].mxu0
      %v2642 = vadd.f32 %v2365, %v2641
      %v2643 = vpop.f32.mrb[0].mxu0
      %v2644 = vpop.f32.mrb[0].mxu0
      %v2645 = vadd.f32 %v2365, %v2644
      %v2646 = vpop.f32.mrb[0].mxu0
      %2647 = vmatprep.mubr.bf16.mxu0 %v2293
      %2648 = vmatmul.mubr.bf16.gmra.mrb[0].mxu0 %v2292
      %v2649 = vpop.f32.mrb[0].mxu0
      %v2650 = vadd.f32 %v2365, %v2649
      %v2651 = vpop.f32.mrb[0].mxu0
      %v2652 = vpop.f32.mrb[0].mxu0
      %v2653 = vadd.f32 %v2365, %v2652
      %v2654 = vpop.f32.mrb[0].mxu0
      %2655 = vdwg.mxu0
      %2656 = vmatprep.subr.bf16.mxu0 0
      %2657 = vmatpush1.bf16.msra.mxu0 %v2511
      %2658 = vmatprep.subr.bf16.mxu0 0
      %2659 = vmatpush1.bf16.msra.mxu0 %v2512
      %2660 = vmatprep.subr.bf16.mxu0 0
      %2661 = vmatpush1.bf16.msra.mxu0 %v2513
      %2662 = vmatprep.subr.bf16.mxu0 0
      %2663 = vmatpush1.bf16.msra.mxu0 %v2514
      %2664 = vmatprep.subr.bf16.mxu0 0
      %2665 = vmatpush1.bf16.msra.mxu0 %v2515
      %2666 = vmatprep.subr.bf16.mxu0 0
      %2667 = vmatpush1.bf16.msra.mxu0 %v2516
      %2668 = vmatprep.subr.bf16.mxu0 0
      %2669 = vmatpush1.bf16.msra.mxu0 %v2517
      %2670 = vmatprep.subr.bf16.mxu0 0
      %2671 = vmatpush1.bf16.msra.mxu0 %v2518
      %2672 = vmatprep.subr.bf16.mxu0 0
      %2673 = vmatpush1.bf16.msra.mxu0 %v2519
      %2674 = vmatprep.subr.bf16.mxu0 0
      %2675 = vmatpush1.bf16.msra.mxu0 %v2520
      %2676 = vmatprep.subr.bf16.mxu0 0
      %2677 = vmatpush1.bf16.msra.mxu0 %v2521
      %2678 = vmatprep.subr.bf16.mxu0 0
      %2679 = vmatpush1.bf16.msra.mxu0 %v2522
      %2680 = vmatprep.subr.bf16.mxu0 0
      %2681 = vmatpush1.bf16.msra.mxu0 %v2523
      %2682 = vmatprep.subr.bf16.mxu0 0
      %2683 = vmatpush1.bf16.msra.mxu0 %v2524
      %2684 = vmatprep.subr.bf16.mxu0 0
      %2685 = vmatpush1.bf16.msra.mxu0 %v2525
      %2686 = vmatprep.subr.bf16.mxu0 0
      %2687 = vmatpush1.bf16.msra.mxu0 %v2526
      %2688 = vmatprep.mubr.bf16.mxu0 %v2267
      %2689 = vmatmul.mubr.bf16.gmra.mrb[0].mxu0 %v2266
      %v2690 = vpop.f32.mrb[0].mxu0
      %v2691 = vadd.f32 %v2594, %v2690
      %v2692 = vpop.f32.mrb[0].mxu0
      %v2693 = vpop.f32.mrb[0].mxu0
      %v2694 = vadd.f32 %v2597, %v2693
      %v2695 = vpop.f32.mrb[0].mxu0
      %2696 = vmatprep.mubr.bf16.mxu0 %v2271
      %2697 = vmatmul.mubr.bf16.gmra.mrb[0].mxu0 %v2270
      %v2698 = vpop.f32.mrb[0].mxu0
      %v2699 = vadd.f32 %v2602, %v2698
      %v2700 = vpop.f32.mrb[0].mxu0
      %v2701 = vpop.f32.mrb[0].mxu0
      %v2702 = vadd.f32 %v2605, %v2701
      %v2703 = vpop.f32.mrb[0].mxu0
      %2704 = vmatprep.mubr.bf16.mxu0 %v2275
      %2705 = vmatmul.mubr.bf16.gmra.mrb[0].mxu0 %v2274
      %v2706 = vpop.f32.mrb[0].mxu0
      %v2707 = vadd.f32 %v2610, %v2706
      %v2708 = vpop.f32.mrb[0].mxu0
      %v2709 = vpop.f32.mrb[0].mxu0
      %v2710 = vadd.f32 %v2613, %v2709
      %v2711 = vpop.f32.mrb[0].mxu0
      %2712 = vmatprep.mubr.bf16.mxu0 %v2279
      %2713 = vmatmul.mubr.bf16.gmra.mrb[0].mxu0 %v2278
      %v2714 = vpop.f32.mrb[0].mxu0
      %v2715 = vadd.f32 %v2618, %v2714
      %v2716 = vpop.f32.mrb[0].mxu0
      %v2717 = vpop.f32.mrb[0].mxu0
      %v2718 = vadd.f32 %v2621, %v2717
      %v2719 = vpop.f32.mrb[0].mxu0
      %2720 = vmatprep.mubr.bf16.mxu0 %v2283
      %2721 = vmatmul.mubr.bf16.gmra.mrb[0].mxu0 %v2282
      %v2722 = vpop.f32.mrb[0].mxu0
      %v2723 = vadd.f32 %v2626, %v2722
      %v2724 = vpop.f32.mrb[0].mxu0
      %v2725 = vpop.f32.mrb[0].mxu0
      %v2726 = vadd.f32 %v2629, %v2725
      %v2727 = vpop.f32.mrb[0].mxu0
      %2728 = vmatprep.mubr.bf16.mxu0 %v2287
      %2729 = vmatmul.mubr.bf16.gmra.mrb[0].mxu0 %v2286
      %v2730 = vpop.f32.mrb[0].mxu0
      %v2731 = vadd.f32 %v2634, %v2730
      %v2732 = vpop.f32.mrb[0].mxu0
      %v2733 = vpop.f32.mrb[0].mxu0
      %v2734 = vadd.f32 %v2637, %v2733
      %v2735 = vpop.f32.mrb[0].mxu0
      %2736 = vmatprep.mubr.bf16.mxu0 %v2291
      %2737 = vmatmul.mubr.bf16.gmra.mrb[0].mxu0 %v2290
      %v2738 = vpop.f32.mrb[0].mxu0
      %v2739 = vadd.f32 %v2642, %v2738
      %v2740 = vpop.f32.mrb[0].mxu0
      %v2741 = vpop.f32.mrb[0].mxu0
      %v2742 = vadd.f32 %v2645, %v2741
      %v2743 = vpop.f32.mrb[0].mxu0
      %2744 = vmatprep.mubr.bf16.mxu0 %v2295
      %2745 = vmatmul.mubr.bf16.gmra.mrb[0].mxu0 %v2294
      %v2746 = vpop.f32.mrb[0].mxu0
      %v2747 = vadd.f32 %v2650, %v2746
      %v2748 = vpop.f32.mrb[0].mxu0
      %v2749 = vpop.f32.mrb[0].mxu0
      %v2750 = vadd.f32 %v2653, %v2749
      %v2751 = vpop.f32.mrb[0].mxu0
      %2752 = vdwg.mxu0
      %v2753 = vtanh.pop %v2691
      %v2754 = vtanh.pop %v2694
      %v2755 = vtanh.pop %v2699
      %v2756 = vtanh.pop %v2702
      %v2757 = vtanh.pop %v2707
      %v2758 = vtanh.pop %v2710
      %v2759 = vtanh.pop %v2715
      %v2760 = vtanh.pop %v2718
      %v2761 = vtanh.pop %v2723
      %v2762 = vtanh.pop %v2726
      %v2763 = vtanh.pop %v2731
      %v2764 = vtanh.pop %v2734
      %v2765 = vtanh.pop %v2739
      %v2766 = vtanh.pop %v2742
      %v2767 = vtanh.pop %v2747
      %v2768 = vtanh.pop %v2750
      %v2769 = vld [vmem:[%s7] sm:$0x1]
      %v2771 = vlaneseq
      %v2772 = vshrl.u32 %v2771, 7
      %v2773 = vsub.s32 0, %v2772
      %v2774 = vrot.slane %v2769, %v2773
      %v2776 = vmul.f32 %v2753, %v2774
      %v2777 = vmul.f32 %v2754, %v2774
      %v2778 = vmul.f32 %v2755, %v2774
      %v2779 = vmul.f32 %v2756, %v2774
      %v2780 = vmul.f32 %v2757, %v2774
      %v2781 = vmul.f32 %v2758, %v2774
      %v2782 = vmul.f32 %v2759, %v2774
      %v2783 = vmul.f32 %v2760, %v2774
      %v2784 = vmul.f32 %v2761, %v2774
      %v2785 = vmul.f32 %v2762, %v2774
      %v2786 = vmul.f32 %v2763, %v2774
      %v2787 = vmul.f32 %v2764, %v2774
      %v2788 = vmul.f32 %v2765, %v2774
      %v2789 = vmul.f32 %v2766, %v2774
      %v2790 = vmul.f32 %v2767, %v2774
      %v2791 = vmul.f32 %v2768, %v2774
      %2792 = vadd.xlane.f32.xlu0 %v2776
      %v2793 = vpop.xlane.xlu0 %2792
      %2794 = vadd.xlane.f32.xlu0 %v2777
      %v2795 = vpop.xlane.xlu0 %2794
      %2796 = vadd.xlane.f32.xlu0 %v2778
      %v2797 = vpop.xlane.xlu0 %2796
      %2798 = vadd.xlane.f32.xlu0 %v2779
      %v2799 = vpop.xlane.xlu0 %2798
      %2800 = vadd.xlane.f32.xlu0 %v2780
      %v2801 = vpop.xlane.xlu0 %2800
      %2802 = vadd.xlane.f32.xlu0 %v2781
      %v2803 = vpop.xlane.xlu0 %2802
      %2804 = vadd.xlane.f32.xlu0 %v2782
      %v2805 = vpop.xlane.xlu0 %2804
      %2806 = vadd.xlane.f32.xlu0 %v2783
      %v2807 = vpop.xlane.xlu0 %2806
      %2808 = vadd.xlane.f32.xlu0 %v2784
      %v2809 = vpop.xlane.xlu0 %2808
      %2810 = vadd.xlane.f32.xlu0 %v2785
      %v2811 = vpop.xlane.xlu0 %2810
      %2812 = vadd.xlane.f32.xlu0 %v2786
      %v2813 = vpop.xlane.xlu0 %2812
      %2814 = vadd.xlane.f32.xlu0 %v2787
      %v2815 = vpop.xlane.xlu0 %2814
      %2816 = vadd.xlane.f32.xlu0 %v2788
      %v2817 = vpop.xlane.xlu0 %2816
      %2818 = vadd.xlane.f32.xlu0 %v2789
      %v2819 = vpop.xlane.xlu0 %2818
      %2820 = vadd.xlane.f32.xlu0 %v2790
      %v2821 = vpop.xlane.xlu0 %2820
      %2822 = vadd.xlane.f32.xlu0 %v2791
      %v2823 = vpop.xlane.xlu0 %2822
      %v2840 = vlaneseq
      %v2841 = vand.u32 %v2840, 127
      %v2842 = vlaneseq
      %v2843 = vshrl.u32 %v2842, 7
      %v2844 = vsub.s32 %v2841, %v2843
      %v2845 = vrot.slane %v2793, %v2844
      %v2846 = vlaneseq
      %v2847 = vshrl.u32 %v2846, 7
      %v2848 = vsub.s32 %v2841, %v2847
      %v2849 = vrot.slane %v2795, %v2848
      %v2850 = vlaneseq
      %v2851 = vshrl.u32 %v2850, 7
      %v2852 = vsub.s32 %v2841, %v2851
      %v2853 = vrot.slane %v2797, %v2852
      %v2854 = vlaneseq
      %v2855 = vshrl.u32 %v2854, 7
      %v2856 = vsub.s32 %v2841, %v2855
      %v2857 = vrot.slane %v2799, %v2856
      %v2858 = vlaneseq
      %v2859 = vshrl.u32 %v2858, 7
      %v2860 = vsub.s32 %v2841, %v2859
      %v2861 = vrot.slane %v2801, %v2860
      %v2862 = vlaneseq
      %v2863 = vshrl.u32 %v2862, 7
      %v2864 = vsub.s32 %v2841, %v2863
      %v2865 = vrot.slane %v2803, %v2864
      %v2866 = vlaneseq
      %v2867 = vshrl.u32 %v2866, 7
      %v2868 = vsub.s32 %v2841, %v2867
      %v2869 = vrot.slane %v2805, %v2868
      %v2870 = vlaneseq
      %v2871 = vshrl.u32 %v2870, 7
      %v2872 = vsub.s32 %v2841, %v2871
      %v2873 = vrot.slane %v2807, %v2872
      %v2874 = vlaneseq
      %v2875 = vshrl.u32 %v2874, 7
      %v2876 = vsub.s32 %v2841, %v2875
      %v2877 = vrot.slane %v2809, %v2876
      %v2878 = vlaneseq
      %v2879 = vshrl.u32 %v2878, 7
      %v2880 = vsub.s32 %v2841, %v2879
      %v2881 = vrot.slane %v2811, %v2880
      %v2882 = vlaneseq
      %v2883 = vshrl.u32 %v2882, 7
      %v2884 = vsub.s32 %v2841, %v2883
      %v2885 = vrot.slane %v2813, %v2884
      %v2886 = vlaneseq
      %v2887 = vshrl.u32 %v2886, 7
      %v2888 = vsub.s32 %v2841, %v2887
      %v2889 = vrot.slane %v2815, %v2888
      %v2890 = vlaneseq
      %v2891 = vshrl.u32 %v2890, 7
      %v2892 = vsub.s32 %v2841, %v2891
      %v2893 = vrot.slane %v2817, %v2892
      %v2894 = vlaneseq
      %v2895 = vshrl.u32 %v2894, 7
      %v2896 = vsub.s32 %v2841, %v2895
      %v2897 = vrot.slane %v2819, %v2896
      %v2898 = vlaneseq
      %v2899 = vshrl.u32 %v2898, 7
      %v2900 = vsub.s32 %v2841, %v2899
      %v2901 = vrot.slane %v2821, %v2900
      %v2902 = vlaneseq
      %v2903 = vshrl.u32 %v2902, 7
      %v2904 = vsub.s32 %v2841, %v2903
      %v2905 = vrot.slane %v2823, %v2904
      %vm2906 = vcmask 1041409
      %v2907 = vsel %vm2906, %v2849, %v2845
      %vm2908 = vcmask 1042434
      %v2909 = vsel %vm2908, %v2853, %v2907
      %vm2910 = vcmask 1043459
      %v2911 = vsel %vm2910, %v2857, %v2909
      %vm2912 = vcmask 1044484
      %v2913 = vsel %vm2912, %v2861, %v2911
      %vm2914 = vcmask 1045509
      %v2915 = vsel %vm2914, %v2865, %v2913
      %vm2916 = vcmask 1046534
      %v2917 = vsel %vm2916, %v2869, %v2915
      %vm2918 = vcmask 1047559
      %v2919 = vsel %vm2918, %v2873, %v2917
      %v2920 = vsel %vm2906, %v2881, %v2877
      %v2921 = vsel %vm2908, %v2885, %v2920
      %v2922 = vsel %vm2910, %v2889, %v2921
      %v2923 = vsel %vm2912, %v2893, %v2922
      %v2924 = vsel %vm2914, %v2897, %v2923
      %v2925 = vsel %vm2916, %v2901, %v2924
      %v2926 = vsel %vm2918, %v2905, %v2925
      %vm2929 = vcmask 64512
      %v2930 = vsel %vm2929, %v2919, -inf
      %2931 = vmax.xlane.f32.xlu0 %v2930
      %v2932 = vpop.xlane.xlu0 %2931
      %v2933 = vsel %vm2929, %v2926, -inf
      %2934 = vmax.xlane.f32.xlu0 %v2933
      %v2935 = vpop.xlane.xlu0 %2934
      %v2938 = vlaneseq
      %v2939 = vshrl.u32 %v2938, 7
      %v2940 = vsub.s32 0, %v2939
      %v2941 = vrot.slane %v2932, %v2940
      %v2942 = vlaneseq
      %v2943 = vshrl.u32 %v2942, 7
      %v2944 = vsub.s32 1, %v2943
      %v2945 = vrot.slane %v2932, %v2944
      %v2946 = vlaneseq
      %v2947 = vshrl.u32 %v2946, 7
      %v2948 = vsub.s32 2, %v2947
      %v2949 = vrot.slane %v2932, %v2948
      %v2950 = vlaneseq
      %v2951 = vshrl.u32 %v2950, 7
      %v2952 = vsub.s32 3, %v2951
      %v2953 = vrot.slane %v2932, %v2952
      %v2954 = vlaneseq
      %v2955 = vshrl.u32 %v2954, 7
      %v2956 = vsub.s32 4, %v2955
      %v2957 = vrot.slane %v2932, %v2956
      %v2958 = vlaneseq
      %v2959 = vshrl.u32 %v2958, 7
      %v2960 = vsub.s32 5, %v2959
      %v2961 = vrot.slane %v2932, %v2960
      %v2962 = vlaneseq
      %v2963 = vshrl.u32 %v2962, 7
      %v2964 = vsub.s32 6, %v2963
      %v2965 = vrot.slane %v2932, %v2964
      %v2966 = vlaneseq
      %v2967 = vshrl.u32 %v2966, 7
      %v2968 = vsub.s32 7, %v2967
      %v2969 = vrot.slane %v2932, %v2968
      %v2970 = vlaneseq
      %v2971 = vshrl.u32 %v2970, 7
      %v2972 = vsub.s32 0, %v2971
      %v2973 = vrot.slane %v2935, %v2972
      %v2974 = vlaneseq
      %v2975 = vshrl.u32 %v2974, 7
      %v2976 = vsub.s32 1, %v2975
      %v2977 = vrot.slane %v2935, %v2976
      %v2978 = vlaneseq
      %v2979 = vshrl.u32 %v2978, 7
      %v2980 = vsub.s32 2, %v2979
      %v2981 = vrot.slane %v2935, %v2980
      %v2982 = vlaneseq
      %v2983 = vshrl.u32 %v2982, 7
      %v2984 = vsub.s32 3, %v2983
      %v2985 = vrot.slane %v2935, %v2984
      %v2986 = vlaneseq
      %v2987 = vshrl.u32 %v2986, 7
      %v2988 = vsub.s32 4, %v2987
      %v2989 = vrot.slane %v2935, %v2988
      %v2990 = vlaneseq
      %v2991 = vshrl.u32 %v2990, 7
      %v2992 = vsub.s32 5, %v2991
      %v2993 = vrot.slane %v2935, %v2992
      %v2994 = vlaneseq
      %v2995 = vshrl.u32 %v2994, 7
      %v2996 = vsub.s32 6, %v2995
      %v2997 = vrot.slane %v2935, %v2996
      %v2998 = vlaneseq
      %v2999 = vshrl.u32 %v2998, 7
      %v3000 = vsub.s32 7, %v2999
      %v3001 = vrot.slane %v2935, %v3000
      %v3018 = vsub.f32 %v2793, %v2941
      %v3019 = vsub.f32 %v2795, %v2945
      %v3020 = vsub.f32 %v2797, %v2949
      %v3021 = vsub.f32 %v2799, %v2953
      %v3022 = vsub.f32 %v2801, %v2957
      %v3023 = vsub.f32 %v2803, %v2961
      %v3024 = vsub.f32 %v2805, %v2965
      %v3025 = vsub.f32 %v2807, %v2969
      %v3026 = vsub.f32 %v2809, %v2973
      %v3027 = vsub.f32 %v2811, %v2977
      %v3028 = vsub.f32 %v2813, %v2981
      %v3029 = vsub.f32 %v2815, %v2985
      %v3030 = vsub.f32 %v2817, %v2989
      %v3031 = vsub.f32 %v2819, %v2993
      %v3032 = vsub.f32 %v2821, %v2997
      %v3033 = vsub.f32 %v2823, %v3001
      %v3034 = vmul.f32 %v3018, 1.442695
      %v3035 = vpow.pop %v3034
      %v3036 = vmul.f32 %v3019, 1.442695
      %v3037 = vpow.pop %v3036
      %v3038 = vmul.f32 %v3020, 1.442695
      %v3039 = vpow.pop %v3038
      %v3040 = vmul.f32 %v3021, 1.442695
      %v3041 = vpow.pop %v3040
      %v3042 = vmul.f32 %v3022, 1.442695
      %v3043 = vpow.pop %v3042
      %v3044 = vmul.f32 %v3023, 1.442695
      %v3045 = vpow.pop %v3044
      %v3046 = vmul.f32 %v3024, 1.442695
      %v3047 = vpow.pop %v3046
      %v3048 = vmul.f32 %v3025, 1.442695
      %v3049 = vpow.pop %v3048
      %v3050 = vmul.f32 %v3026, 1.442695
      %v3051 = vpow.pop %v3050
      %v3052 = vmul.f32 %v3027, 1.442695
      %v3053 = vpow.pop %v3052
      %v3054 = vmul.f32 %v3028, 1.442695
      %v3055 = vpow.pop %v3054
      %v3056 = vmul.f32 %v3029, 1.442695
      %v3057 = vpow.pop %v3056
      %v3058 = vmul.f32 %v3030, 1.442695
      %v3059 = vpow.pop %v3058
      %v3060 = vmul.f32 %v3031, 1.442695
      %v3061 = vpow.pop %v3060
      %v3062 = vmul.f32 %v3032, 1.442695
      %v3063 = vpow.pop %v3062
      %v3064 = vmul.f32 %v3033, 1.442695
      %v3065 = vpow.pop %v3064
      %3082 = vset.pattern.permute.xlu0 0
      %3083 = vperm.xlu0 %3082, %v3035
      %v3084 = vpop.permute.xlu0 %3083
      %3085 = vset.pattern.permute.xlu0 0
      %3086 = vperm.xlu0 %3085, %v3037
      %v3087 = vpop.permute.xlu0 %3086
      %3088 = vset.pattern.permute.xlu0 0
      %3089 = vperm.xlu0 %3088, %v3039
      %v3090 = vpop.permute.xlu0 %3089
      %3091 = vset.pattern.permute.xlu0 0
      %3092 = vperm.xlu0 %3091, %v3041
      %v3093 = vpop.permute.xlu0 %3092
      %3094 = vset.pattern.permute.xlu0 0
      %3095 = vperm.xlu0 %3094, %v3043
      %v3096 = vpop.permute.xlu0 %3095
      %3097 = vset.pattern.permute.xlu0 0
      %3098 = vperm.xlu0 %3097, %v3045
      %v3099 = vpop.permute.xlu0 %3098
      %3100 = vset.pattern.permute.xlu0 0
      %3101 = vperm.xlu0 %3100, %v3047
      %v3102 = vpop.permute.xlu0 %3101
      %3103 = vset.pattern.permute.xlu0 0
      %3104 = vperm.xlu0 %3103, %v3049
      %v3105 = vpop.permute.xlu0 %3104
      %3106 = vset.pattern.permute.xlu0 0
      %3107 = vperm.xlu0 %3106, %v3051
      %v3108 = vpop.permute.xlu0 %3107
      %3109 = vset.pattern.permute.xlu0 0
      %3110 = vperm.xlu0 %3109, %v3053
      %v3111 = vpop.permute.xlu0 %3110
      %3112 = vset.pattern.permute.xlu0 0
      %3113 = vperm.xlu0 %3112, %v3055
      %v3114 = vpop.permute.xlu0 %3113
      %3115 = vset.pattern.permute.xlu0 0
      %3116 = vperm.xlu0 %3115, %v3057
      %v3117 = vpop.permute.xlu0 %3116
      %3118 = vset.pattern.permute.xlu0 0
      %3119 = vperm.xlu0 %3118, %v3059
      %v3120 = vpop.permute.xlu0 %3119
      %3121 = vset.pattern.permute.xlu0 0
      %3122 = vperm.xlu0 %3121, %v3061
      %v3123 = vpop.permute.xlu0 %3122
      %3124 = vset.pattern.permute.xlu0 0
      %3125 = vperm.xlu0 %3124, %v3063
      %v3126 = vpop.permute.xlu0 %3125
      %3127 = vset.pattern.permute.xlu0 0
      %3128 = vperm.xlu0 %3127, %v3065
      %v3129 = vpop.permute.xlu0 %3128
      %v3130 = vlaneseq
      %v3131 = vshrl.u32 %v3130, 7
      %v3132 = vsub.s32 %v2841, %v3131
      %v3133 = vrot.slane %v3084, %v3132
      %v3134 = vlaneseq
      %v3135 = vshrl.u32 %v3134, 7
      %v3136 = vsub.s32 %v2841, %v3135
      %v3137 = vrot.slane %v3087, %v3136
      %v3138 = vlaneseq
      %v3139 = vshrl.u32 %v3138, 7
      %v3140 = vsub.s32 %v2841, %v3139
      %v3141 = vrot.slane %v3090, %v3140
      %v3142 = vlaneseq
      %v3143 = vshrl.u32 %v3142, 7
      %v3144 = vsub.s32 %v2841, %v3143
      %v3145 = vrot.slane %v3093, %v3144
      %v3146 = vlaneseq
      %v3147 = vshrl.u32 %v3146, 7
      %v3148 = vsub.s32 %v2841, %v3147
      %v3149 = vrot.slane %v3096, %v3148
      %v3150 = vlaneseq
      %v3151 = vshrl.u32 %v3150, 7
      %v3152 = vsub.s32 %v2841, %v3151
      %v3153 = vrot.slane %v3099, %v3152
      %v3154 = vlaneseq
      %v3155 = vshrl.u32 %v3154, 7
      %v3156 = vsub.s32 %v2841, %v3155
      %v3157 = vrot.slane %v3102, %v3156
      %v3158 = vlaneseq
      %v3159 = vshrl.u32 %v3158, 7
      %v3160 = vsub.s32 %v2841, %v3159
      %v3161 = vrot.slane %v3105, %v3160
      %v3162 = vlaneseq
      %v3163 = vshrl.u32 %v3162, 7
      %v3164 = vsub.s32 %v2841, %v3163
      %v3165 = vrot.slane %v3108, %v3164
      %v3166 = vlaneseq
      %v3167 = vshrl.u32 %v3166, 7
      %v3168 = vsub.s32 %v2841, %v3167
      %v3169 = vrot.slane %v3111, %v3168
      %v3170 = vlaneseq
      %v3171 = vshrl.u32 %v3170, 7
      %v3172 = vsub.s32 %v2841, %v3171
      %v3173 = vrot.slane %v3114, %v3172
      %v3174 = vlaneseq
      %v3175 = vshrl.u32 %v3174, 7
      %v3176 = vsub.s32 %v2841, %v3175
      %v3177 = vrot.slane %v3117, %v3176
      %v3178 = vlaneseq
      %v3179 = vshrl.u32 %v3178, 7
      %v3180 = vsub.s32 %v2841, %v3179
      %v3181 = vrot.slane %v3120, %v3180
      %v3182 = vlaneseq
      %v3183 = vshrl.u32 %v3182, 7
      %v3184 = vsub.s32 %v2841, %v3183
      %v3185 = vrot.slane %v3123, %v3184
      %v3186 = vlaneseq
      %v3187 = vshrl.u32 %v3186, 7
      %v3188 = vsub.s32 %v2841, %v3187
      %v3189 = vrot.slane %v3126, %v3188
      %v3190 = vlaneseq
      %v3191 = vshrl.u32 %v3190, 7
      %v3192 = vsub.s32 %v2841, %v3191
      %v3193 = vrot.slane %v3129, %v3192
      %v3194 = vsel %vm2906, %v3137, %v3133
      %v3195 = vsel %vm2908, %v3141, %v3194
      %v3196 = vsel %vm2910, %v3145, %v3195
      %v3197 = vsel %vm2912, %v3149, %v3196
      %v3198 = vsel %vm2914, %v3153, %v3197
      %v3199 = vsel %vm2916, %v3157, %v3198
      %v3200 = vsel %vm2918, %v3161, %v3199
      %v3201 = vsel %vm2906, %v3169, %v3165
      %v3202 = vsel %vm2908, %v3173, %v3201
      %v3203 = vsel %vm2910, %v3177, %v3202
      %v3204 = vsel %vm2912, %v3181, %v3203
      %v3205 = vsel %vm2914, %v3185, %v3204
      %v3206 = vsel %vm2916, %v3189, %v3205
      %v3207 = vsel %vm2918, %v3193, %v3206
      %v3210 = vsel %vm2929, %v3200, 0.0
      %3211 = vadd.xlane.f32.xlu0 %v3210
      %v3212 = vpop.xlane.xlu0 %3211
      %v3213 = vsel %vm2929, %v3207, 0.0
      %3214 = vadd.xlane.f32.xlu0 %v3213
      %v3215 = vpop.xlane.xlu0 %3214
      %v3216 = vrcp.pop %v3212
      %v3217 = vrcp.pop %v3215
      %v3220 = vlaneseq
      %v3221 = vshrl.u32 %v3220, 7
      %v3222 = vsub.s32 0, %v3221
      %v3223 = vrot.slane %v3216, %v3222
      %v3224 = vlaneseq
      %v3225 = vshrl.u32 %v3224, 7
      %v3226 = vsub.s32 1, %v3225
      %v3227 = vrot.slane %v3216, %v3226
      %v3228 = vlaneseq
      %v3229 = vshrl.u32 %v3228, 7
      %v3230 = vsub.s32 2, %v3229
      %v3231 = vrot.slane %v3216, %v3230
      %v3232 = vlaneseq
      %v3233 = vshrl.u32 %v3232, 7
      %v3234 = vsub.s32 3, %v3233
      %v3235 = vrot.slane %v3216, %v3234
      %v3236 = vlaneseq
      %v3237 = vshrl.u32 %v3236, 7
      %v3238 = vsub.s32 4, %v3237
      %v3239 = vrot.slane %v3216, %v3238
      %v3240 = vlaneseq
      %v3241 = vshrl.u32 %v3240, 7
      %v3242 = vsub.s32 5, %v3241
      %v3243 = vrot.slane %v3216, %v3242
      %v3244 = vlaneseq
      %v3245 = vshrl.u32 %v3244, 7
      %v3246 = vsub.s32 6, %v3245
      %v3247 = vrot.slane %v3216, %v3246
      %v3248 = vlaneseq
      %v3249 = vshrl.u32 %v3248, 7
      %v3250 = vsub.s32 7, %v3249
      %v3251 = vrot.slane %v3216, %v3250
      %v3252 = vlaneseq
      %v3253 = vshrl.u32 %v3252, 7
      %v3254 = vsub.s32 0, %v3253
      %v3255 = vrot.slane %v3217, %v3254
      %v3256 = vlaneseq
      %v3257 = vshrl.u32 %v3256, 7
      %v3258 = vsub.s32 1, %v3257
      %v3259 = vrot.slane %v3217, %v3258
      %v3260 = vlaneseq
      %v3261 = vshrl.u32 %v3260, 7
      %v3262 = vsub.s32 2, %v3261
      %v3263 = vrot.slane %v3217, %v3262
      %v3264 = vlaneseq
      %v3265 = vshrl.u32 %v3264, 7
      %v3266 = vsub.s32 3, %v3265
      %v3267 = vrot.slane %v3217, %v3266
      %v3268 = vlaneseq
      %v3269 = vshrl.u32 %v3268, 7
      %v3270 = vsub.s32 4, %v3269
      %v3271 = vrot.slane %v3217, %v3270
      %v3272 = vlaneseq
      %v3273 = vshrl.u32 %v3272, 7
      %v3274 = vsub.s32 5, %v3273
      %v3275 = vrot.slane %v3217, %v3274
      %v3276 = vlaneseq
      %v3277 = vshrl.u32 %v3276, 7
      %v3278 = vsub.s32 6, %v3277
      %v3279 = vrot.slane %v3217, %v3278
      %v3280 = vlaneseq
      %v3281 = vshrl.u32 %v3280, 7
      %v3282 = vsub.s32 7, %v3281
      %v3283 = vrot.slane %v3217, %v3282
      %v3300 = vmul.f32 %v3035, %v3223
      %v3301 = vmul.f32 %v3037, %v3227
      %v3302 = vmul.f32 %v3039, %v3231
      %v3303 = vmul.f32 %v3041, %v3235
      %v3304 = vmul.f32 %v3043, %v3239
      %v3305 = vmul.f32 %v3045, %v3243
      %v3306 = vmul.f32 %v3047, %v3247
      %v3307 = vmul.f32 %v3049, %v3251
      %v3308 = vmul.f32 %v3051, %v3255
      %v3309 = vmul.f32 %v3053, %v3259
      %v3310 = vmul.f32 %v3055, %v3263
      %v3311 = vmul.f32 %v3057, %v3267
      %v3312 = vmul.f32 %v3059, %v3271
      %v3313 = vmul.f32 %v3061, %v3275
      %v3314 = vmul.f32 %v3063, %v3279
      %v3315 = vmul.f32 %v3065, %v3283
      %3317 = vset.pattern.permute.xlu0 0
      %3318 = vperm.xlu0 %3317, %v3300
      %v3319 = vpop.permute.xlu0 %3318
      %3322 = vset.pattern.permute.xlu0 0
      %3323 = vperm.xlu0 %3322, %v3301
      %v3324 = vpop.permute.xlu0 %3323
      %3327 = vset.pattern.permute.xlu0 0
      %3328 = vperm.xlu0 %3327, %v3302
      %v3329 = vpop.permute.xlu0 %3328
      %3332 = vset.pattern.permute.xlu0 0
      %3333 = vperm.xlu0 %3332, %v3303
      %v3334 = vpop.permute.xlu0 %3333
      %3337 = vset.pattern.permute.xlu0 0
      %3338 = vperm.xlu0 %3337, %v3304
      %v3339 = vpop.permute.xlu0 %3338
      %3342 = vset.pattern.permute.xlu0 0
      %3343 = vperm.xlu0 %3342, %v3305
      %v3344 = vpop.permute.xlu0 %3343
      %3347 = vset.pattern.permute.xlu0 0
      %3348 = vperm.xlu0 %3347, %v3306
      %v3349 = vpop.permute.xlu0 %3348
      %3352 = vset.pattern.permute.xlu0 0
      %3353 = vperm.xlu0 %3352, %v3307
      %v3354 = vpop.permute.xlu0 %3353
      %3357 = vset.pattern.permute.xlu0 0
      %3358 = vperm.xlu0 %3357, %v3308
      %v3359 = vpop.permute.xlu0 %3358
      %3362 = vset.pattern.permute.xlu0 0
      %3363 = vperm.xlu0 %3362, %v3309
      %v3364 = vpop.permute.xlu0 %3363
      %3367 = vset.pattern.permute.xlu0 0
      %3368 = vperm.xlu0 %3367, %v3310
      %v3369 = vpop.permute.xlu0 %3368
      %3372 = vset.pattern.permute.xlu0 0
      %3373 = vperm.xlu0 %3372, %v3311
      %v3374 = vpop.permute.xlu0 %3373
      %3377 = vset.pattern.permute.xlu0 0
      %3378 = vperm.xlu0 %3377, %v3312
      %v3379 = vpop.permute.xlu0 %3378
      %3382 = vset.pattern.permute.xlu0 0
      %3383 = vperm.xlu0 %3382, %v3313
      %v3384 = vpop.permute.xlu0 %3383
      %3387 = vset.pattern.permute.xlu0 0
      %3388 = vperm.xlu0 %3387, %v3314
      %v3389 = vpop.permute.xlu0 %3388
      %3392 = vset.pattern.permute.xlu0 0
      %3393 = vperm.xlu0 %3392, %v3315
      %v3394 = vpop.permute.xlu0 %3393
      %v3396 = vmul.f32 %v3319, %v2200
      %v3397 = vmul.f32 %v3319, %v2201
      %v3398 = vmul.f32 %v3319, %v2202
      %v3399 = vmul.f32 %v3319, %v2203
      %v3400 = vmul.f32 %v3324, %v2204
      %v3401 = vmul.f32 %v3324, %v2205
      %v3402 = vmul.f32 %v3324, %v2206
      %v3403 = vmul.f32 %v3324, %v2207
      %v3404 = vmul.f32 %v3329, %v2208
      %v3405 = vmul.f32 %v3329, %v2209
      %v3406 = vmul.f32 %v3329, %v2210
      %v3407 = vmul.f32 %v3329, %v2211
      %v3408 = vmul.f32 %v3334, %v2212
      %v3409 = vmul.f32 %v3334, %v2213
      %v3410 = vmul.f32 %v3334, %v2214
      %v3411 = vmul.f32 %v3334, %v2215
      %v3412 = vmul.f32 %v3339, %v2216
      %v3413 = vmul.f32 %v3339, %v2217
      %v3414 = vmul.f32 %v3339, %v2218
      %v3415 = vmul.f32 %v3339, %v2219
      %v3416 = vmul.f32 %v3344, %v2220
      %v3417 = vmul.f32 %v3344, %v2221
      %v3418 = vmul.f32 %v3344, %v2222
      %v3419 = vmul.f32 %v3344, %v2223
      %v3420 = vmul.f32 %v3349, %v2224
      %v3421 = vmul.f32 %v3349, %v2225
      %v3422 = vmul.f32 %v3349, %v2226
      %v3423 = vmul.f32 %v3349, %v2227
      %v3424 = vmul.f32 %v3354, %v2228
      %v3425 = vmul.f32 %v3354, %v2229
      %v3426 = vmul.f32 %v3354, %v2230
      %v3427 = vmul.f32 %v3354, %v2231
      %v3428 = vmul.f32 %v3359, %v2232
      %v3429 = vmul.f32 %v3359, %v2233
      %v3430 = vmul.f32 %v3359, %v2234
      %v3431 = vmul.f32 %v3359, %v2235
      %v3432 = vmul.f32 %v3364, %v2236
      %v3433 = vmul.f32 %v3364, %v2237
      %v3434 = vmul.f32 %v3364, %v2238
      %v3435 = vmul.f32 %v3364, %v2239
      %v3436 = vmul.f32 %v3369, %v2240
      %v3437 = vmul.f32 %v3369, %v2241
      %v3438 = vmul.f32 %v3369, %v2242
      %v3439 = vmul.f32 %v3369, %v2243
      %v3440 = vmul.f32 %v3374, %v2244
      %v3441 = vmul.f32 %v3374, %v2245
      %v3442 = vmul.f32 %v3374, %v2246
      %v3443 = vmul.f32 %v3374, %v2247
      %v3444 = vmul.f32 %v3379, %v2248
      %v3445 = vmul.f32 %v3379, %v2249
      %v3446 = vmul.f32 %v3379, %v2250
      %v3447 = vmul.f32 %v3379, %v2251
      %v3448 = vmul.f32 %v3384, %v2252
      %v3449 = vmul.f32 %v3384, %v2253
      %v3450 = vmul.f32 %v3384, %v2254
      %v3451 = vmul.f32 %v3384, %v2255
      %v3452 = vmul.f32 %v3389, %v2256
      %v3453 = vmul.f32 %v3389, %v2257
      %v3454 = vmul.f32 %v3389, %v2258
      %v3455 = vmul.f32 %v3389, %v2259
      %v3456 = vmul.f32 %v3394, %v2260
      %v3457 = vmul.f32 %v3394, %v2261
      %v3458 = vmul.f32 %v3394, %v2262
      %v3459 = vmul.f32 %v3394, %v2263
      %v3460 = vrot.slane %v3396, 4
      %v3461 = vadd.f32 %v3396, %v3460
      %v3462 = vrot.slane %v3461, 2
      %v3463 = vadd.f32 %v3461, %v3462
      %v3464 = vrot.slane %v3463, 1
      %v3465 = vadd.f32 %v3463, %v3464
      %v3466 = vrot.slane %v3397, 4
      %v3467 = vadd.f32 %v3397, %v3466
      %v3468 = vrot.slane %v3467, 2
      %v3469 = vadd.f32 %v3467, %v3468
      %v3470 = vrot.slane %v3469, 1
      %v3471 = vadd.f32 %v3469, %v3470
      %v3472 = vrot.slane %v3398, 4
      %v3473 = vadd.f32 %v3398, %v3472
      %v3474 = vrot.slane %v3473, 2
      %v3475 = vadd.f32 %v3473, %v3474
      %v3476 = vrot.slane %v3475, 1
      %v3477 = vadd.f32 %v3475, %v3476
      %v3478 = vrot.slane %v3399, 4
      %v3479 = vadd.f32 %v3399, %v3478
      %v3480 = vrot.slane %v3479, 2
      %v3481 = vadd.f32 %v3479, %v3480
      %v3482 = vrot.slane %v3481, 1
      %v3483 = vadd.f32 %v3481, %v3482
      %v3484 = vrot.slane %v3400, 4
      %v3485 = vadd.f32 %v3400, %v3484
      %v3486 = vrot.slane %v3485, 2
      %v3487 = vadd.f32 %v3485, %v3486
      %v3488 = vrot.slane %v3487, 1
      %v3489 = vadd.f32 %v3487, %v3488
      %v3490 = vrot.slane %v3401, 4
      %v3491 = vadd.f32 %v3401, %v3490
      %v3492 = vrot.slane %v3491, 2
      %v3493 = vadd.f32 %v3491, %v3492
      %v3494 = vrot.slane %v3493, 1
      %v3495 = vadd.f32 %v3493, %v3494
      %v3496 = vrot.slane %v3402, 4
      %v3497 = vadd.f32 %v3402, %v3496
      %v3498 = vrot.slane %v3497, 2
      %v3499 = vadd.f32 %v3497, %v3498
      %v3500 = vrot.slane %v3499, 1
      %v3501 = vadd.f32 %v3499, %v3500
      %v3502 = vrot.slane %v3403, 4
      %v3503 = vadd.f32 %v3403, %v3502
      %v3504 = vrot.slane %v3503, 2
      %v3505 = vadd.f32 %v3503, %v3504
      %v3506 = vrot.slane %v3505, 1
      %v3507 = vadd.f32 %v3505, %v3506
      %v3508 = vrot.slane %v3404, 4
      %v3509 = vadd.f32 %v3404, %v3508
      %v3510 = vrot.slane %v3509, 2
      %v3511 = vadd.f32 %v3509, %v3510
      %v3512 = vrot.slane %v3511, 1
      %v3513 = vadd.f32 %v3511, %v3512
      %v3514 = vrot.slane %v3405, 4
      %v3515 = vadd.f32 %v3405, %v3514
      %v3516 = vrot.slane %v3515, 2
      %v3517 = vadd.f32 %v3515, %v3516
      %v3518 = vrot.slane %v3517, 1
      %v3519 = vadd.f32 %v3517, %v3518
      %v3520 = vrot.slane %v3406, 4
      %v3521 = vadd.f32 %v3406, %v3520
      %v3522 = vrot.slane %v3521, 2
      %v3523 = vadd.f32 %v3521, %v3522
      %v3524 = vrot.slane %v3523, 1
      %v3525 = vadd.f32 %v3523, %v3524
      %v3526 = vrot.slane %v3407, 4
      %v3527 = vadd.f32 %v3407, %v3526
      %v3528 = vrot.slane %v3527, 2
      %v3529 = vadd.f32 %v3527, %v3528
      %v3530 = vrot.slane %v3529, 1
      %v3531 = vadd.f32 %v3529, %v3530
      %v3532 = vrot.slane %v3408, 4
      %v3533 = vadd.f32 %v3408, %v3532
      %v3534 = vrot.slane %v3533, 2
      %v3535 = vadd.f32 %v3533, %v3534
      %v3536 = vrot.slane %v3535, 1
      %v3537 = vadd.f32 %v3535, %v3536
      %v3538 = vrot.slane %v3409, 4
      %v3539 = vadd.f32 %v3409, %v3538
      %v3540 = vrot.slane %v3539, 2
      %v3541 = vadd.f32 %v3539, %v3540
      %v3542 = vrot.slane %v3541, 1
      %v3543 = vadd.f32 %v3541, %v3542
      %v3544 = vrot.slane %v3410, 4
      %v3545 = vadd.f32 %v3410, %v3544
      %v3546 = vrot.slane %v3545, 2
      %v3547 = vadd.f32 %v3545, %v3546
      %v3548 = vrot.slane %v3547, 1
      %v3549 = vadd.f32 %v3547, %v3548
      %v3550 = vrot.slane %v3411, 4
      %v3551 = vadd.f32 %v3411, %v3550
      %v3552 = vrot.slane %v3551, 2
      %v3553 = vadd.f32 %v3551, %v3552
      %v3554 = vrot.slane %v3553, 1
      %v3555 = vadd.f32 %v3553, %v3554
      %v3556 = vrot.slane %v3412, 4
      %v3557 = vadd.f32 %v3412, %v3556
      %v3558 = vrot.slane %v3557, 2
      %v3559 = vadd.f32 %v3557, %v3558
      %v3560 = vrot.slane %v3559, 1
      %v3561 = vadd.f32 %v3559, %v3560
      %v3562 = vrot.slane %v3413, 4
      %v3563 = vadd.f32 %v3413, %v3562
      %v3564 = vrot.slane %v3563, 2
      %v3565 = vadd.f32 %v3563, %v3564
      %v3566 = vrot.slane %v3565, 1
      %v3567 = vadd.f32 %v3565, %v3566
      %v3568 = vrot.slane %v3414, 4
      %v3569 = vadd.f32 %v3414, %v3568
      %v3570 = vrot.slane %v3569, 2
      %v3571 = vadd.f32 %v3569, %v3570
      %v3572 = vrot.slane %v3571, 1
      %v3573 = vadd.f32 %v3571, %v3572
      %v3574 = vrot.slane %v3415, 4
      %v3575 = vadd.f32 %v3415, %v3574
      %v3576 = vrot.slane %v3575, 2
      %v3577 = vadd.f32 %v3575, %v3576
      %v3578 = vrot.slane %v3577, 1
      %v3579 = vadd.f32 %v3577, %v3578
      %v3580 = vrot.slane %v3416, 4
      %v3581 = vadd.f32 %v3416, %v3580
      %v3582 = vrot.slane %v3581, 2
      %v3583 = vadd.f32 %v3581, %v3582
      %v3584 = vrot.slane %v3583, 1
      %v3585 = vadd.f32 %v3583, %v3584
      %v3586 = vrot.slane %v3417, 4
      %v3587 = vadd.f32 %v3417, %v3586
      %v3588 = vrot.slane %v3587, 2
      %v3589 = vadd.f32 %v3587, %v3588
      %v3590 = vrot.slane %v3589, 1
      %v3591 = vadd.f32 %v3589, %v3590
      %v3592 = vrot.slane %v3418, 4
      %v3593 = vadd.f32 %v3418, %v3592
      %v3594 = vrot.slane %v3593, 2
      %v3595 = vadd.f32 %v3593, %v3594
      %v3596 = vrot.slane %v3595, 1
      %v3597 = vadd.f32 %v3595, %v3596
      %v3598 = vrot.slane %v3419, 4
      %v3599 = vadd.f32 %v3419, %v3598
      %v3600 = vrot.slane %v3599, 2
      %v3601 = vadd.f32 %v3599, %v3600
      %v3602 = vrot.slane %v3601, 1
      %v3603 = vadd.f32 %v3601, %v3602
      %v3604 = vrot.slane %v3420, 4
      %v3605 = vadd.f32 %v3420, %v3604
      %v3606 = vrot.slane %v3605, 2
      %v3607 = vadd.f32 %v3605, %v3606
      %v3608 = vrot.slane %v3607, 1
      %v3609 = vadd.f32 %v3607, %v3608
      %v3610 = vrot.slane %v3421, 4
      %v3611 = vadd.f32 %v3421, %v3610
      %v3612 = vrot.slane %v3611, 2
      %v3613 = vadd.f32 %v3611, %v3612
      %v3614 = vrot.slane %v3613, 1
      %v3615 = vadd.f32 %v3613, %v3614
      %v3616 = vrot.slane %v3422, 4
      %v3617 = vadd.f32 %v3422, %v3616
      %v3618 = vrot.slane %v3617, 2
      %v3619 = vadd.f32 %v3617, %v3618
      %v3620 = vrot.slane %v3619, 1
      %v3621 = vadd.f32 %v3619, %v3620
      %v3622 = vrot.slane %v3423, 4
      %v3623 = vadd.f32 %v3423, %v3622
      %v3624 = vrot.slane %v3623, 2
      %v3625 = vadd.f32 %v3623, %v3624
      %v3626 = vrot.slane %v3625, 1
      %v3627 = vadd.f32 %v3625, %v3626
      %v3628 = vrot.slane %v3424, 4
      %v3629 = vadd.f32 %v3424, %v3628
      %v3630 = vrot.slane %v3629, 2
      %v3631 = vadd.f32 %v3629, %v3630
      %v3632 = vrot.slane %v3631, 1
      %v3633 = vadd.f32 %v3631, %v3632
      %v3634 = vrot.slane %v3425, 4
      %v3635 = vadd.f32 %v3425, %v3634
      %v3636 = vrot.slane %v3635, 2
      %v3637 = vadd.f32 %v3635, %v3636
      %v3638 = vrot.slane %v3637, 1
      %v3639 = vadd.f32 %v3637, %v3638
      %v3640 = vrot.slane %v3426, 4
      %v3641 = vadd.f32 %v3426, %v3640
      %v3642 = vrot.slane %v3641, 2
      %v3643 = vadd.f32 %v3641, %v3642
      %v3644 = vrot.slane %v3643, 1
      %v3645 = vadd.f32 %v3643, %v3644
      %v3646 = vrot.slane %v3427, 4
      %v3647 = vadd.f32 %v3427, %v3646
      %v3648 = vrot.slane %v3647, 2
      %v3649 = vadd.f32 %v3647, %v3648
      %v3650 = vrot.slane %v3649, 1
      %v3651 = vadd.f32 %v3649, %v3650
      %v3652 = vrot.slane %v3428, 4
      %v3653 = vadd.f32 %v3428, %v3652
      %v3654 = vrot.slane %v3653, 2
      %v3655 = vadd.f32 %v3653, %v3654
      %v3656 = vrot.slane %v3655, 1
      %v3657 = vadd.f32 %v3655, %v3656
      %v3658 = vrot.slane %v3429, 4
      %v3659 = vadd.f32 %v3429, %v3658
      %v3660 = vrot.slane %v3659, 2
      %v3661 = vadd.f32 %v3659, %v3660
      %v3662 = vrot.slane %v3661, 1
      %v3663 = vadd.f32 %v3661, %v3662
      %v3664 = vrot.slane %v3430, 4
      %v3665 = vadd.f32 %v3430, %v3664
      %v3666 = vrot.slane %v3665, 2
      %v3667 = vadd.f32 %v3665, %v3666
      %v3668 = vrot.slane %v3667, 1
      %v3669 = vadd.f32 %v3667, %v3668
      %v3670 = vrot.slane %v3431, 4
      %v3671 = vadd.f32 %v3431, %v3670
      %v3672 = vrot.slane %v3671, 2
      %v3673 = vadd.f32 %v3671, %v3672
      %v3674 = vrot.slane %v3673, 1
      %v3675 = vadd.f32 %v3673, %v3674
      %v3676 = vrot.slane %v3432, 4
      %v3677 = vadd.f32 %v3432, %v3676
      %v3678 = vrot.slane %v3677, 2
      %v3679 = vadd.f32 %v3677, %v3678
      %v3680 = vrot.slane %v3679, 1
      %v3681 = vadd.f32 %v3679, %v3680
      %v3682 = vrot.slane %v3433, 4
      %v3683 = vadd.f32 %v3433, %v3682
      %v3684 = vrot.slane %v3683, 2
      %v3685 = vadd.f32 %v3683, %v3684
      %v3686 = vrot.slane %v3685, 1
      %v3687 = vadd.f32 %v3685, %v3686
      %v3688 = vrot.slane %v3434, 4
      %v3689 = vadd.f32 %v3434, %v3688
      %v3690 = vrot.slane %v3689, 2
      %v3691 = vadd.f32 %v3689, %v3690
      %v3692 = vrot.slane %v3691, 1
      %v3693 = vadd.f32 %v3691, %v3692
      %v3694 = vrot.slane %v3435, 4
      %v3695 = vadd.f32 %v3435, %v3694
      %v3696 = vrot.slane %v3695, 2
      %v3697 = vadd.f32 %v3695, %v3696
      %v3698 = vrot.slane %v3697, 1
      %v3699 = vadd.f32 %v3697, %v3698
      %v3700 = vrot.slane %v3436, 4
      %v3701 = vadd.f32 %v3436, %v3700
      %v3702 = vrot.slane %v3701, 2
      %v3703 = vadd.f32 %v3701, %v3702
      %v3704 = vrot.slane %v3703, 1
      %v3705 = vadd.f32 %v3703, %v3704
      %v3706 = vrot.slane %v3437, 4
      %v3707 = vadd.f32 %v3437, %v3706
      %v3708 = vrot.slane %v3707, 2
      %v3709 = vadd.f32 %v3707, %v3708
      %v3710 = vrot.slane %v3709, 1
      %v3711 = vadd.f32 %v3709, %v3710
      %v3712 = vrot.slane %v3438, 4
      %v3713 = vadd.f32 %v3438, %v3712
      %v3714 = vrot.slane %v3713, 2
      %v3715 = vadd.f32 %v3713, %v3714
      %v3716 = vrot.slane %v3715, 1
      %v3717 = vadd.f32 %v3715, %v3716
      %v3718 = vrot.slane %v3439, 4
      %v3719 = vadd.f32 %v3439, %v3718
      %v3720 = vrot.slane %v3719, 2
      %v3721 = vadd.f32 %v3719, %v3720
      %v3722 = vrot.slane %v3721, 1
      %v3723 = vadd.f32 %v3721, %v3722
      %v3724 = vrot.slane %v3440, 4
      %v3725 = vadd.f32 %v3440, %v3724
      %v3726 = vrot.slane %v3725, 2
      %v3727 = vadd.f32 %v3725, %v3726
      %v3728 = vrot.slane %v3727, 1
      %v3729 = vadd.f32 %v3727, %v3728
      %v3730 = vrot.slane %v3441, 4
      %v3731 = vadd.f32 %v3441, %v3730
      %v3732 = vrot.slane %v3731, 2
      %v3733 = vadd.f32 %v3731, %v3732
      %v3734 = vrot.slane %v3733, 1
      %v3735 = vadd.f32 %v3733, %v3734
      %v3736 = vrot.slane %v3442, 4
      %v3737 = vadd.f32 %v3442, %v3736
      %v3738 = vrot.slane %v3737, 2
      %v3739 = vadd.f32 %v3737, %v3738
      %v3740 = vrot.slane %v3739, 1
      %v3741 = vadd.f32 %v3739, %v3740
      %v3742 = vrot.slane %v3443, 4
      %v3743 = vadd.f32 %v3443, %v3742
      %v3744 = vrot.slane %v3743, 2
      %v3745 = vadd.f32 %v3743, %v3744
      %v3746 = vrot.slane %v3745, 1
      %v3747 = vadd.f32 %v3745, %v3746
      %v3748 = vrot.slane %v3444, 4
      %v3749 = vadd.f32 %v3444, %v3748
      %v3750 = vrot.slane %v3749, 2
      %v3751 = vadd.f32 %v3749, %v3750
      %v3752 = vrot.slane %v3751, 1
      %v3753 = vadd.f32 %v3751, %v3752
      %v3754 = vrot.slane %v3445, 4
      %v3755 = vadd.f32 %v3445, %v3754
      %v3756 = vrot.slane %v3755, 2
      %v3757 = vadd.f32 %v3755, %v3756
      %v3758 = vrot.slane %v3757, 1
      %v3759 = vadd.f32 %v3757, %v3758
      %v3760 = vrot.slane %v3446, 4
      %v3761 = vadd.f32 %v3446, %v3760
      %v3762 = vrot.slane %v3761, 2
      %v3763 = vadd.f32 %v3761, %v3762
      %v3764 = vrot.slane %v3763, 1
      %v3765 = vadd.f32 %v3763, %v3764
      %v3766 = vrot.slane %v3447, 4
      %v3767 = vadd.f32 %v3447, %v3766
      %v3768 = vrot.slane %v3767, 2
      %v3769 = vadd.f32 %v3767, %v3768
      %v3770 = vrot.slane %v3769, 1
      %v3771 = vadd.f32 %v3769, %v3770
      %v3772 = vrot.slane %v3448, 4
      %v3773 = vadd.f32 %v3448, %v3772
      %v3774 = vrot.slane %v3773, 2
      %v3775 = vadd.f32 %v3773, %v3774
      %v3776 = vrot.slane %v3775, 1
      %v3777 = vadd.f32 %v3775, %v3776
      %v3778 = vrot.slane %v3449, 4
      %v3779 = vadd.f32 %v3449, %v3778
      %v3780 = vrot.slane %v3779, 2
      %v3781 = vadd.f32 %v3779, %v3780
      %v3782 = vrot.slane %v3781, 1
      %v3783 = vadd.f32 %v3781, %v3782
      %v3784 = vrot.slane %v3450, 4
      %v3785 = vadd.f32 %v3450, %v3784
      %v3786 = vrot.slane %v3785, 2
      %v3787 = vadd.f32 %v3785, %v3786
      %v3788 = vrot.slane %v3787, 1
      %v3789 = vadd.f32 %v3787, %v3788
      %v3790 = vrot.slane %v3451, 4
      %v3791 = vadd.f32 %v3451, %v3790
      %v3792 = vrot.slane %v3791, 2
      %v3793 = vadd.f32 %v3791, %v3792
      %v3794 = vrot.slane %v3793, 1
      %v3795 = vadd.f32 %v3793, %v3794
      %v3796 = vrot.slane %v3452, 4
      %v3797 = vadd.f32 %v3452, %v3796
      %v3798 = vrot.slane %v3797, 2
      %v3799 = vadd.f32 %v3797, %v3798
      %v3800 = vrot.slane %v3799, 1
      %v3801 = vadd.f32 %v3799, %v3800
      %v3802 = vrot.slane %v3453, 4
      %v3803 = vadd.f32 %v3453, %v3802
      %v3804 = vrot.slane %v3803, 2
      %v3805 = vadd.f32 %v3803, %v3804
      %v3806 = vrot.slane %v3805, 1
      %v3807 = vadd.f32 %v3805, %v3806
      %v3808 = vrot.slane %v3454, 4
      %v3809 = vadd.f32 %v3454, %v3808
      %v3810 = vrot.slane %v3809, 2
      %v3811 = vadd.f32 %v3809, %v3810
      %v3812 = vrot.slane %v3811, 1
      %v3813 = vadd.f32 %v3811, %v3812
      %v3814 = vrot.slane %v3455, 4
      %v3815 = vadd.f32 %v3455, %v3814
      %v3816 = vrot.slane %v3815, 2
      %v3817 = vadd.f32 %v3815, %v3816
      %v3818 = vrot.slane %v3817, 1
      %v3819 = vadd.f32 %v3817, %v3818
      %v3820 = vrot.slane %v3456, 4
      %v3821 = vadd.f32 %v3456, %v3820
      %v3822 = vrot.slane %v3821, 2
      %v3823 = vadd.f32 %v3821, %v3822
      %v3824 = vrot.slane %v3823, 1
      %v3825 = vadd.f32 %v3823, %v3824
      %v3826 = vrot.slane %v3457, 4
      %v3827 = vadd.f32 %v3457, %v3826
      %v3828 = vrot.slane %v3827, 2
      %v3829 = vadd.f32 %v3827, %v3828
      %v3830 = vrot.slane %v3829, 1
      %v3831 = vadd.f32 %v3829, %v3830
      %v3832 = vrot.slane %v3458, 4
      %v3833 = vadd.f32 %v3458, %v3832
      %v3834 = vrot.slane %v3833, 2
      %v3835 = vadd.f32 %v3833, %v3834
      %v3836 = vrot.slane %v3835, 1
      %v3837 = vadd.f32 %v3835, %v3836
      %v3838 = vrot.slane %v3459, 4
      %v3839 = vadd.f32 %v3459, %v3838
      %v3840 = vrot.slane %v3839, 2
      %v3841 = vadd.f32 %v3839, %v3840
      %v3842 = vrot.slane %v3841, 1
      %v3843 = vadd.f32 %v3841, %v3842
      %v3908 = vsel %vm2906, %v3489, %v3465
      %v3909 = vsel %vm2908, %v3513, %v3908
      %v3910 = vsel %vm2910, %v3537, %v3909
      %v3911 = vsel %vm2912, %v3561, %v3910
      %v3912 = vsel %vm2914, %v3585, %v3911
      %v3913 = vsel %vm2916, %v3609, %v3912
      %v3914 = vsel %vm2918, %v3633, %v3913
      %v3915 = vsel %vm2906, %v3495, %v3471
      %v3916 = vsel %vm2908, %v3519, %v3915
      %v3917 = vsel %vm2910, %v3543, %v3916
      %v3918 = vsel %vm2912, %v3567, %v3917
      %v3919 = vsel %vm2914, %v3591, %v3918
      %v3920 = vsel %vm2916, %v3615, %v3919
      %v3921 = vsel %vm2918, %v3639, %v3920
      %v3922 = vsel %vm2906, %v3501, %v3477
      %v3923 = vsel %vm2908, %v3525, %v3922
      %v3924 = vsel %vm2910, %v3549, %v3923
      %v3925 = vsel %vm2912, %v3573, %v3924
      %v3926 = vsel %vm2914, %v3597, %v3925
      %v3927 = vsel %vm2916, %v3621, %v3926
      %v3928 = vsel %vm2918, %v3645, %v3927
      %v3929 = vsel %vm2906, %v3507, %v3483
      %v3930 = vsel %vm2908, %v3531, %v3929
      %v3931 = vsel %vm2910, %v3555, %v3930
      %v3932 = vsel %vm2912, %v3579, %v3931
      %v3933 = vsel %vm2914, %v3603, %v3932
      %v3934 = vsel %vm2916, %v3627, %v3933
      %v3935 = vsel %vm2918, %v3651, %v3934
      %v3936 = vsel %vm2906, %v3681, %v3657
      %v3937 = vsel %vm2908, %v3705, %v3936
      %v3938 = vsel %vm2910, %v3729, %v3937
      %v3939 = vsel %vm2912, %v3753, %v3938
      %v3940 = vsel %vm2914, %v3777, %v3939
      %v3941 = vsel %vm2916, %v3801, %v3940
      %v3942 = vsel %vm2918, %v3825, %v3941
      %v3943 = vsel %vm2906, %v3687, %v3663
      %v3944 = vsel %vm2908, %v3711, %v3943
      %v3945 = vsel %vm2910, %v3735, %v3944
      %v3946 = vsel %vm2912, %v3759, %v3945
      %v3947 = vsel %vm2914, %v3783, %v3946
      %v3948 = vsel %vm2916, %v3807, %v3947
      %v3949 = vsel %vm2918, %v3831, %v3948
      %v3950 = vsel %vm2906, %v3693, %v3669
      %v3951 = vsel %vm2908, %v3717, %v3950
      %v3952 = vsel %vm2910, %v3741, %v3951
      %v3953 = vsel %vm2912, %v3765, %v3952
      %v3954 = vsel %vm2914, %v3789, %v3953
      %v3955 = vsel %vm2916, %v3813, %v3954
      %v3956 = vsel %vm2918, %v3837, %v3955
      %v3957 = vsel %vm2906, %v3699, %v3675
      %v3958 = vsel %vm2908, %v3723, %v3957
      %v3959 = vsel %vm2910, %v3747, %v3958
      %v3960 = vsel %vm2912, %v3771, %v3959
      %v3961 = vsel %vm2914, %v3795, %v3960
      %v3962 = vsel %vm2916, %v3819, %v3961
      %v3963 = vsel %vm2918, %v3843, %v3962
      %3972 = vst [vmem:[%s309] sm:$0xff] %v3914
      %3973 = vst [vmem:[%s309 + $0x8] sm:$0xff] %v3921
      %3974 = vst [vmem:[%s309 + $0x10] sm:$0xff] %v3928
      %3975 = vst [vmem:[%s309 + $0x18] sm:$0xff] %v3935
      %3976 = vst [vmem:[%s309 + $0x20] sm:$0xff] %v3942
      %3977 = vst [vmem:[%s309 + $0x28] sm:$0xff] %v3949
      %3978 = vst [vmem:[%s309 + $0x30] sm:$0xff] %v3956
      %3979 = vst [vmem:[%s309 + $0x38] sm:$0xff] %v3963
      %s3980 = smul.u32 2, %s19
      %p3981 = scmp.lt.s32.totalorder %s3980, 3
      %s3982 = scalar_select %p3981, %s3980, 3
      %s3983 = smul.addr %s3982, 4
      %s3984 = smul.addr %s3983, 8
      %s3985 = scalar_lea.vmem %s8, %s3984
      // Predicated region
      $region53: #{naml_forward.2} parent=51 // pred_check
        %p3986 = pneg %p210
      $region54: #{naml_forward.2} parent=51 // pred_check_branch
        %3988 = sbr.rel (%p3986) target = $region56
      $region55: #{naml_forward.2} parent=51 // pred_region
        %s3989 = smul.u32 2, %s19
      $region56: #{naml_forward.2} parent=51 // pred_fallthru
        _
    $region52: #{naml_forward.2} parent=5 // pred_fallthru
      _
    %p3990 = scmp.le.s32.totalorder 2, %s14
    // Predicated region
    $region57: #{naml_forward.2} parent=5 // pred_check
      %p3991 = pneg %p3990
    $region58: #{naml_forward.2} parent=5 // pred_check_branch
      %3993 = sbr.rel (%p3991) target = $region60
    $region59: #{naml_forward.2} parent=5 // pred_region
      %s3994 = ssub.s32 %s14, 2
      // Predicated region
      $region61: #{naml_forward.2} parent=59 // pred_check
        %p3995 = pneg %p216
      $region62: #{naml_forward.2} parent=59 // pred_check_branch
        %3997 = sbr.rel (%p3995) target = $region64
      $region63: #{naml_forward.2} parent=59 // pred_region
        %s3998 = smul.u32 2, %s20
        %p3999 = scmp.lt.s32.totalorder %s3998, 3
        %s4000 = scalar_select %p3999, %s3998, 3
        %s4001 = smul.addr %s4000, 4
        %s4002 = smul.addr %s4001, 8
        %s4003 = scalar_lea.vmem %s8, %s4002
      $region64: #{naml_forward.2} parent=59 // pred_fallthru
        _
    $region60: #{naml_forward.2} parent=5 // pred_fallthru
      _
  $region6: #{naml_forward.2} parent=0 // loop_footer
    %s18 = sadd.s32 1, %s14
  $region7: #{naml_forward.2} parent=0 // loop_footer_branch
    %13 = sbr.rel target = $region3
  $region8: #{naml_forward.2} parent=0 // loop_exit
    _

</llo_original>
